<compile_context>
chip_gen: v6e
topology: v6e:2x2x1
jax: 0.10.0
libtpu: 0.0.40
codegen_flags: <defaults>
</compile_context>

<pallas_src>
import math

import jax
import jax.numpy as jnp
from jax.experimental import pallas as pl
from jax.experimental.pallas import tpu as pltpu

# ----------------------------- config (small) -----------------------------
VOCAB = 100
HIDDEN = 64
N_HEADS = 4
HEAD_DIM = HIDDEN // N_HEADS
FFN = 128
N_LAYERS = 2
MAX_POS = 32
SEQ = 8
BATCH = 2
LENGTH = 1024          # fixed output length (orig module: 1024*20), scaled down
LN_EPS = 1e-5

HEAD_PAD = 128                       # lane-aligned stride per head per matrix
QKV_W = 3 * N_HEADS * HEAD_PAD       # width of fused, padded QKV projection
OUT_ROWS = LENGTH // HIDDEN          # kernel output rows per example
assert LENGTH % HIDDEN == 0


# --------------------------- fused encoder kernel ---------------------------
def _encoder_kernel(x_ref,                       # (1, SEQ, H)   pre-LN embeddings
                    eg_ref, eb_ref,              # (1, H)        embedding LN
                    wqkv_ref, bqkv_ref,          # (L, H, QKV_W), (L, 1, QKV_W)
                    wo_ref, bo_ref,              # (L, NH*128, H), (L, 1, H)
                    g1_ref, b1_ref,              # (L, 1, H)     post-attn LN
                    w1_ref, bf1_ref,             # (L, H, F),    (L, 1, F)
                    w2_ref, bf2_ref,             # (L, F, H),    (L, 1, H)
                    g2_ref, b2_ref,              # (L, 1, H)     post-FFN LN
                    out_ref):                    # (1, OUT_ROWS, H)

    def layer_norm(x, g, b):
        # One-pass LN: E[x] and E[x^2] are independent lane reductions
        # (no serial dependency), var = E[x^2] - mu^2; rsqrt -> EUP.
        mu = jnp.mean(x, axis=-1, keepdims=True)
        ms = jnp.mean(x * x, axis=-1, keepdims=True)
        var = ms - mu * mu
        return (x - mu) * jax.lax.rsqrt(var + LN_EPS) * g + b

    x = x_ref[0].astype(jnp.float32)                          # (SEQ, H)
    x = layer_norm(x, eg_ref[...], eb_ref[...])

    for l in range(N_LAYERS):                                 # statically unrolled
        # ---- self-attention: fused QKV matmul; each head's q/k/v starts on
        # a 128-lane boundary (padded columns are zero), Q already carries
        # the 1/sqrt(head_dim) scale.
        qkv = (jnp.dot(x, wqkv_ref[l], preferred_element_type=jnp.float32)
               + bqkv_ref[l])                                 # (SEQ, QKV_W)

        ctx = []
        for h in range(N_HEADS):
            q0 = h * HEAD_PAD
            k0 = (N_HEADS + h) * HEAD_PAD
            v0 = (2 * N_HEADS + h) * HEAD_PAD
            q = qkv[:, q0:q0 + HEAD_PAD]                      # (SEQ, 128) aligned
            k = qkv[:, k0:k0 + HEAD_PAD]
            v = qkv[:, v0:v0 + HEAD_PAD]
            # Plain 2-D dots on the MXU (padded lanes are zero -> no effect).
            s = jax.lax.dot_general(q, k, (((1,), (1,)), ((), ())),
                                    preferred_element_type=jnp.float32)  # (SEQ, SEQ)
            m = jnp.max(s, axis=-1, keepdims=True)
            p = jnp.exp(s - m)
            p = p / jnp.sum(p, axis=-1, keepdims=True)        # exact softmax
            ctx.append(jnp.dot(p, v, preferred_element_type=jnp.float32))  # (SEQ,128)

        # Single fused head-output projection (wo rows at padded offsets).
        ctx_all = jnp.concatenate(ctx, axis=-1)               # (SEQ, NH*128)
        attn = (jnp.dot(ctx_all, wo_ref[l], preferred_element_type=jnp.float32)
                + bo_ref[l])                                  # (SEQ, H)

        # ---- residual + LayerNorm (fused) ----
        x = layer_norm(attn + x, g1_ref[l], b1_ref[l])

        # ---- feed-forward (GELU) + residual + LayerNorm (fused) ----
        h1 = (jnp.dot(x, w1_ref[l], preferred_element_type=jnp.float32)
              + bf1_ref[l])
        # TODO(synk): HF RoBERTa uses exact (erf) GELU; tanh approximation here.
        h1 = jax.nn.gelu(h1)
        h2 = (jnp.dot(h1, w2_ref[l], preferred_element_type=jnp.float32)
              + bf2_ref[l])
        x = layer_norm(h2 + x, g2_ref[l], b2_ref[l])

    # ---- flatten/zero-pad epilogue: one dense hidden-state store + one zero
    # store for the padded tail.  Truncation (SEQ*H > LENGTH) is the x[:rows]
    # path; here SEQ*H < LENGTH so the tail is zero-filled.
    n_rows = min(SEQ, OUT_ROWS)
    out_ref[0, :n_rows, :] = x[:n_rows].astype(out_ref.dtype)
    if n_rows < OUT_ROWS:
        out_ref[0, n_rows:, :] = jnp.zeros((OUT_ROWS - n_rows, HIDDEN),
                                           out_ref.dtype)


def encoder(x_emb, p):
    """Whole RoBERTa encoder (post-embedding) in one pallas_call, grid over batch."""
    L = N_LAYERS

    def full3(shape):
        return pl.BlockSpec(shape, lambda b: (0, 0, 0))

    def full2(shape):
        return pl.BlockSpec(shape, lambda b: (0, 0))

    out3 = pl.pallas_call(
        _encoder_kernel,
        out_shape=jax.ShapeDtypeStruct((BATCH, OUT_ROWS, HIDDEN), jnp.float32),
        grid=(BATCH,),
        in_specs=[
            pl.BlockSpec((1, SEQ, HIDDEN), lambda b: (b, 0, 0)),   # x_emb
            full2((1, HIDDEN)), full2((1, HIDDEN)),                # emb LN g/b
            full3((L, HIDDEN, QKV_W)), full3((L, 1, QKV_W)),       # wqkv, bqkv
            full3((L, N_HEADS * HEAD_PAD, HIDDEN)),                # wo (padded rows)
            full3((L, 1, HIDDEN)),                                 # bo
            full3((L, 1, HIDDEN)), full3((L, 1, HIDDEN)),          # ln1 g/b
            full3((L, HIDDEN, FFN)), full3((L, 1, FFN)),           # w1, b1
            full3((L, FFN, HIDDEN)), full3((L, 1, HIDDEN)),        # w2, b2
            full3((L, 1, HIDDEN)), full3((L, 1, HIDDEN)),          # ln2 g/b
        ],
        out_specs=pl.BlockSpec((1, OUT_ROWS, HIDDEN), lambda b: (b, 0, 0)),
        compiler_params=pltpu.CompilerParams(
            # batch axis is independent -> shard across TCs on v7x
            dimension_semantics=("parallel",),
            # resident footprint (weights + activations, double-buffered) is
            # only a few MB at this toy config; 32 MiB fits every generation.
            vmem_limit_bytes=32 * 1024 * 1024),
    )(x_emb,
      p["emb_ln_g"], p["emb_ln_b"],
      p["wqkv"], p["bqkv"],
      p["wo"], p["bo"],
      p["ln1_g"], p["ln1_b"],
      p["w1"], p["b1"],
      p["w2"], p["b2"],
      p["ln2_g"], p["ln2_b"])
    # Free row-major view: (B, OUT_ROWS, H) -> (B, LENGTH)
    return out3.reshape(BATCH, LENGTH)


# -------------------------- parameter construction -------------------------
def init_params(key):
    std = 0.02
    keys = jax.random.split(key, 9)

    def nrm(k, shape):
        return (std * jax.random.normal(k, shape)).astype(jnp.float32)

    return {
        "word_emb": nrm(keys[0], (VOCAB, HIDDEN)),
        "pos_emb":  nrm(keys[1], (MAX_POS, HIDDEN)),
        "type_emb": nrm(keys[2], (1, HIDDEN)),
        "emb_ln_g": jnp.ones((1, HIDDEN), jnp.float32),
        "emb_ln_b": jnp.zeros((1, HIDDEN), jnp.float32),
        # standard-layout attention weights, stacked per layer
        "wq": nrm(keys[3], (N_LAYERS, HIDDEN, HIDDEN)),
        "wk": nrm(keys[4], (N_LAYERS, HIDDEN, HIDDEN)),
        "wv": nrm(keys[5], (N_LAYERS, HIDDEN, HIDDEN)),
        "bq": jnp.zeros((N_LAYERS, 1, HIDDEN), jnp.float32),
        "bk": jnp.zeros((N_LAYERS, 1, HIDDEN), jnp.float32),
        "bv": jnp.zeros((N_LAYERS, 1, HIDDEN), jnp.float32),
        "wo": nrm(keys[6], (N_LAYERS, HIDDEN, HIDDEN)),
        "bo": jnp.zeros((N_LAYERS, 1, HIDDEN), jnp.float32),
        "ln1_g": jnp.ones((N_LAYERS, 1, HIDDEN), jnp.float32),
        "ln1_b": jnp.zeros((N_LAYERS, 1, HIDDEN), jnp.float32),
        "w1": nrm(keys[7], (N_LAYERS, HIDDEN, FFN)),
        "b1": jnp.zeros((N_LAYERS, 1, FFN), jnp.float32),
        "w2": nrm(keys[8], (N_LAYERS, FFN, HIDDEN)),
        "b2": jnp.zeros((N_LAYERS, 1, HIDDEN), jnp.float32),
        "ln2_g": jnp.ones((N_LAYERS, 1, HIDDEN), jnp.float32),
        "ln2_b": jnp.zeros((N_LAYERS, 1, HIDDEN), jnp.float32),
    }


def pack_params(p):
    """One-time host-side re-layout of attention weights for the kernel:
      * 1/sqrt(head_dim) folded into the Q projection (weights + bias),
      * each head's q/k/v columns padded to a 128-lane-aligned block,
      * W_o rows placed at the matching padded offsets (zero rows elsewhere),
    so in-kernel head slices are vreg-aligned views and the head-output
    projection is a single fused matmul.  Math is unchanged (padding is zero).
    """
    scale = 1.0 / math.sqrt(HEAD_DIM)
    wqkv = jnp.zeros((N_LAYERS, HIDDEN, QKV_W), jnp.float32)
    bqkv = jnp.zeros((N_LAYERS, 1, QKV_W), jnp.float32)
    wo = jnp.zeros((N_LAYERS, N_HEADS * HEAD_PAD, HIDDEN), jnp.float32)
    for h in range(N_HEADS):
        lo, hi = h * HEAD_DIM, (h + 1) * HEAD_DIM
        q0 = h * HEAD_PAD
        k0 = (N_HEADS + h) * HEAD_PAD
        v0 = (2 * N_HEADS + h) * HEAD_PAD
        wqkv = wqkv.at[:, :, q0:q0 + HEAD_DIM].set(p["wq"][:, :, lo:hi] * scale)
        wqkv = wqkv.at[:, :, k0:k0 + HEAD_DIM].set(p["wk"][:, :, lo:hi])
        wqkv = wqkv.at[:, :, v0:v0 + HEAD_DIM].set(p["wv"][:, :, lo:hi])
        bqkv = bqkv.at[:, :, q0:q0 + HEAD_DIM].set(p["bq"][:, :, lo:hi] * scale)
        bqkv = bqkv.at[:, :, k0:k0 + HEAD_DIM].set(p["bk"][:, :, lo:hi])
        bqkv = bqkv.at[:, :, v0:v0 + HEAD_DIM].set(p["bv"][:, :, lo:hi])
        wo = wo.at[:, q0:q0 + HEAD_DIM, :].set(p["wo"][:, lo:hi, :])
    packed = dict(p)
    for k in ("wq", "wk", "wv", "bq", "bk", "bv"):
        del packed[k]
    packed["wqkv"] = wqkv
    packed["bqkv"] = bqkv
    packed["wo"] = wo
    return packed


# ------------------------------ model forward ------------------------------
def roberta_forward(params, token_ids):
    """token_ids: (B, S) int32 -> (B, LENGTH) float32 (flattened, zero-padded)."""
    B, S = token_ids.shape
    # Embedding gathers are XLA glue; everything after runs in one Pallas kernel.
    # RoBERTa offsets positions by padding_idx + 1 = 2.
    positions = jnp.arange(S, dtype=jnp.int32) + 2
    emb = (params["word_emb"][token_ids]
           + params["pos_emb"][positions][None, :, :]
           + params["type_emb"][0][None, None, :])
    # TODO(synk): no attention mask — all SEQ positions are real tokens here.
    return encoder(emb.astype(jnp.float32), params)


# ----------------------------------- main ----------------------------------
if __name__ == "__main__":
    key = jax.random.PRNGKey(0)
    pkey, tkey = jax.random.split(key)
    params = pack_params(init_params(pkey))   # one-time host-side layout transform
    token_ids = jax.random.randint(tkey, (BATCH, SEQ), 0, VOCAB, dtype=jnp.int32)

    out = jax.jit(roberta_forward)(params, token_ids)
    out = jax.block_until_ready(out)
    assert out.shape == (BATCH, LENGTH) and out.dtype == jnp.float32
    print("KERNEL_OK")
</pallas_src>

<mosaic_0001>
module attributes {stable_mosaic.version = 11 : i64} {
  func.func @_encoder_kernel(%arg0: i32, %arg1: memref<1x8x64xf32, #tpu.memory_space<vmem>>, %arg2: memref<1x64xf32, #tpu.memory_space<vmem>>, %arg3: memref<1x64xf32, #tpu.memory_space<vmem>>, %arg4: memref<2x64x1536xf32, #tpu.memory_space<vmem>>, %arg5: memref<2x1x1536xf32, #tpu.memory_space<vmem>>, %arg6: memref<2x512x64xf32, #tpu.memory_space<vmem>>, %arg7: memref<2x1x64xf32, #tpu.memory_space<vmem>>, %arg8: memref<2x1x64xf32, #tpu.memory_space<vmem>>, %arg9: memref<2x1x64xf32, #tpu.memory_space<vmem>>, %arg10: memref<2x64x128xf32, #tpu.memory_space<vmem>>, %arg11: memref<2x1x128xf32, #tpu.memory_space<vmem>>, %arg12: memref<2x128x64xf32, #tpu.memory_space<vmem>>, %arg13: memref<2x1x64xf32, #tpu.memory_space<vmem>>, %arg14: memref<2x1x64xf32, #tpu.memory_space<vmem>>, %arg15: memref<2x1x64xf32, #tpu.memory_space<vmem>>, %arg16: memref<1x16x64xf32, #tpu.memory_space<vmem>>) attributes {dimension_semantics = [#tpu.dimension_semantics<parallel>], iteration_bounds = array<i64: 2>, scalar_prefetch = 0 : i64, scratch_operands = 0 : i64, tpu.core_type = #tpu.core_type<tc>, window_params = [{transform_indices = @transform_0, window_bounds = array<i64: 1, 8, 64>}, {pipeline_mode = #tpu.pipeline_mode<synchronous>, transform_indices = @transform_1, window_bounds = array<i64: 1, 64>}, {pipeline_mode = #tpu.pipeline_mode<synchronous>, transform_indices = @transform_2, window_bounds = array<i64: 1, 64>}, {pipeline_mode = #tpu.pipeline_mode<synchronous>, transform_indices = @transform_3, window_bounds = array<i64: 2, 64, 1536>}, {pipeline_mode = #tpu.pipeline_mode<synchronous>, transform_indices = @transform_4, window_bounds = array<i64: 2, 1, 1536>}, {pipeline_mode = #tpu.pipeline_mode<synchronous>, transform_indices = @transform_5, window_bounds = array<i64: 2, 512, 64>}, {pipeline_mode = #tpu.pipeline_mode<synchronous>, transform_indices = @transform_6, window_bounds = array<i64: 2, 1, 64>}, {pipeline_mode = #tpu.pipeline_mode<synchronous>, transform_indices = @transform_7, window_bounds = array<i64: 2, 1, 64>}, {pipeline_mode = #tpu.pipeline_mode<synchronous>, transform_indices = @transform_8, window_bounds = array<i64: 2, 1, 64>}, {pipeline_mode = #tpu.pipeline_mode<synchronous>, transform_indices = @transform_9, window_bounds = array<i64: 2, 64, 128>}, {pipeline_mode = #tpu.pipeline_mode<synchronous>, transform_indices = @transform_10, window_bounds = array<i64: 2, 1, 128>}, {pipeline_mode = #tpu.pipeline_mode<synchronous>, transform_indices = @transform_11, window_bounds = array<i64: 2, 128, 64>}, {pipeline_mode = #tpu.pipeline_mode<synchronous>, transform_indices = @transform_12, window_bounds = array<i64: 2, 1, 64>}, {pipeline_mode = #tpu.pipeline_mode<synchronous>, transform_indices = @transform_13, window_bounds = array<i64: 2, 1, 64>}, {pipeline_mode = #tpu.pipeline_mode<synchronous>, transform_indices = @transform_14, window_bounds = array<i64: 2, 1, 64>}, {transform_indices = @transform_15, window_bounds = array<i64: 1, 16, 64>}]} {
    %c0 = arith.constant 0 : index
    %c0_0 = arith.constant 0 : index
    %c0_1 = arith.constant 0 : index
    %0 = vector.load %arg1[%c0, %c0_0, %c0_1] : memref<1x8x64xf32, #tpu.memory_space<vmem>>, vector<1x8x64xf32>
    %1 = vector.shape_cast %0 : vector<1x8x64xf32> to vector<8x64xf32>
    %c0_2 = arith.constant 0 : index
    %c0_3 = arith.constant 0 : index
    %2 = vector.load %arg2[%c0_2, %c0_3] : memref<1x64xf32, #tpu.memory_space<vmem>>, vector<1x64xf32>
    %c0_4 = arith.constant 0 : index
    %c0_5 = arith.constant 0 : index
    %3 = vector.load %arg3[%c0_4, %c0_5] : memref<1x64xf32, #tpu.memory_space<vmem>>, vector<1x64xf32>
    %cst = arith.constant dense<0.000000e+00> : vector<8xf32>
    %4 = vector.multi_reduction <add>, %1, %cst [1] : vector<8x64xf32> to vector<8xf32>
    %5 = vector.shape_cast %4 : vector<8xf32> to vector<8x1xf32>
    %cst_6 = arith.constant 6.400000e+01 : f32
    %6 = vector.broadcast %cst_6 : f32 to vector<8x1xf32>
    %7 = arith.divf %5, %6 : vector<8x1xf32>
    %8 = arith.mulf %1, %1 : vector<8x64xf32>
    %cst_7 = arith.constant dense<0.000000e+00> : vector<8xf32>
    %9 = vector.multi_reduction <add>, %8, %cst_7 [1] : vector<8x64xf32> to vector<8xf32>
    %10 = vector.shape_cast %9 : vector<8xf32> to vector<8x1xf32>
    %cst_8 = arith.constant 6.400000e+01 : f32
    %11 = vector.broadcast %cst_8 : f32 to vector<8x1xf32>
    %12 = arith.divf %10, %11 : vector<8x1xf32>
    %13 = arith.mulf %7, %7 : vector<8x1xf32>
    %14 = arith.subf %12, %13 : vector<8x1xf32>
    %15 = vector.broadcast %7 : vector<8x1xf32> to vector<8x64xf32>
    %16 = arith.subf %1, %15 : vector<8x64xf32>
    %cst_9 = arith.constant 9.99999974E-6 : f32
    %17 = vector.broadcast %cst_9 : f32 to vector<8x1xf32>
    %18 = arith.addf %14, %17 : vector<8x1xf32>
    %19 = math.rsqrt %18 : vector<8x1xf32>
    %20 = vector.broadcast %19 : vector<8x1xf32> to vector<8x64xf32>
    %21 = arith.mulf %16, %20 : vector<8x64xf32>
    %22 = vector.broadcast %2 : vector<1x64xf32> to vector<8x64xf32>
    %23 = arith.mulf %21, %22 : vector<8x64xf32>
    %24 = vector.broadcast %3 : vector<1x64xf32> to vector<8x64xf32>
    %25 = arith.addf %23, %24 : vector<8x64xf32>
    %c0_10 = arith.constant 0 : index
    %c0_11 = arith.constant 0 : index
    %c0_12 = arith.constant 0 : index
    %26 = vector.load %arg4[%c0_10, %c0_11, %c0_12] : memref<2x64x1536xf32, #tpu.memory_space<vmem>>, vector<1x64x1536xf32>
    %27 = vector.shape_cast %26 : vector<1x64x1536xf32> to vector<64x1536xf32>
    %cst_13 = arith.constant dense<0.000000e+00> : vector<8x1536xf32>
    %28 = tpu.matmul %25, %27, %cst_13 {dimension_numbers = #tpu.dot_dimension_numbers<[1], [0], [0], [1], [0, 0, 1, 1], [], []>} : vector<8x64xf32>, vector<64x1536xf32>, vector<8x1536xf32> -> vector<8x1536xf32>
    %c0_14 = arith.constant 0 : index
    %c0_15 = arith.constant 0 : index
    %c0_16 = arith.constant 0 : index
    %29 = vector.load %arg5[%c0_14, %c0_15, %c0_16] : memref<2x1x1536xf32, #tpu.memory_space<vmem>>, vector<1x1x1536xf32>
    %30 = vector.shape_cast %29 : vector<1x1x1536xf32> to vector<1x1536xf32>
    %31 = vector.broadcast %30 : vector<1x1536xf32> to vector<8x1536xf32>
    %32 = arith.addf %28, %31 : vector<8x1536xf32>
    %33 = vector.extract_strided_slice %32 {offsets = [0, 0], sizes = [8, 128], strides = [1, 1]} : vector<8x1536xf32> to vector<8x128xf32>
    %34 = vector.extract_strided_slice %32 {offsets = [0, 512], sizes = [8, 128], strides = [1, 1]} : vector<8x1536xf32> to vector<8x128xf32>
    %35 = vector.extract_strided_slice %32 {offsets = [0, 1024], sizes = [8, 128], strides = [1, 1]} : vector<8x1536xf32> to vector<8x128xf32>
    %cst_17 = arith.constant dense<0.000000e+00> : vector<8x8xf32>
    %36 = tpu.matmul %33, %34, %cst_17 {dimension_numbers = #tpu.dot_dimension_numbers<[1], [1], [0], [0], [0, 0, 1, 0], [], []>} : vector<8x128xf32>, vector<8x128xf32>, vector<8x8xf32> -> vector<8x8xf32>
    %cst_18 = arith.constant dense<0xFF800000> : vector<8xf32>
    %37 = vector.multi_reduction <maximumf>, %36, %cst_18 [1] : vector<8x8xf32> to vector<8xf32>
    %38 = vector.shape_cast %37 : vector<8xf32> to vector<8x1xf32>
    %39 = vector.broadcast %38 : vector<8x1xf32> to vector<8x8xf32>
    %40 = arith.subf %36, %39 : vector<8x8xf32>
    %41 = math.exp %40 : vector<8x8xf32>
    %cst_19 = arith.constant dense<0.000000e+00> : vector<8xf32>
    %42 = vector.multi_reduction <add>, %41, %cst_19 [1] : vector<8x8xf32> to vector<8xf32>
    %43 = vector.shape_cast %42 : vector<8xf32> to vector<8x1xf32>
    %44 = vector.broadcast %43 : vector<8x1xf32> to vector<8x8xf32>
    %45 = arith.divf %41, %44 : vector<8x8xf32>
    %cst_20 = arith.constant dense<0.000000e+00> : vector<8x128xf32>
    %46 = tpu.matmul %45, %35, %cst_20 {dimension_numbers = #tpu.dot_dimension_numbers<[1], [0], [0], [1], [0, 0, 1, 1], [], []>} : vector<8x8xf32>, vector<8x128xf32>, vector<8x128xf32> -> vector<8x128xf32>
    %47 = vector.extract_strided_slice %32 {offsets = [0, 128], sizes = [8, 128], strides = [1, 1]} : vector<8x1536xf32> to vector<8x128xf32>
    %48 = vector.extract_strided_slice %32 {offsets = [0, 640], sizes = [8, 128], strides = [1, 1]} : vector<8x1536xf32> to vector<8x128xf32>
    %49 = vector.extract_strided_slice %32 {offsets = [0, 1152], sizes = [8, 128], strides = [1, 1]} : vector<8x1536xf32> to vector<8x128xf32>
    %cst_21 = arith.constant dense<0.000000e+00> : vector<8x8xf32>
    %50 = tpu.matmul %47, %48, %cst_21 {dimension_numbers = #tpu.dot_dimension_numbers<[1], [1], [0], [0], [0, 0, 1, 0], [], []>} : vector<8x128xf32>, vector<8x128xf32>, vector<8x8xf32> -> vector<8x8xf32>
    %cst_22 = arith.constant dense<0xFF800000> : vector<8xf32>
    %51 = vector.multi_reduction <maximumf>, %50, %cst_22 [1] : vector<8x8xf32> to vector<8xf32>
    %52 = vector.shape_cast %51 : vector<8xf32> to vector<8x1xf32>
    %53 = vector.broadcast %52 : vector<8x1xf32> to vector<8x8xf32>
    %54 = arith.subf %50, %53 : vector<8x8xf32>
    %55 = math.exp %54 : vector<8x8xf32>
    %cst_23 = arith.constant dense<0.000000e+00> : vector<8xf32>
    %56 = vector.multi_reduction <add>, %55, %cst_23 [1] : vector<8x8xf32> to vector<8xf32>
    %57 = vector.shape_cast %56 : vector<8xf32> to vector<8x1xf32>
    %58 = vector.broadcast %57 : vector<8x1xf32> to vector<8x8xf32>
    %59 = arith.divf %55, %58 : vector<8x8xf32>
    %cst_24 = arith.constant dense<0.000000e+00> : vector<8x128xf32>
    %60 = tpu.matmul %59, %49, %cst_24 {dimension_numbers = #tpu.dot_dimension_numbers<[1], [0], [0], [1], [0, 0, 1, 1], [], []>} : vector<8x8xf32>, vector<8x128xf32>, vector<8x128xf32> -> vector<8x128xf32>
    %61 = vector.extract_strided_slice %32 {offsets = [0, 256], sizes = [8, 128], strides = [1, 1]} : vector<8x1536xf32> to vector<8x128xf32>
    %62 = vector.extract_strided_slice %32 {offsets = [0, 768], sizes = [8, 128], strides = [1, 1]} : vector<8x1536xf32> to vector<8x128xf32>
    %63 = vector.extract_strided_slice %32 {offsets = [0, 1280], sizes = [8, 128], strides = [1, 1]} : vector<8x1536xf32> to vector<8x128xf32>
    %cst_25 = arith.constant dense<0.000000e+00> : vector<8x8xf32>
    %64 = tpu.matmul %61, %62, %cst_25 {dimension_numbers = #tpu.dot_dimension_numbers<[1], [1], [0], [0], [0, 0, 1, 0], [], []>} : vector<8x128xf32>, vector<8x128xf32>, vector<8x8xf32> -> vector<8x8xf32>
    %cst_26 = arith.constant dense<0xFF800000> : vector<8xf32>
    %65 = vector.multi_reduction <maximumf>, %64, %cst_26 [1] : vector<8x8xf32> to vector<8xf32>
    %66 = vector.shape_cast %65 : vector<8xf32> to vector<8x1xf32>
    %67 = vector.broadcast %66 : vector<8x1xf32> to vector<8x8xf32>
    %68 = arith.subf %64, %67 : vector<8x8xf32>
    %69 = math.exp %68 : vector<8x8xf32>
    %cst_27 = arith.constant dense<0.000000e+00> : vector<8xf32>
    %70 = vector.multi_reduction <add>, %69, %cst_27 [1] : vector<8x8xf32> to vector<8xf32>
    %71 = vector.shape_cast %70 : vector<8xf32> to vector<8x1xf32>
    %72 = vector.broadcast %71 : vector<8x1xf32> to vector<8x8xf32>
    %73 = arith.divf %69, %72 : vector<8x8xf32>
    %cst_28 = arith.constant dense<0.000000e+00> : vector<8x128xf32>
    %74 = tpu.matmul %73, %63, %cst_28 {dimension_numbers = #tpu.dot_dimension_numbers<[1], [0], [0], [1], [0, 0, 1, 1], [], []>} : vector<8x8xf32>, vector<8x128xf32>, vector<8x128xf32> -> vector<8x128xf32>
    %75 = vector.extract_strided_slice %32 {offsets = [0, 384], sizes = [8, 128], strides = [1, 1]} : vector<8x1536xf32> to vector<8x128xf32>
    %76 = vector.extract_strided_slice %32 {offsets = [0, 896], sizes = [8, 128], strides = [1, 1]} : vector<8x1536xf32> to vector<8x128xf32>
    %77 = vector.extract_strided_slice %32 {offsets = [0, 1408], sizes = [8, 128], strides = [1, 1]} : vector<8x1536xf32> to vector<8x128xf32>
    %cst_29 = arith.constant dense<0.000000e+00> : vector<8x8xf32>
    %78 = tpu.matmul %75, %76, %cst_29 {dimension_numbers = #tpu.dot_dimension_numbers<[1], [1], [0], [0], [0, 0, 1, 0], [], []>} : vector<8x128xf32>, vector<8x128xf32>, vector<8x8xf32> -> vector<8x8xf32>
    %cst_30 = arith.constant dense<0xFF800000> : vector<8xf32>
    %79 = vector.multi_reduction <maximumf>, %78, %cst_30 [1] : vector<8x8xf32> to vector<8xf32>
    %80 = vector.shape_cast %79 : vector<8xf32> to vector<8x1xf32>
    %81 = vector.broadcast %80 : vector<8x1xf32> to vector<8x8xf32>
    %82 = arith.subf %78, %81 : vector<8x8xf32>
    %83 = math.exp %82 : vector<8x8xf32>
    %cst_31 = arith.constant dense<0.000000e+00> : vector<8xf32>
    %84 = vector.multi_reduction <add>, %83, %cst_31 [1] : vector<8x8xf32> to vector<8xf32>
    %85 = vector.shape_cast %84 : vector<8xf32> to vector<8x1xf32>
    %86 = vector.broadcast %85 : vector<8x1xf32> to vector<8x8xf32>
    %87 = arith.divf %83, %86 : vector<8x8xf32>
    %cst_32 = arith.constant dense<0.000000e+00> : vector<8x128xf32>
    %88 = tpu.matmul %87, %77, %cst_32 {dimension_numbers = #tpu.dot_dimension_numbers<[1], [0], [0], [1], [0, 0, 1, 1], [], []>} : vector<8x8xf32>, vector<8x128xf32>, vector<8x128xf32> -> vector<8x128xf32>
    %89 = tpu.concatenate %46, %60, %74, %88 in 1 : vector<8x128xf32>, vector<8x128xf32>, vector<8x128xf32>, vector<8x128xf32> -> vector<8x512xf32>
    %c0_33 = arith.constant 0 : index
    %c0_34 = arith.constant 0 : index
    %c0_35 = arith.constant 0 : index
    %90 = vector.load %arg6[%c0_33, %c0_34, %c0_35] : memref<2x512x64xf32, #tpu.memory_space<vmem>>, vector<1x512x64xf32>
    %91 = vector.shape_cast %90 : vector<1x512x64xf32> to vector<512x64xf32>
    %cst_36 = arith.constant dense<0.000000e+00> : vector<8x64xf32>
    %92 = tpu.matmul %89, %91, %cst_36 {dimension_numbers = #tpu.dot_dimension_numbers<[1], [0], [0], [1], [0, 0, 1, 1], [], []>} : vector<8x512xf32>, vector<512x64xf32>, vector<8x64xf32> -> vector<8x64xf32>
    %c0_37 = arith.constant 0 : index
    %c0_38 = arith.constant 0 : index
    %c0_39 = arith.constant 0 : index
    %93 = vector.load %arg7[%c0_37, %c0_38, %c0_39] : memref<2x1x64xf32, #tpu.memory_space<vmem>>, vector<1x1x64xf32>
    %94 = vector.shape_cast %93 : vector<1x1x64xf32> to vector<1x64xf32>
    %95 = vector.broadcast %94 : vector<1x64xf32> to vector<8x64xf32>
    %96 = arith.addf %92, %95 : vector<8x64xf32>
    %97 = arith.addf %96, %25 : vector<8x64xf32>
    %c0_40 = arith.constant 0 : index
    %c0_41 = arith.constant 0 : index
    %c0_42 = arith.constant 0 : index
    %98 = vector.load %arg8[%c0_40, %c0_41, %c0_42] : memref<2x1x64xf32, #tpu.memory_space<vmem>>, vector<1x1x64xf32>
    %99 = vector.shape_cast %98 : vector<1x1x64xf32> to vector<1x64xf32>
    %c0_43 = arith.constant 0 : index
    %c0_44 = arith.constant 0 : index
    %c0_45 = arith.constant 0 : index
    %100 = vector.load %arg9[%c0_43, %c0_44, %c0_45] : memref<2x1x64xf32, #tpu.memory_space<vmem>>, vector<1x1x64xf32>
    %101 = vector.shape_cast %100 : vector<1x1x64xf32> to vector<1x64xf32>
    %cst_46 = arith.constant dense<0.000000e+00> : vector<8xf32>
    %102 = vector.multi_reduction <add>, %97, %cst_46 [1] : vector<8x64xf32> to vector<8xf32>
    %103 = vector.shape_cast %102 : vector<8xf32> to vector<8x1xf32>
    %cst_47 = arith.constant 6.400000e+01 : f32
    %104 = vector.broadcast %cst_47 : f32 to vector<8x1xf32>
    %105 = arith.divf %103, %104 : vector<8x1xf32>
    %106 = arith.mulf %97, %97 : vector<8x64xf32>
    %cst_48 = arith.constant dense<0.000000e+00> : vector<8xf32>
    %107 = vector.multi_reduction <add>, %106, %cst_48 [1] : vector<8x64xf32> to vector<8xf32>
    %108 = vector.shape_cast %107 : vector<8xf32> to vector<8x1xf32>
    %cst_49 = arith.constant 6.400000e+01 : f32
    %109 = vector.broadcast %cst_49 : f32 to vector<8x1xf32>
    %110 = arith.divf %108, %109 : vector<8x1xf32>
    %111 = arith.mulf %105, %105 : vector<8x1xf32>
    %112 = arith.subf %110, %111 : vector<8x1xf32>
    %113 = vector.broadcast %105 : vector<8x1xf32> to vector<8x64xf32>
    %114 = arith.subf %97, %113 : vector<8x64xf32>
    %cst_50 = arith.constant 9.99999974E-6 : f32
    %115 = vector.broadcast %cst_50 : f32 to vector<8x1xf32>
    %116 = arith.addf %112, %115 : vector<8x1xf32>
    %117 = math.rsqrt %116 : vector<8x1xf32>
    %118 = vector.broadcast %117 : vector<8x1xf32> to vector<8x64xf32>
    %119 = arith.mulf %114, %118 : vector<8x64xf32>
    %120 = vector.broadcast %99 : vector<1x64xf32> to vector<8x64xf32>
    %121 = arith.mulf %119, %120 : vector<8x64xf32>
    %122 = vector.broadcast %101 : vector<1x64xf32> to vector<8x64xf32>
    %123 = arith.addf %121, %122 : vector<8x64xf32>
    %c0_51 = arith.constant 0 : index
    %c0_52 = arith.constant 0 : index
    %c0_53 = arith.constant 0 : index
    %124 = vector.load %arg10[%c0_51, %c0_52, %c0_53] : memref<2x64x128xf32, #tpu.memory_space<vmem>>, vector<1x64x128xf32>
    %125 = vector.shape_cast %124 : vector<1x64x128xf32> to vector<64x128xf32>
    %cst_54 = arith.constant dense<0.000000e+00> : vector<8x128xf32>
    %126 = tpu.matmul %123, %125, %cst_54 {dimension_numbers = #tpu.dot_dimension_numbers<[1], [0], [0], [1], [0, 0, 1, 1], [], []>} : vector<8x64xf32>, vector<64x128xf32>, vector<8x128xf32> -> vector<8x128xf32>
    %c0_55 = arith.constant 0 : index
    %c0_56 = arith.constant 0 : index
    %c0_57 = arith.constant 0 : index
    %127 = vector.load %arg11[%c0_55, %c0_56, %c0_57] : memref<2x1x128xf32, #tpu.memory_space<vmem>>, vector<1x1x128xf32>
    %128 = vector.shape_cast %127 : vector<1x1x128xf32> to vector<1x128xf32>
    %129 = vector.broadcast %128 : vector<1x128xf32> to vector<8x128xf32>
    %130 = arith.addf %126, %129 : vector<8x128xf32>
    %131 = arith.mulf %130, %130 : vector<8x128xf32>
    %132 = arith.mulf %130, %131 : vector<8x128xf32>
    %cst_58 = arith.constant 4.471500e-02 : f32
    %133 = vector.broadcast %cst_58 : f32 to vector<8x128xf32>
    %134 = arith.mulf %133, %132 : vector<8x128xf32>
    %135 = arith.addf %130, %134 : vector<8x128xf32>
    %cst_59 = arith.constant 0.797884583 : f32
    %136 = vector.broadcast %cst_59 : f32 to vector<8x128xf32>
    %137 = arith.mulf %136, %135 : vector<8x128xf32>
    %138 = math.tanh %137 : vector<8x128xf32>
    %cst_60 = arith.constant 1.000000e+00 : f32
    %139 = vector.broadcast %cst_60 : f32 to vector<8x128xf32>
    %140 = arith.addf %139, %138 : vector<8x128xf32>
    %cst_61 = arith.constant 5.000000e-01 : f32
    %141 = vector.broadcast %cst_61 : f32 to vector<8x128xf32>
    %142 = arith.mulf %141, %140 : vector<8x128xf32>
    %143 = arith.mulf %130, %142 : vector<8x128xf32>
    %c0_62 = arith.constant 0 : index
    %c0_63 = arith.constant 0 : index
    %c0_64 = arith.constant 0 : index
    %144 = vector.load %arg12[%c0_62, %c0_63, %c0_64] : memref<2x128x64xf32, #tpu.memory_space<vmem>>, vector<1x128x64xf32>
    %145 = vector.shape_cast %144 : vector<1x128x64xf32> to vector<128x64xf32>
    %cst_65 = arith.constant dense<0.000000e+00> : vector<8x64xf32>
    %146 = tpu.matmul %143, %145, %cst_65 {dimension_numbers = #tpu.dot_dimension_numbers<[1], [0], [0], [1], [0, 0, 1, 1], [], []>} : vector<8x128xf32>, vector<128x64xf32>, vector<8x64xf32> -> vector<8x64xf32>
    %c0_66 = arith.constant 0 : index
    %c0_67 = arith.constant 0 : index
    %c0_68 = arith.constant 0 : index
    %147 = vector.load %arg13[%c0_66, %c0_67, %c0_68] : memref<2x1x64xf32, #tpu.memory_space<vmem>>, vector<1x1x64xf32>
    %148 = vector.shape_cast %147 : vector<1x1x64xf32> to vector<1x64xf32>
    %149 = vector.broadcast %148 : vector<1x64xf32> to vector<8x64xf32>
    %150 = arith.addf %146, %149 : vector<8x64xf32>
    %151 = arith.addf %150, %123 : vector<8x64xf32>
    %c0_69 = arith.constant 0 : index
    %c0_70 = arith.constant 0 : index
    %c0_71 = arith.constant 0 : index
    %152 = vector.load %arg14[%c0_69, %c0_70, %c0_71] : memref<2x1x64xf32, #tpu.memory_space<vmem>>, vector<1x1x64xf32>
    %153 = vector.shape_cast %152 : vector<1x1x64xf32> to vector<1x64xf32>
    %c0_72 = arith.constant 0 : index
    %c0_73 = arith.constant 0 : index
    %c0_74 = arith.constant 0 : index
    %154 = vector.load %arg15[%c0_72, %c0_73, %c0_74] : memref<2x1x64xf32, #tpu.memory_space<vmem>>, vector<1x1x64xf32>
    %155 = vector.shape_cast %154 : vector<1x1x64xf32> to vector<1x64xf32>
    %cst_75 = arith.constant dense<0.000000e+00> : vector<8xf32>
    %156 = vector.multi_reduction <add>, %151, %cst_75 [1] : vector<8x64xf32> to vector<8xf32>
    %157 = vector.shape_cast %156 : vector<8xf32> to vector<8x1xf32>
    %cst_76 = arith.constant 6.400000e+01 : f32
    %158 = vector.broadcast %cst_76 : f32 to vector<8x1xf32>
    %159 = arith.divf %157, %158 : vector<8x1xf32>
    %160 = arith.mulf %151, %151 : vector<8x64xf32>
    %cst_77 = arith.constant dense<0.000000e+00> : vector<8xf32>
    %161 = vector.multi_reduction <add>, %160, %cst_77 [1] : vector<8x64xf32> to vector<8xf32>
    %162 = vector.shape_cast %161 : vector<8xf32> to vector<8x1xf32>
    %cst_78 = arith.constant 6.400000e+01 : f32
    %163 = vector.broadcast %cst_78 : f32 to vector<8x1xf32>
    %164 = arith.divf %162, %163 : vector<8x1xf32>
    %165 = arith.mulf %159, %159 : vector<8x1xf32>
    %166 = arith.subf %164, %165 : vector<8x1xf32>
    %167 = vector.broadcast %159 : vector<8x1xf32> to vector<8x64xf32>
    %168 = arith.subf %151, %167 : vector<8x64xf32>
    %cst_79 = arith.constant 9.99999974E-6 : f32
    %169 = vector.broadcast %cst_79 : f32 to vector<8x1xf32>
    %170 = arith.addf %166, %169 : vector<8x1xf32>
    %171 = math.rsqrt %170 : vector<8x1xf32>
    %172 = vector.broadcast %171 : vector<8x1xf32> to vector<8x64xf32>
    %173 = arith.mulf %168, %172 : vector<8x64xf32>
    %174 = vector.broadcast %153 : vector<1x64xf32> to vector<8x64xf32>
    %175 = arith.mulf %173, %174 : vector<8x64xf32>
    %176 = vector.broadcast %155 : vector<1x64xf32> to vector<8x64xf32>
    %177 = arith.addf %175, %176 : vector<8x64xf32>
    %c1 = arith.constant 1 : index
    %c0_80 = arith.constant 0 : index
    %c0_81 = arith.constant 0 : index
    %178 = vector.load %arg4[%c1, %c0_80, %c0_81] : memref<2x64x1536xf32, #tpu.memory_space<vmem>>, vector<1x64x1536xf32>
    %179 = vector.shape_cast %178 : vector<1x64x1536xf32> to vector<64x1536xf32>
    %cst_82 = arith.constant dense<0.000000e+00> : vector<8x1536xf32>
    %180 = tpu.matmul %177, %179, %cst_82 {dimension_numbers = #tpu.dot_dimension_numbers<[1], [0], [0], [1], [0, 0, 1, 1], [], []>} : vector<8x64xf32>, vector<64x1536xf32>, vector<8x1536xf32> -> vector<8x1536xf32>
    %c1_83 = arith.constant 1 : index
    %c0_84 = arith.constant 0 : index
    %c0_85 = arith.constant 0 : index
    %181 = vector.load %arg5[%c1_83, %c0_84, %c0_85] : memref<2x1x1536xf32, #tpu.memory_space<vmem>>, vector<1x1x1536xf32>
    %182 = vector.shape_cast %181 : vector<1x1x1536xf32> to vector<1x1536xf32>
    %183 = vector.broadcast %182 : vector<1x1536xf32> to vector<8x1536xf32>
    %184 = arith.addf %180, %183 : vector<8x1536xf32>
    %185 = vector.extract_strided_slice %184 {offsets = [0, 0], sizes = [8, 128], strides = [1, 1]} : vector<8x1536xf32> to vector<8x128xf32>
    %186 = vector.extract_strided_slice %184 {offsets = [0, 512], sizes = [8, 128], strides = [1, 1]} : vector<8x1536xf32> to vector<8x128xf32>
    %187 = vector.extract_strided_slice %184 {offsets = [0, 1024], sizes = [8, 128], strides = [1, 1]} : vector<8x1536xf32> to vector<8x128xf32>
    %cst_86 = arith.constant dense<0.000000e+00> : vector<8x8xf32>
    %188 = tpu.matmul %185, %186, %cst_86 {dimension_numbers = #tpu.dot_dimension_numbers<[1], [1], [0], [0], [0, 0, 1, 0], [], []>} : vector<8x128xf32>, vector<8x128xf32>, vector<8x8xf32> -> vector<8x8xf32>
    %cst_87 = arith.constant dense<0xFF800000> : vector<8xf32>
    %189 = vector.multi_reduction <maximumf>, %188, %cst_87 [1] : vector<8x8xf32> to vector<8xf32>
    %190 = vector.shape_cast %189 : vector<8xf32> to vector<8x1xf32>
    %191 = vector.broadcast %190 : vector<8x1xf32> to vector<8x8xf32>
    %192 = arith.subf %188, %191 : vector<8x8xf32>
    %193 = math.exp %192 : vector<8x8xf32>
    %cst_88 = arith.constant dense<0.000000e+00> : vector<8xf32>
    %194 = vector.multi_reduction <add>, %193, %cst_88 [1] : vector<8x8xf32> to vector<8xf32>
    %195 = vector.shape_cast %194 : vector<8xf32> to vector<8x1xf32>
    %196 = vector.broadcast %195 : vector<8x1xf32> to vector<8x8xf32>
    %197 = arith.divf %193, %196 : vector<8x8xf32>
    %cst_89 = arith.constant dense<0.000000e+00> : vector<8x128xf32>
    %198 = tpu.matmul %197, %187, %cst_89 {dimension_numbers = #tpu.dot_dimension_numbers<[1], [0], [0], [1], [0, 0, 1, 1], [], []>} : vector<8x8xf32>, vector<8x128xf32>, vector<8x128xf32> -> vector<8x128xf32>
    %199 = vector.extract_strided_slice %184 {offsets = [0, 128], sizes = [8, 128], strides = [1, 1]} : vector<8x1536xf32> to vector<8x128xf32>
    %200 = vector.extract_strided_slice %184 {offsets = [0, 640], sizes = [8, 128], strides = [1, 1]} : vector<8x1536xf32> to vector<8x128xf32>
    %201 = vector.extract_strided_slice %184 {offsets = [0, 1152], sizes = [8, 128], strides = [1, 1]} : vector<8x1536xf32> to vector<8x128xf32>
    %cst_90 = arith.constant dense<0.000000e+00> : vector<8x8xf32>
    %202 = tpu.matmul %199, %200, %cst_90 {dimension_numbers = #tpu.dot_dimension_numbers<[1], [1], [0], [0], [0, 0, 1, 0], [], []>} : vector<8x128xf32>, vector<8x128xf32>, vector<8x8xf32> -> vector<8x8xf32>
    %cst_91 = arith.constant dense<0xFF800000> : vector<8xf32>
    %203 = vector.multi_reduction <maximumf>, %202, %cst_91 [1] : vector<8x8xf32> to vector<8xf32>
    %204 = vector.shape_cast %203 : vector<8xf32> to vector<8x1xf32>
    %205 = vector.broadcast %204 : vector<8x1xf32> to vector<8x8xf32>
    %206 = arith.subf %202, %205 : vector<8x8xf32>
    %207 = math.exp %206 : vector<8x8xf32>
    %cst_92 = arith.constant dense<0.000000e+00> : vector<8xf32>
    %208 = vector.multi_reduction <add>, %207, %cst_92 [1] : vector<8x8xf32> to vector<8xf32>
    %209 = vector.shape_cast %208 : vector<8xf32> to vector<8x1xf32>
    %210 = vector.broadcast %209 : vector<8x1xf32> to vector<8x8xf32>
    %211 = arith.divf %207, %210 : vector<8x8xf32>
    %cst_93 = arith.constant dense<0.000000e+00> : vector<8x128xf32>
    %212 = tpu.matmul %211, %201, %cst_93 {dimension_numbers = #tpu.dot_dimension_numbers<[1], [0], [0], [1], [0, 0, 1, 1], [], []>} : vector<8x8xf32>, vector<8x128xf32>, vector<8x128xf32> -> vector<8x128xf32>
    %213 = vector.extract_strided_slice %184 {offsets = [0, 256], sizes = [8, 128], strides = [1, 1]} : vector<8x1536xf32> to vector<8x128xf32>
    %214 = vector.extract_strided_slice %184 {offsets = [0, 768], sizes = [8, 128], strides = [1, 1]} : vector<8x1536xf32> to vector<8x128xf32>
    %215 = vector.extract_strided_slice %184 {offsets = [0, 1280], sizes = [8, 128], strides = [1, 1]} : vector<8x1536xf32> to vector<8x128xf32>
    %cst_94 = arith.constant dense<0.000000e+00> : vector<8x8xf32>
    %216 = tpu.matmul %213, %214, %cst_94 {dimension_numbers = #tpu.dot_dimension_numbers<[1], [1], [0], [0], [0, 0, 1, 0], [], []>} : vector<8x128xf32>, vector<8x128xf32>, vector<8x8xf32> -> vector<8x8xf32>
    %cst_95 = arith.constant dense<0xFF800000> : vector<8xf32>
    %217 = vector.multi_reduction <maximumf>, %216, %cst_95 [1] : vector<8x8xf32> to vector<8xf32>
    %218 = vector.shape_cast %217 : vector<8xf32> to vector<8x1xf32>
    %219 = vector.broadcast %218 : vector<8x1xf32> to vector<8x8xf32>
    %220 = arith.subf %216, %219 : vector<8x8xf32>
    %221 = math.exp %220 : vector<8x8xf32>
    %cst_96 = arith.constant dense<0.000000e+00> : vector<8xf32>
    %222 = vector.multi_reduction <add>, %221, %cst_96 [1] : vector<8x8xf32> to vector<8xf32>
    %223 = vector.shape_cast %222 : vector<8xf32> to vector<8x1xf32>
    %224 = vector.broadcast %223 : vector<8x1xf32> to vector<8x8xf32>
    %225 = arith.divf %221, %224 : vector<8x8xf32>
    %cst_97 = arith.constant dense<0.000000e+00> : vector<8x128xf32>
    %226 = tpu.matmul %225, %215, %cst_97 {dimension_numbers = #tpu.dot_dimension_numbers<[1], [0], [0], [1], [0, 0, 1, 1], [], []>} : vector<8x8xf32>, vector<8x128xf32>, vector<8x128xf32> -> vector<8x128xf32>
    %227 = vector.extract_strided_slice %184 {offsets = [0, 384], sizes = [8, 128], strides = [1, 1]} : vector<8x1536xf32> to vector<8x128xf32>
    %228 = vector.extract_strided_slice %184 {offsets = [0, 896], sizes = [8, 128], strides = [1, 1]} : vector<8x1536xf32> to vector<8x128xf32>
    %229 = vector.extract_strided_slice %184 {offsets = [0, 1408], sizes = [8, 128], strides = [1, 1]} : vector<8x1536xf32> to vector<8x128xf32>
    %cst_98 = arith.constant dense<0.000000e+00> : vector<8x8xf32>
    %230 = tpu.matmul %227, %228, %cst_98 {dimension_numbers = #tpu.dot_dimension_numbers<[1], [1], [0], [0], [0, 0, 1, 0], [], []>} : vector<8x128xf32>, vector<8x128xf32>, vector<8x8xf32> -> vector<8x8xf32>
    %cst_99 = arith.constant dense<0xFF800000> : vector<8xf32>
    %231 = vector.multi_reduction <maximumf>, %230, %cst_99 [1] : vector<8x8xf32> to vector<8xf32>
    %232 = vector.shape_cast %231 : vector<8xf32> to vector<8x1xf32>
    %233 = vector.broadcast %232 : vector<8x1xf32> to vector<8x8xf32>
    %234 = arith.subf %230, %233 : vector<8x8xf32>
    %235 = math.exp %234 : vector<8x8xf32>
    %cst_100 = arith.constant dense<0.000000e+00> : vector<8xf32>
    %236 = vector.multi_reduction <add>, %235, %cst_100 [1] : vector<8x8xf32> to vector<8xf32>
    %237 = vector.shape_cast %236 : vector<8xf32> to vector<8x1xf32>
    %238 = vector.broadcast %237 : vector<8x1xf32> to vector<8x8xf32>
    %239 = arith.divf %235, %238 : vector<8x8xf32>
    %cst_101 = arith.constant dense<0.000000e+00> : vector<8x128xf32>
    %240 = tpu.matmul %239, %229, %cst_101 {dimension_numbers = #tpu.dot_dimension_numbers<[1], [0], [0], [1], [0, 0, 1, 1], [], []>} : vector<8x8xf32>, vector<8x128xf32>, vector<8x128xf32> -> vector<8x128xf32>
    %241 = tpu.concatenate %198, %212, %226, %240 in 1 : vector<8x128xf32>, vector<8x128xf32>, vector<8x128xf32>, vector<8x128xf32> -> vector<8x512xf32>
    %c1_102 = arith.constant 1 : index
    %c0_103 = arith.constant 0 : index
    %c0_104 = arith.constant 0 : index
    %242 = vector.load %arg6[%c1_102, %c0_103, %c0_104] : memref<2x512x64xf32, #tpu.memory_space<vmem>>, vector<1x512x64xf32>
    %243 = vector.shape_cast %242 : vector<1x512x64xf32> to vector<512x64xf32>
    %cst_105 = arith.constant dense<0.000000e+00> : vector<8x64xf32>
    %244 = tpu.matmul %241, %243, %cst_105 {dimension_numbers = #tpu.dot_dimension_numbers<[1], [0], [0], [1], [0, 0, 1, 1], [], []>} : vector<8x512xf32>, vector<512x64xf32>, vector<8x64xf32> -> vector<8x64xf32>
    %c1_106 = arith.constant 1 : index
    %c0_107 = arith.constant 0 : index
    %c0_108 = arith.constant 0 : index
    %245 = vector.load %arg7[%c1_106, %c0_107, %c0_108] : memref<2x1x64xf32, #tpu.memory_space<vmem>>, vector<1x1x64xf32>
    %246 = vector.shape_cast %245 : vector<1x1x64xf32> to vector<1x64xf32>
    %247 = vector.broadcast %246 : vector<1x64xf32> to vector<8x64xf32>
    %248 = arith.addf %244, %247 : vector<8x64xf32>
    %249 = arith.addf %248, %177 : vector<8x64xf32>
    %c1_109 = arith.constant 1 : index
    %c0_110 = arith.constant 0 : index
    %c0_111 = arith.constant 0 : index
    %250 = vector.load %arg8[%c1_109, %c0_110, %c0_111] : memref<2x1x64xf32, #tpu.memory_space<vmem>>, vector<1x1x64xf32>
    %251 = vector.shape_cast %250 : vector<1x1x64xf32> to vector<1x64xf32>
    %c1_112 = arith.constant 1 : index
    %c0_113 = arith.constant 0 : index
    %c0_114 = arith.constant 0 : index
    %252 = vector.load %arg9[%c1_112, %c0_113, %c0_114] : memref<2x1x64xf32, #tpu.memory_space<vmem>>, vector<1x1x64xf32>
    %253 = vector.shape_cast %252 : vector<1x1x64xf32> to vector<1x64xf32>
    %cst_115 = arith.constant dense<0.000000e+00> : vector<8xf32>
    %254 = vector.multi_reduction <add>, %249, %cst_115 [1] : vector<8x64xf32> to vector<8xf32>
    %255 = vector.shape_cast %254 : vector<8xf32> to vector<8x1xf32>
    %cst_116 = arith.constant 6.400000e+01 : f32
    %256 = vector.broadcast %cst_116 : f32 to vector<8x1xf32>
    %257 = arith.divf %255, %256 : vector<8x1xf32>
    %258 = arith.mulf %249, %249 : vector<8x64xf32>
    %cst_117 = arith.constant dense<0.000000e+00> : vector<8xf32>
    %259 = vector.multi_reduction <add>, %258, %cst_117 [1] : vector<8x64xf32> to vector<8xf32>
    %260 = vector.shape_cast %259 : vector<8xf32> to vector<8x1xf32>
    %cst_118 = arith.constant 6.400000e+01 : f32
    %261 = vector.broadcast %cst_118 : f32 to vector<8x1xf32>
    %262 = arith.divf %260, %261 : vector<8x1xf32>
    %263 = arith.mulf %257, %257 : vector<8x1xf32>
    %264 = arith.subf %262, %263 : vector<8x1xf32>
    %265 = vector.broadcast %257 : vector<8x1xf32> to vector<8x64xf32>
    %266 = arith.subf %249, %265 : vector<8x64xf32>
    %cst_119 = arith.constant 9.99999974E-6 : f32
    %267 = vector.broadcast %cst_119 : f32 to vector<8x1xf32>
    %268 = arith.addf %264, %267 : vector<8x1xf32>
    %269 = math.rsqrt %268 : vector<8x1xf32>
    %270 = vector.broadcast %269 : vector<8x1xf32> to vector<8x64xf32>
    %271 = arith.mulf %266, %270 : vector<8x64xf32>
    %272 = vector.broadcast %251 : vector<1x64xf32> to vector<8x64xf32>
    %273 = arith.mulf %271, %272 : vector<8x64xf32>
    %274 = vector.broadcast %253 : vector<1x64xf32> to vector<8x64xf32>
    %275 = arith.addf %273, %274 : vector<8x64xf32>
    %c1_120 = arith.constant 1 : index
    %c0_121 = arith.constant 0 : index
    %c0_122 = arith.constant 0 : index
    %276 = vector.load %arg10[%c1_120, %c0_121, %c0_122] : memref<2x64x128xf32, #tpu.memory_space<vmem>>, vector<1x64x128xf32>
    %277 = vector.shape_cast %276 : vector<1x64x128xf32> to vector<64x128xf32>
    %cst_123 = arith.constant dense<0.000000e+00> : vector<8x128xf32>
    %278 = tpu.matmul %275, %277, %cst_123 {dimension_numbers = #tpu.dot_dimension_numbers<[1], [0], [0], [1], [0, 0, 1, 1], [], []>} : vector<8x64xf32>, vector<64x128xf32>, vector<8x128xf32> -> vector<8x128xf32>
    %c1_124 = arith.constant 1 : index
    %c0_125 = arith.constant 0 : index
    %c0_126 = arith.constant 0 : index
    %279 = vector.load %arg11[%c1_124, %c0_125, %c0_126] : memref<2x1x128xf32, #tpu.memory_space<vmem>>, vector<1x1x128xf32>
    %280 = vector.shape_cast %279 : vector<1x1x128xf32> to vector<1x128xf32>
    %281 = vector.broadcast %280 : vector<1x128xf32> to vector<8x128xf32>
    %282 = arith.addf %278, %281 : vector<8x128xf32>
    %283 = arith.mulf %282, %282 : vector<8x128xf32>
    %284 = arith.mulf %282, %283 : vector<8x128xf32>
    %cst_127 = arith.constant 4.471500e-02 : f32
    %285 = vector.broadcast %cst_127 : f32 to vector<8x128xf32>
    %286 = arith.mulf %285, %284 : vector<8x128xf32>
    %287 = arith.addf %282, %286 : vector<8x128xf32>
    %cst_128 = arith.constant 0.797884583 : f32
    %288 = vector.broadcast %cst_128 : f32 to vector<8x128xf32>
    %289 = arith.mulf %288, %287 : vector<8x128xf32>
    %290 = math.tanh %289 : vector<8x128xf32>
    %cst_129 = arith.constant 1.000000e+00 : f32
    %291 = vector.broadcast %cst_129 : f32 to vector<8x128xf32>
    %292 = arith.addf %291, %290 : vector<8x128xf32>
    %cst_130 = arith.constant 5.000000e-01 : f32
    %293 = vector.broadcast %cst_130 : f32 to vector<8x128xf32>
    %294 = arith.mulf %293, %292 : vector<8x128xf32>
    %295 = arith.mulf %282, %294 : vector<8x128xf32>
    %c1_131 = arith.constant 1 : index
    %c0_132 = arith.constant 0 : index
    %c0_133 = arith.constant 0 : index
    %296 = vector.load %arg12[%c1_131, %c0_132, %c0_133] : memref<2x128x64xf32, #tpu.memory_space<vmem>>, vector<1x128x64xf32>
    %297 = vector.shape_cast %296 : vector<1x128x64xf32> to vector<128x64xf32>
    %cst_134 = arith.constant dense<0.000000e+00> : vector<8x64xf32>
    %298 = tpu.matmul %295, %297, %cst_134 {dimension_numbers = #tpu.dot_dimension_numbers<[1], [0], [0], [1], [0, 0, 1, 1], [], []>} : vector<8x128xf32>, vector<128x64xf32>, vector<8x64xf32> -> vector<8x64xf32>
    %c1_135 = arith.constant 1 : index
    %c0_136 = arith.constant 0 : index
    %c0_137 = arith.constant 0 : index
    %299 = vector.load %arg13[%c1_135, %c0_136, %c0_137] : memref<2x1x64xf32, #tpu.memory_space<vmem>>, vector<1x1x64xf32>
    %300 = vector.shape_cast %299 : vector<1x1x64xf32> to vector<1x64xf32>
    %301 = vector.broadcast %300 : vector<1x64xf32> to vector<8x64xf32>
    %302 = arith.addf %298, %301 : vector<8x64xf32>
    %303 = arith.addf %302, %275 : vector<8x64xf32>
    %c1_138 = arith.constant 1 : index
    %c0_139 = arith.constant 0 : index
    %c0_140 = arith.constant 0 : index
    %304 = vector.load %arg14[%c1_138, %c0_139, %c0_140] : memref<2x1x64xf32, #tpu.memory_space<vmem>>, vector<1x1x64xf32>
    %305 = vector.shape_cast %304 : vector<1x1x64xf32> to vector<1x64xf32>
    %c1_141 = arith.constant 1 : index
    %c0_142 = arith.constant 0 : index
    %c0_143 = arith.constant 0 : index
    %306 = vector.load %arg15[%c1_141, %c0_142, %c0_143] : memref<2x1x64xf32, #tpu.memory_space<vmem>>, vector<1x1x64xf32>
    %307 = vector.shape_cast %306 : vector<1x1x64xf32> to vector<1x64xf32>
    %cst_144 = arith.constant dense<0.000000e+00> : vector<8xf32>
    %308 = vector.multi_reduction <add>, %303, %cst_144 [1] : vector<8x64xf32> to vector<8xf32>
    %309 = vector.shape_cast %308 : vector<8xf32> to vector<8x1xf32>
    %cst_145 = arith.constant 6.400000e+01 : f32
    %310 = vector.broadcast %cst_145 : f32 to vector<8x1xf32>
    %311 = arith.divf %309, %310 : vector<8x1xf32>
    %312 = arith.mulf %303, %303 : vector<8x64xf32>
    %cst_146 = arith.constant dense<0.000000e+00> : vector<8xf32>
    %313 = vector.multi_reduction <add>, %312, %cst_146 [1] : vector<8x64xf32> to vector<8xf32>
    %314 = vector.shape_cast %313 : vector<8xf32> to vector<8x1xf32>
    %cst_147 = arith.constant 6.400000e+01 : f32
    %315 = vector.broadcast %cst_147 : f32 to vector<8x1xf32>
    %316 = arith.divf %314, %315 : vector<8x1xf32>
    %317 = arith.mulf %311, %311 : vector<8x1xf32>
    %318 = arith.subf %316, %317 : vector<8x1xf32>
    %319 = vector.broadcast %311 : vector<8x1xf32> to vector<8x64xf32>
    %320 = arith.subf %303, %319 : vector<8x64xf32>
    %cst_148 = arith.constant 9.99999974E-6 : f32
    %321 = vector.broadcast %cst_148 : f32 to vector<8x1xf32>
    %322 = arith.addf %318, %321 : vector<8x1xf32>
    %323 = math.rsqrt %322 : vector<8x1xf32>
    %324 = vector.broadcast %323 : vector<8x1xf32> to vector<8x64xf32>
    %325 = arith.mulf %320, %324 : vector<8x64xf32>
    %326 = vector.broadcast %305 : vector<1x64xf32> to vector<8x64xf32>
    %327 = arith.mulf %325, %326 : vector<8x64xf32>
    %328 = vector.broadcast %307 : vector<1x64xf32> to vector<8x64xf32>
    %329 = arith.addf %327, %328 : vector<8x64xf32>
    %c0_149 = arith.constant 0 : index
    %c0_150 = arith.constant 0 : index
    %c0_151 = arith.constant 0 : index
    %330 = vector.load %arg16[%c0_149, %c0_150, %c0_151] : memref<1x16x64xf32, #tpu.memory_space<vmem>>, vector<1x8x64xf32>
    %331 = vector.shape_cast %330 : vector<1x8x64xf32> to vector<8x64xf32>
    %332 = vector.shape_cast %329 : vector<8x64xf32> to vector<1x8x64xf32>
    tpu.vector_store %arg16[%c0_149, %c0_150, %c0_151], %332 {strides = array<i32>} : memref<1x16x64xf32, #tpu.memory_space<vmem>>, vector<1x8x64xf32>,
    %cst_152 = arith.constant 0.000000e+00 : f32
    %333 = vector.broadcast %cst_152 : f32 to vector<8x64xf32>
    %c0_153 = arith.constant 0 : index
    %c8 = arith.constant 8 : index
    %c0_154 = arith.constant 0 : index
    %334 = vector.load %arg16[%c0_153, %c8, %c0_154] : memref<1x16x64xf32, #tpu.memory_space<vmem>>, vector<1x8x64xf32>
    %335 = vector.shape_cast %334 : vector<1x8x64xf32> to vector<8x64xf32>
    %336 = vector.shape_cast %333 : vector<8x64xf32> to vector<1x8x64xf32>
    tpu.vector_store %arg16[%c0_153, %c8, %c0_154], %336 {strides = array<i32>} : memref<1x16x64xf32, #tpu.memory_space<vmem>>, vector<1x8x64xf32>,
    return
  }
  func.func @transform_0(%arg0: i32) -> (i32, i32, i32) {
    %c0_i32 = arith.constant 0 : i32
    %c0_i32_0 = arith.constant 0 : i32
    %c0_i32_1 = arith.constant 0 : i32
    return %arg0, %c0_i32, %c0_i32_0 : i32, i32, i32
  }
  func.func @transform_1(%arg0: i32) -> (i32, i32) {
    %c0_i32 = arith.constant 0 : i32
    %c0_i32_0 = arith.constant 0 : i32
    %c0_i32_1 = arith.constant 0 : i32
    return %c0_i32, %c0_i32_0 : i32, i32
  }
  func.func @transform_2(%arg0: i32) -> (i32, i32) {
    %c0_i32 = arith.constant 0 : i32
    %c0_i32_0 = arith.constant 0 : i32
    %c0_i32_1 = arith.constant 0 : i32
    return %c0_i32, %c0_i32_0 : i32, i32
  }
  func.func @transform_3(%arg0: i32) -> (i32, i32, i32) {
    %c0_i32 = arith.constant 0 : i32
    %c0_i32_0 = arith.constant 0 : i32
    %c0_i32_1 = arith.constant 0 : i32
    %c0_i32_2 = arith.constant 0 : i32
    return %c0_i32, %c0_i32_0, %c0_i32_1 : i32, i32, i32
  }
  func.func @transform_4(%arg0: i32) -> (i32, i32, i32) {
    %c0_i32 = arith.constant 0 : i32
    %c0_i32_0 = arith.constant 0 : i32
    %c0_i32_1 = arith.constant 0 : i32
    %c0_i32_2 = arith.constant 0 : i32
    return %c0_i32, %c0_i32_0, %c0_i32_1 : i32, i32, i32
  }
  func.func @transform_5(%arg0: i32) -> (i32, i32, i32) {
    %c0_i32 = arith.constant 0 : i32
    %c0_i32_0 = arith.constant 0 : i32
    %c0_i32_1 = arith.constant 0 : i32
    %c0_i32_2 = arith.constant 0 : i32
    return %c0_i32, %c0_i32_0, %c0_i32_1 : i32, i32, i32
  }
  func.func @transform_6(%arg0: i32) -> (i32, i32, i32) {
    %c0_i32 = arith.constant 0 : i32
    %c0_i32_0 = arith.constant 0 : i32
    %c0_i32_1 = arith.constant 0 : i32
    %c0_i32_2 = arith.constant 0 : i32
    return %c0_i32, %c0_i32_0, %c0_i32_1 : i32, i32, i32
  }
  func.func @transform_7(%arg0: i32) -> (i32, i32, i32) {
    %c0_i32 = arith.constant 0 : i32
    %c0_i32_0 = arith.constant 0 : i32
    %c0_i32_1 = arith.constant 0 : i32
    %c0_i32_2 = arith.constant 0 : i32
    return %c0_i32, %c0_i32_0, %c0_i32_1 : i32, i32, i32
  }
  func.func @transform_8(%arg0: i32) -> (i32, i32, i32) {
    %c0_i32 = arith.constant 0 : i32
    %c0_i32_0 = arith.constant 0 : i32
    %c0_i32_1 = arith.constant 0 : i32
    %c0_i32_2 = arith.constant 0 : i32
    return %c0_i32, %c0_i32_0, %c0_i32_1 : i32, i32, i32
  }
  func.func @transform_9(%arg0: i32) -> (i32, i32, i32) {
    %c0_i32 = arith.constant 0 : i32
    %c0_i32_0 = arith.constant 0 : i32
    %c0_i32_1 = arith.constant 0 : i32
    %c0_i32_2 = arith.constant 0 : i32
    return %c0_i32, %c0_i32_0, %c0_i32_1 : i32, i32, i32
  }
  func.func @transform_10(%arg0: i32) -> (i32, i32, i32) {
    %c0_i32 = arith.constant 0 : i32
    %c0_i32_0 = arith.constant 0 : i32
    %c0_i32_1 = arith.constant 0 : i32
    %c0_i32_2 = arith.constant 0 : i32
    return %c0_i32, %c0_i32_0, %c0_i32_1 : i32, i32, i32
  }
  func.func @transform_11(%arg0: i32) -> (i32, i32, i32) {
    %c0_i32 = arith.constant 0 : i32
    %c0_i32_0 = arith.constant 0 : i32
    %c0_i32_1 = arith.constant 0 : i32
    %c0_i32_2 = arith.constant 0 : i32
    return %c0_i32, %c0_i32_0, %c0_i32_1 : i32, i32, i32
  }
  func.func @transform_12(%arg0: i32) -> (i32, i32, i32) {
    %c0_i32 = arith.constant 0 : i32
    %c0_i32_0 = arith.constant 0 : i32
    %c0_i32_1 = arith.constant 0 : i32
    %c0_i32_2 = arith.constant 0 : i32
    return %c0_i32, %c0_i32_0, %c0_i32_1 : i32, i32, i32
  }
  func.func @transform_13(%arg0: i32) -> (i32, i32, i32) {
    %c0_i32 = arith.constant 0 : i32
    %c0_i32_0 = arith.constant 0 : i32
    %c0_i32_1 = arith.constant 0 : i32
    %c0_i32_2 = arith.constant 0 : i32
    return %c0_i32, %c0_i32_0, %c0_i32_1 : i32, i32, i32
  }
  func.func @transform_14(%arg0: i32) -> (i32, i32, i32) {
    %c0_i32 = arith.constant 0 : i32
    %c0_i32_0 = arith.constant 0 : i32
    %c0_i32_1 = arith.constant 0 : i32
    %c0_i32_2 = arith.constant 0 : i32
    return %c0_i32, %c0_i32_0, %c0_i32_1 : i32, i32, i32
  }
  func.func @transform_15(%arg0: i32) -> (i32, i32, i32) {
    %c0_i32 = arith.constant 0 : i32
    %c0_i32_0 = arith.constant 0 : i32
    %c0_i32_1 = arith.constant 0 : i32
    return %arg0, %c0_i32, %c0_i32_0 : i32, i32, i32
  }
}

</mosaic_0001>

<llo_original>
// kernel: roberta_forward.1
$region0: #{roberta_forward.1}
  #allocation0 [shape = 'u32[]', space=smem, size = 0x4, offset = 0x4, fixed_abs, tag = 'smem constant byte address 0x4 - core index']
  #allocation1 [shape = 'u32[144,128]{1,0:T(1,128)}', space=vmem, size = 0x12000, scoped, tag = 'internal scratch']
  %s0 = inlined_call_operand.vmem [shape: f32[2,8,64], index: 0, kind: input, shape index: {}]
  %s1 = inlined_call_operand.vmem [shape: f32[1,64], index: 1, kind: input, shape index: {}]
  %s2 = inlined_call_operand.vmem [shape: f32[1,64], index: 2, kind: input, shape index: {}]
  %s3 = inlined_call_operand.vmem [shape: f32[2,64,1536], index: 3, kind: input, shape index: {}]
  %s4 = inlined_call_operand.vmem [shape: f32[2,1,1536], index: 4, kind: input, shape index: {}]
  %s5 = inlined_call_operand.vmem [shape: f32[2,512,64], index: 5, kind: input, shape index: {}]
  %s6 = inlined_call_operand.vmem [shape: f32[2,1,64], index: 6, kind: input, shape index: {}]
  %s7 = inlined_call_operand.vmem [shape: f32[2,1,64], index: 7, kind: input, shape index: {}]
  %s8 = inlined_call_operand.vmem [shape: f32[2,1,64], index: 8, kind: input, shape index: {}]
  %s9 = inlined_call_operand.vmem [shape: f32[2,64,128], index: 9, kind: input, shape index: {}]
  %s10 = inlined_call_operand.vmem [shape: f32[2,1,128], index: 10, kind: input, shape index: {}]
  %s11 = inlined_call_operand.vmem [shape: f32[2,128,64], index: 11, kind: input, shape index: {}]
  %s12 = inlined_call_operand.vmem [shape: f32[2,1,64], index: 12, kind: input, shape index: {}]
  %s13 = inlined_call_operand.vmem [shape: f32[2,1,64], index: 13, kind: input, shape index: {}]
  %s14 = inlined_call_operand.vmem [shape: f32[2,1,64], index: 14, kind: input, shape index: {}]
  %s15 = inlined_call_operand.vmem [shape: f32[2,16,64], index: 15, kind: output, shape index: {}]
  %s16 = sld [smem:[#allocation0]]
  $region93: #{roberta_forward.1} parent=0
    _
  %s18 = ssub.s32 1, %s16
  %s19 = scalar_select 0, %s18, %s16
  loop: start=0, step=1, limit=4
  $region2: #{roberta_forward.1} parent=0 // loop_pre_header
    _
  $region3: #{roberta_forward.1} parent=0 // loop_header
    %s21 = sphi 0, %s25
    %p22 = scmp.ge.s32.totalorder %s21, 4
    %s31 = sphi 0, %s33
    %s34 = sphi 0, %s31
    %s35 = sphi 0, %s34
    %s51 = sphi 0, %s35
    %s55 = sphi 0, %s55
    %s57 = sphi 0, %s55
    %s58 = sphi 0, %s57
    %s72 = sphi 0, %s58
    %s76 = sphi 0, %s76
    %s78 = sphi 0, %s76
    %s79 = sphi 0, %s78
    %s93 = sphi 0, %s79
    %s97 = sphi 0, %s97
    %s99 = sphi 0, %s97
    %s100 = sphi 0, %s99
    %s114 = sphi 0, %s100
    %s118 = sphi 0, %s118
    %s120 = sphi 0, %s118
    %s121 = sphi 0, %s120
    %s135 = sphi 0, %s121
    %s139 = sphi 0, %s139
    %s141 = sphi 0, %s139
    %s142 = sphi 0, %s141
    %s156 = sphi 0, %s142
    %s160 = sphi 0, %s160
    %s162 = sphi 0, %s160
    %s163 = sphi 0, %s162
    %s177 = sphi 0, %s163
    %s181 = sphi 0, %s181
    %s183 = sphi 0, %s181
    %s184 = sphi 0, %s183
    %s198 = sphi 0, %s184
    %s202 = sphi 0, %s202
    %s204 = sphi 0, %s202
    %s205 = sphi 0, %s204
    %s219 = sphi 0, %s205
    %s223 = sphi 0, %s223
    %s225 = sphi 0, %s223
    %s226 = sphi 0, %s225
    %s240 = sphi 0, %s226
    %s244 = sphi 0, %s244
    %s246 = sphi 0, %s244
    %s247 = sphi 0, %s246
    %s261 = sphi 0, %s247
    %s265 = sphi 0, %s265
    %s267 = sphi 0, %s265
    %s268 = sphi 0, %s267
    %s282 = sphi 0, %s268
    %s286 = sphi 0, %s286
    %s288 = sphi 0, %s286
    %s289 = sphi 0, %s288
    %s303 = sphi 0, %s289
    %s307 = sphi 0, %s307
    %s309 = sphi 0, %s307
    %s310 = sphi 0, %s309
    %s324 = sphi 0, %s310
    %s328 = sphi 0, %s328
    %s330 = sphi 0, %s328
    %s331 = sphi 0, %s330
    %s345 = sphi 0, %s331
    %s351 = sphi 0, %s353
    %s354 = sphi 0, %s351
    %s355 = sphi 0, %s354
    %s371 = sphi 0, %s355
  $region4: #{roberta_forward.1} parent=0 // loop_header_branch
    %24 = sbr.rel (%p22) target = $region8
  $region5: #{roberta_forward.1} parent=0 // loop_body
    %s26 = ssub.s32 %s21, 1
    %s27 = ssub.s32 %s21, 2
    %s28 = sadd.s32 %s21, 1
    %s29 = ssub.s32 %s21, %s28
    %p30 = scmp.eq.s32.totalorder %s29, 0
    %s32 = sadd.s32 %s31, 1
    %s33 = scalar_select %p30, %s31, %s32
    %p36 = pneg %p30
    %p37 = scmp.eq.s32.totalorder %s21, 1
    %p38 = por %p36, %p37
    %p39 = scmp.ne.s32.totalorder %s31, %s34
    %p40 = scmp.eq.s32.totalorder %s21, 0
    %p41 = por %p39, %p40
    %p42 = scmp.ne.s32.totalorder %s31, %s34
    %p43 = scmp.eq.s32.totalorder %s26, 1
    %p44 = por %p42, %p43
    %p45 = scmp.ne.s32.totalorder %s34, %s35
    %p46 = scmp.eq.s32.totalorder %s26, 0
    %p47 = por %p45, %p46
    %p48 = scmp.ne.s32.totalorder %s34, %s35
    %p49 = scmp.eq.s32.totalorder %s27, 1
    %p50 = por %p48, %p49
    %p52 = scmp.ne.s32.totalorder %s35, %s51
    %p53 = scmp.eq.s32.totalorder %s27, 0
    %p54 = por %p52, %p53
    %s56 = sadd.s32 %s55, 1
    %p59 = scmp.eq.s32.totalorder %s21, 1
    %p60 = scmp.ne.s32.totalorder %s55, %s57
    %p61 = scmp.eq.s32.totalorder %s21, 0
    %p62 = por %p60, %p61
    %p63 = scmp.ne.s32.totalorder %s55, %s57
    %p64 = scmp.eq.s32.totalorder %s26, 1
    %p65 = por %p63, %p64
    %p66 = scmp.ne.s32.totalorder %s57, %s58
    %p67 = scmp.eq.s32.totalorder %s26, 0
    %p68 = por %p66, %p67
    %p69 = scmp.ne.s32.totalorder %s57, %s58
    %p70 = scmp.eq.s32.totalorder %s27, 1
    %p71 = por %p69, %p70
    %p73 = scmp.ne.s32.totalorder %s58, %s72
    %p74 = scmp.eq.s32.totalorder %s27, 0
    %p75 = por %p73, %p74
    %s77 = sadd.s32 %s76, 1
    %p80 = scmp.eq.s32.totalorder %s21, 1
    %p81 = scmp.ne.s32.totalorder %s76, %s78
    %p82 = scmp.eq.s32.totalorder %s21, 0
    %p83 = por %p81, %p82
    %p84 = scmp.ne.s32.totalorder %s76, %s78
    %p85 = scmp.eq.s32.totalorder %s26, 1
    %p86 = por %p84, %p85
    %p87 = scmp.ne.s32.totalorder %s78, %s79
    %p88 = scmp.eq.s32.totalorder %s26, 0
    %p89 = por %p87, %p88
    %p90 = scmp.ne.s32.totalorder %s78, %s79
    %p91 = scmp.eq.s32.totalorder %s27, 1
    %p92 = por %p90, %p91
    %p94 = scmp.ne.s32.totalorder %s79, %s93
    %p95 = scmp.eq.s32.totalorder %s27, 0
    %p96 = por %p94, %p95
    %s98 = sadd.s32 %s97, 1
    %p101 = scmp.eq.s32.totalorder %s21, 1
    %p102 = scmp.ne.s32.totalorder %s97, %s99
    %p103 = scmp.eq.s32.totalorder %s21, 0
    %p104 = por %p102, %p103
    %p105 = scmp.ne.s32.totalorder %s97, %s99
    %p106 = scmp.eq.s32.totalorder %s26, 1
    %p107 = por %p105, %p106
    %p108 = scmp.ne.s32.totalorder %s99, %s100
    %p109 = scmp.eq.s32.totalorder %s26, 0
    %p110 = por %p108, %p109
    %p111 = scmp.ne.s32.totalorder %s99, %s100
    %p112 = scmp.eq.s32.totalorder %s27, 1
    %p113 = por %p111, %p112
    %p115 = scmp.ne.s32.totalorder %s100, %s114
    %p116 = scmp.eq.s32.totalorder %s27, 0
    %p117 = por %p115, %p116
    %s119 = sadd.s32 %s118, 1
    %p122 = scmp.eq.s32.totalorder %s21, 1
    %p123 = scmp.ne.s32.totalorder %s118, %s120
    %p124 = scmp.eq.s32.totalorder %s21, 0
    %p125 = por %p123, %p124
    %p126 = scmp.ne.s32.totalorder %s118, %s120
    %p127 = scmp.eq.s32.totalorder %s26, 1
    %p128 = por %p126, %p127
    %p129 = scmp.ne.s32.totalorder %s120, %s121
    %p130 = scmp.eq.s32.totalorder %s26, 0
    %p131 = por %p129, %p130
    %p132 = scmp.ne.s32.totalorder %s120, %s121
    %p133 = scmp.eq.s32.totalorder %s27, 1
    %p134 = por %p132, %p133
    %p136 = scmp.ne.s32.totalorder %s121, %s135
    %p137 = scmp.eq.s32.totalorder %s27, 0
    %p138 = por %p136, %p137
    %s140 = sadd.s32 %s139, 1
    %p143 = scmp.eq.s32.totalorder %s21, 1
    %p144 = scmp.ne.s32.totalorder %s139, %s141
    %p145 = scmp.eq.s32.totalorder %s21, 0
    %p146 = por %p144, %p145
    %p147 = scmp.ne.s32.totalorder %s139, %s141
    %p148 = scmp.eq.s32.totalorder %s26, 1
    %p149 = por %p147, %p148
    %p150 = scmp.ne.s32.totalorder %s141, %s142
    %p151 = scmp.eq.s32.totalorder %s26, 0
    %p152 = por %p150, %p151
    %p153 = scmp.ne.s32.totalorder %s141, %s142
    %p154 = scmp.eq.s32.totalorder %s27, 1
    %p155 = por %p153, %p154
    %p157 = scmp.ne.s32.totalorder %s142, %s156
    %p158 = scmp.eq.s32.totalorder %s27, 0
    %p159 = por %p157, %p158
    %s161 = sadd.s32 %s160, 1
    %p164 = scmp.eq.s32.totalorder %s21, 1
    %p165 = scmp.ne.s32.totalorder %s160, %s162
    %p166 = scmp.eq.s32.totalorder %s21, 0
    %p167 = por %p165, %p166
    %p168 = scmp.ne.s32.totalorder %s160, %s162
    %p169 = scmp.eq.s32.totalorder %s26, 1
    %p170 = por %p168, %p169
    %p171 = scmp.ne.s32.totalorder %s162, %s163
    %p172 = scmp.eq.s32.totalorder %s26, 0
    %p173 = por %p171, %p172
    %p174 = scmp.ne.s32.totalorder %s162, %s163
    %p175 = scmp.eq.s32.totalorder %s27, 1
    %p176 = por %p174, %p175
    %p178 = scmp.ne.s32.totalorder %s163, %s177
    %p179 = scmp.eq.s32.totalorder %s27, 0
    %p180 = por %p178, %p179
    %s182 = sadd.s32 %s181, 1
    %p185 = scmp.eq.s32.totalorder %s21, 1
    %p186 = scmp.ne.s32.totalorder %s181, %s183
    %p187 = scmp.eq.s32.totalorder %s21, 0
    %p188 = por %p186, %p187
    %p189 = scmp.ne.s32.totalorder %s181, %s183
    %p190 = scmp.eq.s32.totalorder %s26, 1
    %p191 = por %p189, %p190
    %p192 = scmp.ne.s32.totalorder %s183, %s184
    %p193 = scmp.eq.s32.totalorder %s26, 0
    %p194 = por %p192, %p193
    %p195 = scmp.ne.s32.totalorder %s183, %s184
    %p196 = scmp.eq.s32.totalorder %s27, 1
    %p197 = por %p195, %p196
    %p199 = scmp.ne.s32.totalorder %s184, %s198
    %p200 = scmp.eq.s32.totalorder %s27, 0
    %p201 = por %p199, %p200
    %s203 = sadd.s32 %s202, 1
    %p206 = scmp.eq.s32.totalorder %s21, 1
    %p207 = scmp.ne.s32.totalorder %s202, %s204
    %p208 = scmp.eq.s32.totalorder %s21, 0
    %p209 = por %p207, %p208
    %p210 = scmp.ne.s32.totalorder %s202, %s204
    %p211 = scmp.eq.s32.totalorder %s26, 1
    %p212 = por %p210, %p211
    %p213 = scmp.ne.s32.totalorder %s204, %s205
    %p214 = scmp.eq.s32.totalorder %s26, 0
    %p215 = por %p213, %p214
    %p216 = scmp.ne.s32.totalorder %s204, %s205
    %p217 = scmp.eq.s32.totalorder %s27, 1
    %p218 = por %p216, %p217
    %p220 = scmp.ne.s32.totalorder %s205, %s219
    %p221 = scmp.eq.s32.totalorder %s27, 0
    %p222 = por %p220, %p221
    %s224 = sadd.s32 %s223, 1
    %p227 = scmp.eq.s32.totalorder %s21, 1
    %p228 = scmp.ne.s32.totalorder %s223, %s225
    %p229 = scmp.eq.s32.totalorder %s21, 0
    %p230 = por %p228, %p229
    %p231 = scmp.ne.s32.totalorder %s223, %s225
    %p232 = scmp.eq.s32.totalorder %s26, 1
    %p233 = por %p231, %p232
    %p234 = scmp.ne.s32.totalorder %s225, %s226
    %p235 = scmp.eq.s32.totalorder %s26, 0
    %p236 = por %p234, %p235
    %p237 = scmp.ne.s32.totalorder %s225, %s226
    %p238 = scmp.eq.s32.totalorder %s27, 1
    %p239 = por %p237, %p238
    %p241 = scmp.ne.s32.totalorder %s226, %s240
    %p242 = scmp.eq.s32.totalorder %s27, 0
    %p243 = por %p241, %p242
    %s245 = sadd.s32 %s244, 1
    %p248 = scmp.eq.s32.totalorder %s21, 1
    %p249 = scmp.ne.s32.totalorder %s244, %s246
    %p250 = scmp.eq.s32.totalorder %s21, 0
    %p251 = por %p249, %p250
    %p252 = scmp.ne.s32.totalorder %s244, %s246
    %p253 = scmp.eq.s32.totalorder %s26, 1
    %p254 = por %p252, %p253
    %p255 = scmp.ne.s32.totalorder %s246, %s247
    %p256 = scmp.eq.s32.totalorder %s26, 0
    %p257 = por %p255, %p256
    %p258 = scmp.ne.s32.totalorder %s246, %s247
    %p259 = scmp.eq.s32.totalorder %s27, 1
    %p260 = por %p258, %p259
    %p262 = scmp.ne.s32.totalorder %s247, %s261
    %p263 = scmp.eq.s32.totalorder %s27, 0
    %p264 = por %p262, %p263
    %s266 = sadd.s32 %s265, 1
    %p269 = scmp.eq.s32.totalorder %s21, 1
    %p270 = scmp.ne.s32.totalorder %s265, %s267
    %p271 = scmp.eq.s32.totalorder %s21, 0
    %p272 = por %p270, %p271
    %p273 = scmp.ne.s32.totalorder %s265, %s267
    %p274 = scmp.eq.s32.totalorder %s26, 1
    %p275 = por %p273, %p274
    %p276 = scmp.ne.s32.totalorder %s267, %s268
    %p277 = scmp.eq.s32.totalorder %s26, 0
    %p278 = por %p276, %p277
    %p279 = scmp.ne.s32.totalorder %s267, %s268
    %p280 = scmp.eq.s32.totalorder %s27, 1
    %p281 = por %p279, %p280
    %p283 = scmp.ne.s32.totalorder %s268, %s282
    %p284 = scmp.eq.s32.totalorder %s27, 0
    %p285 = por %p283, %p284
    %s287 = sadd.s32 %s286, 1
    %p290 = scmp.eq.s32.totalorder %s21, 1
    %p291 = scmp.ne.s32.totalorder %s286, %s288
    %p292 = scmp.eq.s32.totalorder %s21, 0
    %p293 = por %p291, %p292
    %p294 = scmp.ne.s32.totalorder %s286, %s288
    %p295 = scmp.eq.s32.totalorder %s26, 1
    %p296 = por %p294, %p295
    %p297 = scmp.ne.s32.totalorder %s288, %s289
    %p298 = scmp.eq.s32.totalorder %s26, 0
    %p299 = por %p297, %p298
    %p300 = scmp.ne.s32.totalorder %s288, %s289
    %p301 = scmp.eq.s32.totalorder %s27, 1
    %p302 = por %p300, %p301
    %p304 = scmp.ne.s32.totalorder %s289, %s303
    %p305 = scmp.eq.s32.totalorder %s27, 0
    %p306 = por %p304, %p305
    %s308 = sadd.s32 %s307, 1
    %p311 = scmp.eq.s32.totalorder %s21, 1
    %p312 = scmp.ne.s32.totalorder %s307, %s309
    %p313 = scmp.eq.s32.totalorder %s21, 0
    %p314 = por %p312, %p313
    %p315 = scmp.ne.s32.totalorder %s307, %s309
    %p316 = scmp.eq.s32.totalorder %s26, 1
    %p317 = por %p315, %p316
    %p318 = scmp.ne.s32.totalorder %s309, %s310
    %p319 = scmp.eq.s32.totalorder %s26, 0
    %p320 = por %p318, %p319
    %p321 = scmp.ne.s32.totalorder %s309, %s310
    %p322 = scmp.eq.s32.totalorder %s27, 1
    %p323 = por %p321, %p322
    %p325 = scmp.ne.s32.totalorder %s310, %s324
    %p326 = scmp.eq.s32.totalorder %s27, 0
    %p327 = por %p325, %p326
    %s329 = sadd.s32 %s328, 1
    %p332 = scmp.eq.s32.totalorder %s21, 1
    %p333 = scmp.ne.s32.totalorder %s328, %s330
    %p334 = scmp.eq.s32.totalorder %s21, 0
    %p335 = por %p333, %p334
    %p336 = scmp.ne.s32.totalorder %s328, %s330
    %p337 = scmp.eq.s32.totalorder %s26, 1
    %p338 = por %p336, %p337
    %p339 = scmp.ne.s32.totalorder %s330, %s331
    %p340 = scmp.eq.s32.totalorder %s26, 0
    %p341 = por %p339, %p340
    %p342 = scmp.ne.s32.totalorder %s330, %s331
    %p343 = scmp.eq.s32.totalorder %s27, 1
    %p344 = por %p342, %p343
    %p346 = scmp.ne.s32.totalorder %s331, %s345
    %p347 = scmp.eq.s32.totalorder %s27, 0
    %p348 = por %p346, %p347
    %s349 = ssub.s32 %s21, %s28
    %p350 = scmp.eq.s32.totalorder %s349, 0
    %s352 = sadd.s32 %s351, 1
    %s353 = scalar_select %p350, %s351, %s352
    %p356 = pneg %p350
    %p357 = scmp.eq.s32.totalorder %s21, 1
    %p358 = por %p356, %p357
    %p359 = scmp.ne.s32.totalorder %s351, %s354
    %p360 = scmp.eq.s32.totalorder %s21, 0
    %p361 = por %p359, %p360
    %p362 = scmp.ne.s32.totalorder %s351, %s354
    %p363 = scmp.eq.s32.totalorder %s26, 1
    %p364 = por %p362, %p363
    %p365 = scmp.ne.s32.totalorder %s354, %s355
    %p366 = scmp.eq.s32.totalorder %s26, 0
    %p367 = por %p365, %p366
    %p368 = scmp.ne.s32.totalorder %s354, %s355
    %p369 = scmp.eq.s32.totalorder %s27, 1
    %p370 = por %p368, %p369
    %p372 = scmp.ne.s32.totalorder %s355, %s371
    %p373 = scmp.eq.s32.totalorder %s27, 0
    %p374 = por %p372, %p373
    %p375 = scmp.le.s32.totalorder 1, %s21
    %p376 = scmp.lt.s32.totalorder %s21, 3
    %p377 = pnand %p375, %p376
    %p378 = pneg %p377
    // Predicated region
    $region9: #{roberta_forward.1} parent=5 // pred_check
      _
    $region10: #{roberta_forward.1} parent=5 // pred_check_branch
      %380 = sbr.rel (%p377) target = $region12
    $region11: #{roberta_forward.1} parent=5 // pred_region
      %s381 = ssub.s32 %s21, 1
      // Predicated region
      $region13: #{roberta_forward.1} parent=11 // pred_check
        %p382 = pneg %p68
      $region14: #{roberta_forward.1} parent=11 // pred_check_branch
        %384 = sbr.rel (%p382) target = $region16
      $region15: #{roberta_forward.1} parent=11 // pred_region
        _
      $region16: #{roberta_forward.1} parent=11 // pred_fallthru
        _
      // Predicated region
      $region17: #{roberta_forward.1} parent=11 // pred_check
        %p385 = pneg %p89
      $region18: #{roberta_forward.1} parent=11 // pred_check_branch
        %387 = sbr.rel (%p385) target = $region20
      $region19: #{roberta_forward.1} parent=11 // pred_region
        _
      $region20: #{roberta_forward.1} parent=11 // pred_fallthru
        _
      // Predicated region
      $region21: #{roberta_forward.1} parent=11 // pred_check
        %p388 = pneg %p110
      $region22: #{roberta_forward.1} parent=11 // pred_check_branch
        %390 = sbr.rel (%p388) target = $region24
      $region23: #{roberta_forward.1} parent=11 // pred_region
        _
      $region24: #{roberta_forward.1} parent=11 // pred_fallthru
        _
      // Predicated region
      $region25: #{roberta_forward.1} parent=11 // pred_check
        %p391 = pneg %p131
      $region26: #{roberta_forward.1} parent=11 // pred_check_branch
        %393 = sbr.rel (%p391) target = $region28
      $region27: #{roberta_forward.1} parent=11 // pred_region
        _
      $region28: #{roberta_forward.1} parent=11 // pred_fallthru
        _
      // Predicated region
      $region29: #{roberta_forward.1} parent=11 // pred_check
        %p394 = pneg %p152
      $region30: #{roberta_forward.1} parent=11 // pred_check_branch
        %396 = sbr.rel (%p394) target = $region32
      $region31: #{roberta_forward.1} parent=11 // pred_region
        _
      $region32: #{roberta_forward.1} parent=11 // pred_fallthru
        _
      // Predicated region
      $region33: #{roberta_forward.1} parent=11 // pred_check
        %p397 = pneg %p173
      $region34: #{roberta_forward.1} parent=11 // pred_check_branch
        %399 = sbr.rel (%p397) target = $region36
      $region35: #{roberta_forward.1} parent=11 // pred_region
        _
      $region36: #{roberta_forward.1} parent=11 // pred_fallthru
        _
      // Predicated region
      $region37: #{roberta_forward.1} parent=11 // pred_check
        %p400 = pneg %p194
      $region38: #{roberta_forward.1} parent=11 // pred_check_branch
        %402 = sbr.rel (%p400) target = $region40
      $region39: #{roberta_forward.1} parent=11 // pred_region
        _
      $region40: #{roberta_forward.1} parent=11 // pred_fallthru
        _
      // Predicated region
      $region41: #{roberta_forward.1} parent=11 // pred_check
        %p403 = pneg %p215
      $region42: #{roberta_forward.1} parent=11 // pred_check_branch
        %405 = sbr.rel (%p403) target = $region44
      $region43: #{roberta_forward.1} parent=11 // pred_region
        _
      $region44: #{roberta_forward.1} parent=11 // pred_fallthru
        _
      // Predicated region
      $region45: #{roberta_forward.1} parent=11 // pred_check
        %p406 = pneg %p236
      $region46: #{roberta_forward.1} parent=11 // pred_check_branch
        %408 = sbr.rel (%p406) target = $region48
      $region47: #{roberta_forward.1} parent=11 // pred_region
        _
      $region48: #{roberta_forward.1} parent=11 // pred_fallthru
        _
      // Predicated region
      $region49: #{roberta_forward.1} parent=11 // pred_check
        %p409 = pneg %p257
      $region50: #{roberta_forward.1} parent=11 // pred_check_branch
        %411 = sbr.rel (%p409) target = $region52
      $region51: #{roberta_forward.1} parent=11 // pred_region
        _
      $region52: #{roberta_forward.1} parent=11 // pred_fallthru
        _
      // Predicated region
      $region53: #{roberta_forward.1} parent=11 // pred_check
        %p412 = pneg %p278
      $region54: #{roberta_forward.1} parent=11 // pred_check_branch
        %414 = sbr.rel (%p412) target = $region56
      $region55: #{roberta_forward.1} parent=11 // pred_region
        _
      $region56: #{roberta_forward.1} parent=11 // pred_fallthru
        _
      // Predicated region
      $region57: #{roberta_forward.1} parent=11 // pred_check
        %p415 = pneg %p299
      $region58: #{roberta_forward.1} parent=11 // pred_check_branch
        %417 = sbr.rel (%p415) target = $region60
      $region59: #{roberta_forward.1} parent=11 // pred_region
        _
      $region60: #{roberta_forward.1} parent=11 // pred_fallthru
        _
      // Predicated region
      $region61: #{roberta_forward.1} parent=11 // pred_check
        %p418 = pneg %p320
      $region62: #{roberta_forward.1} parent=11 // pred_check_branch
        %420 = sbr.rel (%p418) target = $region64
      $region63: #{roberta_forward.1} parent=11 // pred_region
        _
      $region64: #{roberta_forward.1} parent=11 // pred_fallthru
        _
      // Predicated region
      $region65: #{roberta_forward.1} parent=11 // pred_check
        %p421 = pneg %p341
      $region66: #{roberta_forward.1} parent=11 // pred_check_branch
        %423 = sbr.rel (%p421) target = $region68
      $region67: #{roberta_forward.1} parent=11 // pred_region
        _
      $region68: #{roberta_forward.1} parent=11 // pred_fallthru
        _
    $region12: #{roberta_forward.1} parent=5 // pred_fallthru
      _
    %p424 = scmp.lt.s32.totalorder %s21, 2
    // Predicated region
    $region69: #{roberta_forward.1} parent=5 // pred_check
      %p425 = pneg %p424
    $region70: #{roberta_forward.1} parent=5 // pred_check_branch
      %427 = sbr.rel (%p425) target = $region72
    $region71: #{roberta_forward.1} parent=5 // pred_region
      // Predicated region
      $region73: #{roberta_forward.1} parent=71 // pred_check
        %p428 = pneg %p41
      $region74: #{roberta_forward.1} parent=71 // pred_check_branch
        %430 = sbr.rel (%p428) target = $region76
      $region75: #{roberta_forward.1} parent=71 // pred_region
        %p431 = scmp.lt.s32.totalorder %s21, 1
        %s432 = scalar_select %p431, %s21, 1
        %s433 = smul.addr %s432, 8
        %s434 = scalar_lea.vmem %s0, %s433
      $region76: #{roberta_forward.1} parent=71 // pred_fallthru
        _
    $region72: #{roberta_forward.1} parent=5 // pred_fallthru
      _
    %p435 = scmp.le.s32.totalorder 1, %s21
    %p436 = scmp.lt.s32.totalorder %s21, 3
    %p437 = pnand %p435, %p436
    %p438 = pneg %p437
    // Predicated region
    $region77: #{roberta_forward.1} parent=5 // pred_check
      _
    $region78: #{roberta_forward.1} parent=5 // pred_check_branch
      %440 = sbr.rel (%p437) target = $region80
    $region79: #{roberta_forward.1} parent=5 // pred_region
      %s441 = ssub.s32 %s21, 1
      %p442 = scmp.lt.s32.totalorder %s26, 1
      %s443 = scalar_select %p442, %s26, 1
      %s444 = smul.addr %s443, 8
      %s445 = scalar_lea.vmem %s0, %s444
      %p446 = pneg %p47
      %p447 = pneg %p44
      %p448 = pneg %p68
      %p449 = pneg %p65
      %p450 = pneg %p89
      %p451 = pneg %p86
      %p452 = pneg %p110
      %p453 = pneg %p107
      %p454 = pneg %p131
      %p455 = pneg %p128
      %p456 = pneg %p152
      %p457 = pneg %p149
      %p458 = pneg %p173
      %p459 = pneg %p170
      %p460 = pneg %p194
      %p461 = pneg %p191
      %p462 = pneg %p215
      %p463 = pneg %p212
      %p464 = pneg %p236
      %p465 = pneg %p233
      %p466 = pneg %p257
      %p467 = pneg %p254
      %p468 = pneg %p278
      %p469 = pneg %p275
      %p470 = pneg %p299
      %p471 = pneg %p296
      %p472 = pneg %p320
      %p473 = pneg %p317
      %p474 = pneg %p341
      %p475 = pneg %p338
      %p476 = pneg %p367
      %p477 = pneg %p364
      %p478 = scmp.lt.s32.totalorder %s26, 1
      %s479 = scalar_select %p478, %s26, 1
      %s480 = smul.addr %s479, 2
      %s481 = smul.addr %s480, 8
      %s482 = scalar_lea.vmem %s15, %s481
      %p483 = scmp.lt.s32.totalorder %s26, 1
      %s484 = scalar_select %p483, %s26, 1
      %s485 = smul.addr %s484, 8
      %s486 = scalar_lea.vmem %s0, %s485
      %p487 = scmp.lt.s32.totalorder %s26, 1
      %s488 = scalar_select %p487, %s26, 1
      %s489 = smul.addr %s488, 2
      %s490 = smul.addr %s489, 8
      %s491 = scalar_lea.vmem %s15, %s490
      %v492 = vld [vmem:[%s486] sm:$0xff]
      %v493 = vld [vmem:[%s1] sm:$0x1]
      %v494 = vld [vmem:[%s2] sm:$0x1]
      %vm495 = vcmask 523264
      %v496 = vsel %vm495, %v492, 0.0
      %497 = vadd.xlane.f32.xlu0 %v496
      %v498 = vpop.xlane.xlu0 %497
      %v499 = vrcp.pop 64.0
      %v500 = vmul.f32 %v498, %v499
      %v501 = vmul.f32 %v492, %v492
      %v502 = vsel %vm495, %v501, 0.0
      %503 = vadd.xlane.f32.xlu0 %v502
      %v504 = vpop.xlane.xlu0 %503
      %v505 = vmul.f32 %v504, %v499
      %v506 = vmul.f32 %v500, %v500
      %v507 = vsub.f32 %v505, %v506
      %v508 = vsub.f32 %v492, %v500
      %v509 = vadd.f32 %v507, 1e-05
      %v510 = vrsqrt.pop %v509
      %v511 = vmul.f32 %v508, %v510
      %v513 = vlaneseq
      %v514 = vshrl.u32 %v513, 7
      %v515 = vsub.s32 0, %v514
      %v516 = vrot.slane %v493, %v515
      %v518 = vmul.f32 %v511, %v516
      %v520 = vlaneseq
      %v521 = vshrl.u32 %v520, 7
      %v522 = vsub.s32 0, %v521
      %v523 = vrot.slane %v494, %v522
      %v525 = vadd.f32 %v518, %v523
      %v526 = vld [vmem:[%s3] sm:$0xff]
      %v527 = vld [vmem:[%s3 + $0x8] sm:$0xff]
      %v528 = vld [vmem:[%s3 + $0x10] sm:$0xff]
      %v529 = vld [vmem:[%s3 + $0x18] sm:$0xff]
      %v530 = vld [vmem:[%s3 + $0x20] sm:$0xff]
      %v531 = vld [vmem:[%s3 + $0x28] sm:$0xff]
      %v532 = vld [vmem:[%s3 + $0x30] sm:$0xff]
      %v533 = vld [vmem:[%s3 + $0x38] sm:$0xff]
      %v534 = vld [vmem:[%s3 + $0x40] sm:$0xff]
      %v535 = vld [vmem:[%s3 + $0x48] sm:$0xff]
      %v536 = vld [vmem:[%s3 + $0x50] sm:$0xff]
      %v537 = vld [vmem:[%s3 + $0x58] sm:$0xff]
      %v538 = vld [vmem:[%s3 + $0x60] sm:$0xff]
      %v539 = vld [vmem:[%s3 + $0x68] sm:$0xff]
      %v540 = vld [vmem:[%s3 + $0x70] sm:$0xff]
      %v541 = vld [vmem:[%s3 + $0x78] sm:$0xff]
      %v542 = vld [vmem:[%s3 + $0x80] sm:$0xff]
      %v543 = vld [vmem:[%s3 + $0x88] sm:$0xff]
      %v544 = vld [vmem:[%s3 + $0x90] sm:$0xff]
      %v545 = vld [vmem:[%s3 + $0x98] sm:$0xff]
      %v546 = vld [vmem:[%s3 + $0xa0] sm:$0xff]
      %v547 = vld [vmem:[%s3 + $0xa8] sm:$0xff]
      %v548 = vld [vmem:[%s3 + $0xb0] sm:$0xff]
      %v549 = vld [vmem:[%s3 + $0xb8] sm:$0xff]
      %v550 = vld [vmem:[%s3 + $0xc0] sm:$0xff]
      %v551 = vld [vmem:[%s3 + $0xc8] sm:$0xff]
      %v552 = vld [vmem:[%s3 + $0xd0] sm:$0xff]
      %v553 = vld [vmem:[%s3 + $0xd8] sm:$0xff]
      %v554 = vld [vmem:[%s3 + $0xe0] sm:$0xff]
      %v555 = vld [vmem:[%s3 + $0xe8] sm:$0xff]
      %v556 = vld [vmem:[%s3 + $0xf0] sm:$0xff]
      %v557 = vld [vmem:[%s3 + $0xf8] sm:$0xff]
      %v558 = vld [vmem:[%s3 + $0x100] sm:$0xff]
      %v559 = vld [vmem:[%s3 + $0x108] sm:$0xff]
      %v560 = vld [vmem:[%s3 + $0x110] sm:$0xff]
      %v561 = vld [vmem:[%s3 + $0x118] sm:$0xff]
      %v562 = vld [vmem:[%s3 + $0x120] sm:$0xff]
      %v563 = vld [vmem:[%s3 + $0x128] sm:$0xff]
      %v564 = vld [vmem:[%s3 + $0x130] sm:$0xff]
      %v565 = vld [vmem:[%s3 + $0x138] sm:$0xff]
      %v566 = vld [vmem:[%s3 + $0x140] sm:$0xff]
      %v567 = vld [vmem:[%s3 + $0x148] sm:$0xff]
      %v568 = vld [vmem:[%s3 + $0x150] sm:$0xff]
      %v569 = vld [vmem:[%s3 + $0x158] sm:$0xff]
      %v570 = vld [vmem:[%s3 + $0x160] sm:$0xff]
      %v571 = vld [vmem:[%s3 + $0x168] sm:$0xff]
      %v572 = vld [vmem:[%s3 + $0x170] sm:$0xff]
      %v573 = vld [vmem:[%s3 + $0x178] sm:$0xff]
      %v574 = vld [vmem:[%s3 + $0x180] sm:$0xff]
      %v575 = vld [vmem:[%s3 + $0x188] sm:$0xff]
      %v576 = vld [vmem:[%s3 + $0x190] sm:$0xff]
      %v577 = vld [vmem:[%s3 + $0x198] sm:$0xff]
      %v578 = vld [vmem:[%s3 + $0x1a0] sm:$0xff]
      %v579 = vld [vmem:[%s3 + $0x1a8] sm:$0xff]
      %v580 = vld [vmem:[%s3 + $0x1b0] sm:$0xff]
      %v581 = vld [vmem:[%s3 + $0x1b8] sm:$0xff]
      %v582 = vld [vmem:[%s3 + $0x1c0] sm:$0xff]
      %v583 = vld [vmem:[%s3 + $0x1c8] sm:$0xff]
      %v584 = vld [vmem:[%s3 + $0x1d0] sm:$0xff]
      %v585 = vld [vmem:[%s3 + $0x1d8] sm:$0xff]
      %v586 = vld [vmem:[%s3 + $0x1e0] sm:$0xff]
      %v587 = vld [vmem:[%s3 + $0x1e8] sm:$0xff]
      %v588 = vld [vmem:[%s3 + $0x1f0] sm:$0xff]
      %v589 = vld [vmem:[%s3 + $0x1f8] sm:$0xff]
      %v590 = vld [vmem:[%s3 + $0x200] sm:$0xff]
      %v591 = vld [vmem:[%s3 + $0x208] sm:$0xff]
      %v592 = vld [vmem:[%s3 + $0x210] sm:$0xff]
      %v593 = vld [vmem:[%s3 + $0x218] sm:$0xff]
      %v594 = vld [vmem:[%s3 + $0x220] sm:$0xff]
      %v595 = vld [vmem:[%s3 + $0x228] sm:$0xff]
      %v596 = vld [vmem:[%s3 + $0x230] sm:$0xff]
      %v597 = vld [vmem:[%s3 + $0x238] sm:$0xff]
      %v598 = vld [vmem:[%s3 + $0x240] sm:$0xff]
      %v599 = vld [vmem:[%s3 + $0x248] sm:$0xff]
      %v600 = vld [vmem:[%s3 + $0x250] sm:$0xff]
      %v601 = vld [vmem:[%s3 + $0x258] sm:$0xff]
      %v602 = vld [vmem:[%s3 + $0x260] sm:$0xff]
      %v603 = vld [vmem:[%s3 + $0x268] sm:$0xff]
      %v604 = vld [vmem:[%s3 + $0x270] sm:$0xff]
      %v605 = vld [vmem:[%s3 + $0x278] sm:$0xff]
      %v606 = vld [vmem:[%s3 + $0x280] sm:$0xff]
      %v607 = vld [vmem:[%s3 + $0x288] sm:$0xff]
      %v608 = vld [vmem:[%s3 + $0x290] sm:$0xff]
      %v609 = vld [vmem:[%s3 + $0x298] sm:$0xff]
      %v610 = vld [vmem:[%s3 + $0x2a0] sm:$0xff]
      %v611 = vld [vmem:[%s3 + $0x2a8] sm:$0xff]
      %v612 = vld [vmem:[%s3 + $0x2b0] sm:$0xff]
      %v613 = vld [vmem:[%s3 + $0x2b8] sm:$0xff]
      %v614 = vld [vmem:[%s3 + $0x2c0] sm:$0xff]
      %v615 = vld [vmem:[%s3 + $0x2c8] sm:$0xff]
      %v616 = vld [vmem:[%s3 + $0x2d0] sm:$0xff]
      %v617 = vld [vmem:[%s3 + $0x2d8] sm:$0xff]
      %v618 = vld [vmem:[%s3 + $0x2e0] sm:$0xff]
      %v619 = vld [vmem:[%s3 + $0x2e8] sm:$0xff]
      %v620 = vld [vmem:[%s3 + $0x2f0] sm:$0xff]
      %v621 = vld [vmem:[%s3 + $0x2f8] sm:$0xff]
      %v622 = vld [vmem:[%s4] sm:$0xff]
      %v623 = vld [vmem:[%s4 + $0x8] sm:$0xf]
      %v626 = vlaneseq
      %v627 = vshrl.u32 %v626, 7
      %v628 = vsub.s32 0, %v627
      %v629 = vrot.slane %v622, %v628
      %v630 = vlaneseq
      %v631 = vshrl.u32 %v630, 7
      %v632 = vsub.s32 1, %v631
      %v633 = vrot.slane %v622, %v632
      %v634 = vlaneseq
      %v635 = vshrl.u32 %v634, 7
      %v636 = vsub.s32 2, %v635
      %v637 = vrot.slane %v622, %v636
      %v638 = vlaneseq
      %v639 = vshrl.u32 %v638, 7
      %v640 = vsub.s32 3, %v639
      %v641 = vrot.slane %v622, %v640
      %v642 = vlaneseq
      %v643 = vshrl.u32 %v642, 7
      %v644 = vsub.s32 4, %v643
      %v645 = vrot.slane %v622, %v644
      %v646 = vlaneseq
      %v647 = vshrl.u32 %v646, 7
      %v648 = vsub.s32 5, %v647
      %v649 = vrot.slane %v622, %v648
      %v650 = vlaneseq
      %v651 = vshrl.u32 %v650, 7
      %v652 = vsub.s32 6, %v651
      %v653 = vrot.slane %v622, %v652
      %v654 = vlaneseq
      %v655 = vshrl.u32 %v654, 7
      %v656 = vsub.s32 7, %v655
      %v657 = vrot.slane %v622, %v656
      %v658 = vlaneseq
      %v659 = vshrl.u32 %v658, 7
      %v660 = vsub.s32 0, %v659
      %v661 = vrot.slane %v623, %v660
      %v662 = vlaneseq
      %v663 = vshrl.u32 %v662, 7
      %v664 = vsub.s32 1, %v663
      %v665 = vrot.slane %v623, %v664
      %v666 = vlaneseq
      %v667 = vshrl.u32 %v666, 7
      %v668 = vsub.s32 2, %v667
      %v669 = vrot.slane %v623, %v668
      %v670 = vlaneseq
      %v671 = vshrl.u32 %v670, 7
      %v672 = vsub.s32 3, %v671
      %v673 = vrot.slane %v623, %v672
      %v687 = vsel %vm495, %v525, 0
      %689 = vmatprep.subr.mxu0 0.0
      %690 = vmatpush1.msra.mxu0 0.0
      %691 = vmatprep.subr.mxu0 0.0
      %692 = vmatpush1.msra.mxu0 0.0
      %693 = vmatprep.subr.mxu0 0.0
      %694 = vmatpush1.msra.mxu0 0.0
      %695 = vmatprep.subr.mxu0 0.0
      %696 = vmatpush1.msra.mxu0 0.0
      %697 = vmatprep.subr.mxu0 0.0
      %698 = vmatpush1.msra.mxu0 0.0
      %699 = vmatprep.subr.mxu0 0.0
      %700 = vmatpush1.msra.mxu0 0.0
      %701 = vmatprep.subr.mxu0 0.0
      %702 = vmatpush1.msra.mxu0 0.0
      %703 = vmatprep.subr.mxu0 0.0
      %704 = vmatpush1.msra.mxu0 0.0
      %705 = vmatprep.subr.mxu0 %v611
      %706 = vmatpush1.msra.mxu0 %v610
      %707 = vmatprep.subr.mxu0 %v599
      %708 = vmatpush1.msra.mxu0 %v598
      %709 = vmatprep.subr.mxu0 %v587
      %710 = vmatpush1.msra.mxu0 %v586
      %711 = vmatprep.subr.mxu0 %v575
      %712 = vmatpush1.msra.mxu0 %v574
      %713 = vmatprep.subr.mxu0 %v563
      %714 = vmatpush1.msra.mxu0 %v562
      %715 = vmatprep.subr.mxu0 %v551
      %716 = vmatpush1.msra.mxu0 %v550
      %717 = vmatprep.subr.mxu0 %v539
      %718 = vmatpush1.msra.mxu0 %v538
      %719 = vmatprep.subr.mxu0 %v527
      %720 = vmatpush1.msra.mxu0 %v526
      %721 = vmatprep.subr.mxu0 0.0
      %722 = vmatpush2.msra.mxu0 0.0
      %723 = vmatprep.subr.mxu0 0.0
      %724 = vmatpush2.msra.mxu0 0.0
      %725 = vmatprep.subr.mxu0 0.0
      %726 = vmatpush2.msra.mxu0 0.0
      %727 = vmatprep.subr.mxu0 0.0
      %728 = vmatpush2.msra.mxu0 0.0
      %729 = vmatprep.subr.mxu0 0.0
      %730 = vmatpush2.msra.mxu0 0.0
      %731 = vmatprep.subr.mxu0 0.0
      %732 = vmatpush2.msra.mxu0 0.0
      %733 = vmatprep.subr.mxu0 0.0
      %734 = vmatpush2.msra.mxu0 0.0
      %735 = vmatprep.subr.mxu0 0.0
      %736 = vmatpush2.msra.mxu0 0.0
      %737 = vmatprep.subr.mxu0 0.0
      %738 = vmatpush2.msra.mxu0 0.0
      %739 = vmatprep.subr.mxu0 0.0
      %740 = vmatpush2.msra.mxu0 0.0
      %741 = vmatprep.subr.mxu0 0.0
      %742 = vmatpush2.msra.mxu0 0.0
      %743 = vmatprep.subr.mxu0 0.0
      %744 = vmatpush2.msra.mxu0 0.0
      %745 = vmatprep.subr.mxu0 0.0
      %746 = vmatpush2.msra.mxu0 0.0
      %747 = vmatprep.subr.mxu0 0.0
      %748 = vmatpush2.msra.mxu0 0.0
      %749 = vmatprep.subr.mxu0 0.0
      %750 = vmatpush2.msra.mxu0 0.0
      %751 = vmatprep.subr.mxu0 0.0
      %752 = vmatpush2.msra.mxu0 0.0
      %753 = vmatprep.mubr.f32.mxu0 0.0
      %754 = vmatmul.mubr.f32.gmra.mxu0 %v687
      %v755 = vpop.f32.mrf.mxu0
      %v756 = vadd.f32 %v629, %v755
      %v757 = vpop.f32.mrf.mxu0
      %v758 = vadd.f32 %v633, %v757
      %759 = vdwg.mxu0
      %760 = vmatprep.subr.mxu0 0.0
      %761 = vmatpush1.msra.mxu0 0.0
      %762 = vmatprep.subr.mxu0 0.0
      %763 = vmatpush1.msra.mxu0 0.0
      %764 = vmatprep.subr.mxu0 0.0
      %765 = vmatpush1.msra.mxu0 0.0
      %766 = vmatprep.subr.mxu0 0.0
      %767 = vmatpush1.msra.mxu0 0.0
      %768 = vmatprep.subr.mxu0 0.0
      %769 = vmatpush1.msra.mxu0 0.0
      %770 = vmatprep.subr.mxu0 0.0
      %771 = vmatpush1.msra.mxu0 0.0
      %772 = vmatprep.subr.mxu0 0.0
      %773 = vmatpush1.msra.mxu0 0.0
      %774 = vmatprep.subr.mxu0 0.0
      %775 = vmatpush1.msra.mxu0 0.0
      %776 = vmatprep.subr.mxu0 %v613
      %777 = vmatpush1.msra.mxu0 %v612
      %778 = vmatprep.subr.mxu0 %v601
      %779 = vmatpush1.msra.mxu0 %v600
      %780 = vmatprep.subr.mxu0 %v589
      %781 = vmatpush1.msra.mxu0 %v588
      %782 = vmatprep.subr.mxu0 %v577
      %783 = vmatpush1.msra.mxu0 %v576
      %784 = vmatprep.subr.mxu0 %v565
      %785 = vmatpush1.msra.mxu0 %v564
      %786 = vmatprep.subr.mxu0 %v553
      %787 = vmatpush1.msra.mxu0 %v552
      %788 = vmatprep.subr.mxu0 %v541
      %789 = vmatpush1.msra.mxu0 %v540
      %790 = vmatprep.subr.mxu0 %v529
      %791 = vmatpush1.msra.mxu0 %v528
      %792 = vmatprep.subr.mxu0 0.0
      %793 = vmatpush2.msra.mxu0 0.0
      %794 = vmatprep.subr.mxu0 0.0
      %795 = vmatpush2.msra.mxu0 0.0
      %796 = vmatprep.subr.mxu0 0.0
      %797 = vmatpush2.msra.mxu0 0.0
      %798 = vmatprep.subr.mxu0 0.0
      %799 = vmatpush2.msra.mxu0 0.0
      %800 = vmatprep.subr.mxu0 0.0
      %801 = vmatpush2.msra.mxu0 0.0
      %802 = vmatprep.subr.mxu0 0.0
      %803 = vmatpush2.msra.mxu0 0.0
      %804 = vmatprep.subr.mxu0 0.0
      %805 = vmatpush2.msra.mxu0 0.0
      %806 = vmatprep.subr.mxu0 0.0
      %807 = vmatpush2.msra.mxu0 0.0
      %808 = vmatprep.subr.mxu0 0.0
      %809 = vmatpush2.msra.mxu0 0.0
      %810 = vmatprep.subr.mxu0 0.0
      %811 = vmatpush2.msra.mxu0 0.0
      %812 = vmatprep.subr.mxu0 0.0
      %813 = vmatpush2.msra.mxu0 0.0
      %814 = vmatprep.subr.mxu0 0.0
      %815 = vmatpush2.msra.mxu0 0.0
      %816 = vmatprep.subr.mxu0 0.0
      %817 = vmatpush2.msra.mxu0 0.0
      %818 = vmatprep.subr.mxu0 0.0
      %819 = vmatpush2.msra.mxu0 0.0
      %820 = vmatprep.subr.mxu0 0.0
      %821 = vmatpush2.msra.mxu0 0.0
      %822 = vmatprep.subr.mxu0 0.0
      %823 = vmatpush2.msra.mxu0 0.0
      %824 = vmatprep.mubr.f32.mxu0 0.0
      %825 = vmatmul.mubr.f32.gmra.mxu0 %v687
      %v826 = vpop.f32.mrf.mxu0
      %v827 = vadd.f32 %v637, %v826
      %v828 = vpop.f32.mrf.mxu0
      %v829 = vadd.f32 %v641, %v828
      %830 = vdwg.mxu0
      %831 = vmatprep.subr.mxu0 0.0
      %832 = vmatpush1.msra.mxu0 0.0
      %833 = vmatprep.subr.mxu0 0.0
      %834 = vmatpush1.msra.mxu0 0.0
      %835 = vmatprep.subr.mxu0 0.0
      %836 = vmatpush1.msra.mxu0 0.0
      %837 = vmatprep.subr.mxu0 0.0
      %838 = vmatpush1.msra.mxu0 0.0
      %839 = vmatprep.subr.mxu0 0.0
      %840 = vmatpush1.msra.mxu0 0.0
      %841 = vmatprep.subr.mxu0 0.0
      %842 = vmatpush1.msra.mxu0 0.0
      %843 = vmatprep.subr.mxu0 0.0
      %844 = vmatpush1.msra.mxu0 0.0
      %845 = vmatprep.subr.mxu0 0.0
      %846 = vmatpush1.msra.mxu0 0.0
      %847 = vmatprep.subr.mxu0 %v615
      %848 = vmatpush1.msra.mxu0 %v614
      %849 = vmatprep.subr.mxu0 %v603
      %850 = vmatpush1.msra.mxu0 %v602
      %851 = vmatprep.subr.mxu0 %v591
      %852 = vmatpush1.msra.mxu0 %v590
      %853 = vmatprep.subr.mxu0 %v579
      %854 = vmatpush1.msra.mxu0 %v578
      %855 = vmatprep.subr.mxu0 %v567
      %856 = vmatpush1.msra.mxu0 %v566
      %857 = vmatprep.subr.mxu0 %v555
      %858 = vmatpush1.msra.mxu0 %v554
      %859 = vmatprep.subr.mxu0 %v543
      %860 = vmatpush1.msra.mxu0 %v542
      %861 = vmatprep.subr.mxu0 %v531
      %862 = vmatpush1.msra.mxu0 %v530
      %863 = vmatprep.subr.mxu0 0.0
      %864 = vmatpush2.msra.mxu0 0.0
      %865 = vmatprep.subr.mxu0 0.0
      %866 = vmatpush2.msra.mxu0 0.0
      %867 = vmatprep.subr.mxu0 0.0
      %868 = vmatpush2.msra.mxu0 0.0
      %869 = vmatprep.subr.mxu0 0.0
      %870 = vmatpush2.msra.mxu0 0.0
      %871 = vmatprep.subr.mxu0 0.0
      %872 = vmatpush2.msra.mxu0 0.0
      %873 = vmatprep.subr.mxu0 0.0
      %874 = vmatpush2.msra.mxu0 0.0
      %875 = vmatprep.subr.mxu0 0.0
      %876 = vmatpush2.msra.mxu0 0.0
      %877 = vmatprep.subr.mxu0 0.0
      %878 = vmatpush2.msra.mxu0 0.0
      %879 = vmatprep.subr.mxu0 0.0
      %880 = vmatpush2.msra.mxu0 0.0
      %881 = vmatprep.subr.mxu0 0.0
      %882 = vmatpush2.msra.mxu0 0.0
      %883 = vmatprep.subr.mxu0 0.0
      %884 = vmatpush2.msra.mxu0 0.0
      %885 = vmatprep.subr.mxu0 0.0
      %886 = vmatpush2.msra.mxu0 0.0
      %887 = vmatprep.subr.mxu0 0.0
      %888 = vmatpush2.msra.mxu0 0.0
      %889 = vmatprep.subr.mxu0 0.0
      %890 = vmatpush2.msra.mxu0 0.0
      %891 = vmatprep.subr.mxu0 0.0
      %892 = vmatpush2.msra.mxu0 0.0
      %893 = vmatprep.subr.mxu0 0.0
      %894 = vmatpush2.msra.mxu0 0.0
      %895 = vmatprep.mubr.f32.mxu0 0.0
      %896 = vmatmul.mubr.f32.gmra.mxu0 %v687
      %v897 = vpop.f32.mrf.mxu0
      %v898 = vadd.f32 %v645, %v897
      %v899 = vpop.f32.mrf.mxu0
      %v900 = vadd.f32 %v649, %v899
      %901 = vdwg.mxu0
      %902 = vmatprep.subr.mxu0 0.0
      %903 = vmatpush1.msra.mxu0 0.0
      %904 = vmatprep.subr.mxu0 0.0
      %905 = vmatpush1.msra.mxu0 0.0
      %906 = vmatprep.subr.mxu0 0.0
      %907 = vmatpush1.msra.mxu0 0.0
      %908 = vmatprep.subr.mxu0 0.0
      %909 = vmatpush1.msra.mxu0 0.0
      %910 = vmatprep.subr.mxu0 0.0
      %911 = vmatpush1.msra.mxu0 0.0
      %912 = vmatprep.subr.mxu0 0.0
      %913 = vmatpush1.msra.mxu0 0.0
      %914 = vmatprep.subr.mxu0 0.0
      %915 = vmatpush1.msra.mxu0 0.0
      %916 = vmatprep.subr.mxu0 0.0
      %917 = vmatpush1.msra.mxu0 0.0
      %918 = vmatprep.subr.mxu0 %v617
      %919 = vmatpush1.msra.mxu0 %v616
      %920 = vmatprep.subr.mxu0 %v605
      %921 = vmatpush1.msra.mxu0 %v604
      %922 = vmatprep.subr.mxu0 %v593
      %923 = vmatpush1.msra.mxu0 %v592
      %924 = vmatprep.subr.mxu0 %v581
      %925 = vmatpush1.msra.mxu0 %v580
      %926 = vmatprep.subr.mxu0 %v569
      %927 = vmatpush1.msra.mxu0 %v568
      %928 = vmatprep.subr.mxu0 %v557
      %929 = vmatpush1.msra.mxu0 %v556
      %930 = vmatprep.subr.mxu0 %v545
      %931 = vmatpush1.msra.mxu0 %v544
      %932 = vmatprep.subr.mxu0 %v533
      %933 = vmatpush1.msra.mxu0 %v532
      %934 = vmatprep.subr.mxu0 0.0
      %935 = vmatpush2.msra.mxu0 0.0
      %936 = vmatprep.subr.mxu0 0.0
      %937 = vmatpush2.msra.mxu0 0.0
      %938 = vmatprep.subr.mxu0 0.0
      %939 = vmatpush2.msra.mxu0 0.0
      %940 = vmatprep.subr.mxu0 0.0
      %941 = vmatpush2.msra.mxu0 0.0
      %942 = vmatprep.subr.mxu0 0.0
      %943 = vmatpush2.msra.mxu0 0.0
      %944 = vmatprep.subr.mxu0 0.0
      %945 = vmatpush2.msra.mxu0 0.0
      %946 = vmatprep.subr.mxu0 0.0
      %947 = vmatpush2.msra.mxu0 0.0
      %948 = vmatprep.subr.mxu0 0.0
      %949 = vmatpush2.msra.mxu0 0.0
      %950 = vmatprep.subr.mxu0 0.0
      %951 = vmatpush2.msra.mxu0 0.0
      %952 = vmatprep.subr.mxu0 0.0
      %953 = vmatpush2.msra.mxu0 0.0
      %954 = vmatprep.subr.mxu0 0.0
      %955 = vmatpush2.msra.mxu0 0.0
      %956 = vmatprep.subr.mxu0 0.0
      %957 = vmatpush2.msra.mxu0 0.0
      %958 = vmatprep.subr.mxu0 0.0
      %959 = vmatpush2.msra.mxu0 0.0
      %960 = vmatprep.subr.mxu0 0.0
      %961 = vmatpush2.msra.mxu0 0.0
      %962 = vmatprep.subr.mxu0 0.0
      %963 = vmatpush2.msra.mxu0 0.0
      %964 = vmatprep.subr.mxu0 0.0
      %965 = vmatpush2.msra.mxu0 0.0
      %966 = vmatprep.mubr.f32.mxu0 0.0
      %967 = vmatmul.mubr.f32.gmra.mxu0 %v687
      %v968 = vpop.f32.mrf.mxu0
      %v969 = vadd.f32 %v653, %v968
      %v970 = vpop.f32.mrf.mxu0
      %v971 = vadd.f32 %v657, %v970
      %972 = vdwg.mxu0
      %973 = vmatprep.subr.mxu0 0.0
      %974 = vmatpush1.msra.mxu0 0.0
      %975 = vmatprep.subr.mxu0 0.0
      %976 = vmatpush1.msra.mxu0 0.0
      %977 = vmatprep.subr.mxu0 0.0
      %978 = vmatpush1.msra.mxu0 0.0
      %979 = vmatprep.subr.mxu0 0.0
      %980 = vmatpush1.msra.mxu0 0.0
      %981 = vmatprep.subr.mxu0 0.0
      %982 = vmatpush1.msra.mxu0 0.0
      %983 = vmatprep.subr.mxu0 0.0
      %984 = vmatpush1.msra.mxu0 0.0
      %985 = vmatprep.subr.mxu0 0.0
      %986 = vmatpush1.msra.mxu0 0.0
      %987 = vmatprep.subr.mxu0 0.0
      %988 = vmatpush1.msra.mxu0 0.0
      %989 = vmatprep.subr.mxu0 %v619
      %990 = vmatpush1.msra.mxu0 %v618
      %991 = vmatprep.subr.mxu0 %v607
      %992 = vmatpush1.msra.mxu0 %v606
      %993 = vmatprep.subr.mxu0 %v595
      %994 = vmatpush1.msra.mxu0 %v594
      %995 = vmatprep.subr.mxu0 %v583
      %996 = vmatpush1.msra.mxu0 %v582
      %997 = vmatprep.subr.mxu0 %v571
      %998 = vmatpush1.msra.mxu0 %v570
      %999 = vmatprep.subr.mxu0 %v559
      %1000 = vmatpush1.msra.mxu0 %v558
      %1001 = vmatprep.subr.mxu0 %v547
      %1002 = vmatpush1.msra.mxu0 %v546
      %1003 = vmatprep.subr.mxu0 %v535
      %1004 = vmatpush1.msra.mxu0 %v534
      %1005 = vmatprep.subr.mxu0 0.0
      %1006 = vmatpush2.msra.mxu0 0.0
      %1007 = vmatprep.subr.mxu0 0.0
      %1008 = vmatpush2.msra.mxu0 0.0
      %1009 = vmatprep.subr.mxu0 0.0
      %1010 = vmatpush2.msra.mxu0 0.0
      %1011 = vmatprep.subr.mxu0 0.0
      %1012 = vmatpush2.msra.mxu0 0.0
      %1013 = vmatprep.subr.mxu0 0.0
      %1014 = vmatpush2.msra.mxu0 0.0
      %1015 = vmatprep.subr.mxu0 0.0
      %1016 = vmatpush2.msra.mxu0 0.0
      %1017 = vmatprep.subr.mxu0 0.0
      %1018 = vmatpush2.msra.mxu0 0.0
      %1019 = vmatprep.subr.mxu0 0.0
      %1020 = vmatpush2.msra.mxu0 0.0
      %1021 = vmatprep.subr.mxu0 0.0
      %1022 = vmatpush2.msra.mxu0 0.0
      %1023 = vmatprep.subr.mxu0 0.0
      %1024 = vmatpush2.msra.mxu0 0.0
      %1025 = vmatprep.subr.mxu0 0.0
      %1026 = vmatpush2.msra.mxu0 0.0
      %1027 = vmatprep.subr.mxu0 0.0
      %1028 = vmatpush2.msra.mxu0 0.0
      %1029 = vmatprep.subr.mxu0 0.0
      %1030 = vmatpush2.msra.mxu0 0.0
      %1031 = vmatprep.subr.mxu0 0.0
      %1032 = vmatpush2.msra.mxu0 0.0
      %1033 = vmatprep.subr.mxu0 0.0
      %1034 = vmatpush2.msra.mxu0 0.0
      %1035 = vmatprep.subr.mxu0 0.0
      %1036 = vmatpush2.msra.mxu0 0.0
      %1037 = vmatprep.mubr.f32.mxu0 0.0
      %1038 = vmatmul.mubr.f32.gmra.mxu0 %v687
      %v1039 = vpop.f32.mrf.mxu0
      %v1040 = vadd.f32 %v661, %v1039
      %v1041 = vpop.f32.mrf.mxu0
      %v1042 = vadd.f32 %v665, %v1041
      %1043 = vdwg.mxu0
      %1044 = vmatprep.subr.mxu0 0.0
      %1045 = vmatpush1.msra.mxu0 0.0
      %1046 = vmatprep.subr.mxu0 0.0
      %1047 = vmatpush1.msra.mxu0 0.0
      %1048 = vmatprep.subr.mxu0 0.0
      %1049 = vmatpush1.msra.mxu0 0.0
      %1050 = vmatprep.subr.mxu0 0.0
      %1051 = vmatpush1.msra.mxu0 0.0
      %1052 = vmatprep.subr.mxu0 0.0
      %1053 = vmatpush1.msra.mxu0 0.0
      %1054 = vmatprep.subr.mxu0 0.0
      %1055 = vmatpush1.msra.mxu0 0.0
      %1056 = vmatprep.subr.mxu0 0.0
      %1057 = vmatpush1.msra.mxu0 0.0
      %1058 = vmatprep.subr.mxu0 0.0
      %1059 = vmatpush1.msra.mxu0 0.0
      %1060 = vmatprep.subr.mxu0 %v621
      %1061 = vmatpush1.msra.mxu0 %v620
      %1062 = vmatprep.subr.mxu0 %v609
      %1063 = vmatpush1.msra.mxu0 %v608
      %1064 = vmatprep.subr.mxu0 %v597
      %1065 = vmatpush1.msra.mxu0 %v596
      %1066 = vmatprep.subr.mxu0 %v585
      %1067 = vmatpush1.msra.mxu0 %v584
      %1068 = vmatprep.subr.mxu0 %v573
      %1069 = vmatpush1.msra.mxu0 %v572
      %1070 = vmatprep.subr.mxu0 %v561
      %1071 = vmatpush1.msra.mxu0 %v560
      %1072 = vmatprep.subr.mxu0 %v549
      %1073 = vmatpush1.msra.mxu0 %v548
      %1074 = vmatprep.subr.mxu0 %v537
      %1075 = vmatpush1.msra.mxu0 %v536
      %1076 = vmatprep.subr.mxu0 0.0
      %1077 = vmatpush2.msra.mxu0 0.0
      %1078 = vmatprep.subr.mxu0 0.0
      %1079 = vmatpush2.msra.mxu0 0.0
      %1080 = vmatprep.subr.mxu0 0.0
      %1081 = vmatpush2.msra.mxu0 0.0
      %1082 = vmatprep.subr.mxu0 0.0
      %1083 = vmatpush2.msra.mxu0 0.0
      %1084 = vmatprep.subr.mxu0 0.0
      %1085 = vmatpush2.msra.mxu0 0.0
      %1086 = vmatprep.subr.mxu0 0.0
      %1087 = vmatpush2.msra.mxu0 0.0
      %1088 = vmatprep.subr.mxu0 0.0
      %1089 = vmatpush2.msra.mxu0 0.0
      %1090 = vmatprep.subr.mxu0 0.0
      %1091 = vmatpush2.msra.mxu0 0.0
      %1092 = vmatprep.subr.mxu0 0.0
      %1093 = vmatpush2.msra.mxu0 0.0
      %1094 = vmatprep.subr.mxu0 0.0
      %1095 = vmatpush2.msra.mxu0 0.0
      %1096 = vmatprep.subr.mxu0 0.0
      %1097 = vmatpush2.msra.mxu0 0.0
      %1098 = vmatprep.subr.mxu0 0.0
      %1099 = vmatpush2.msra.mxu0 0.0
      %1100 = vmatprep.subr.mxu0 0.0
      %1101 = vmatpush2.msra.mxu0 0.0
      %1102 = vmatprep.subr.mxu0 0.0
      %1103 = vmatpush2.msra.mxu0 0.0
      %1104 = vmatprep.subr.mxu0 0.0
      %1105 = vmatpush2.msra.mxu0 0.0
      %1106 = vmatprep.subr.mxu0 0.0
      %1107 = vmatpush2.msra.mxu0 0.0
      %1108 = vmatprep.mubr.f32.mxu0 0.0
      %1109 = vmatmul.mubr.f32.gmra.mxu0 %v687
      %v1110 = vpop.f32.mrf.mxu0
      %v1111 = vadd.f32 %v669, %v1110
      %v1112 = vpop.f32.mrf.mxu0
      %v1113 = vadd.f32 %v673, %v1112
      %1114 = vdwg.mxu0
      %1115 = vmatprep.subr.mxu0 0.0
      %1116 = vmatpush1.xpose.msra.mxu0 0.0
      %1117 = vmatprep.subr.mxu0 0.0
      %1118 = vmatpush1.xpose.msra.mxu0 0.0
      %1119 = vmatprep.subr.mxu0 0.0
      %1120 = vmatpush1.xpose.msra.mxu0 0.0
      %1121 = vmatprep.subr.mxu0 0.0
      %1122 = vmatpush1.xpose.msra.mxu0 0.0
      %1123 = vmatprep.subr.mxu0 0.0
      %1124 = vmatpush1.xpose.msra.mxu0 0.0
      %1125 = vmatprep.subr.mxu0 0.0
      %1126 = vmatpush1.xpose.msra.mxu0 0.0
      %1127 = vmatprep.subr.mxu0 0.0
      %1128 = vmatpush1.xpose.msra.mxu0 0.0
      %1129 = vmatprep.subr.mxu0 0.0
      %1130 = vmatpush1.xpose.msra.mxu0 0.0
      %1131 = vmatprep.subr.mxu0 0.0
      %1132 = vmatpush1.xpose.msra.mxu0 0.0
      %1133 = vmatprep.subr.mxu0 0.0
      %1134 = vmatpush1.xpose.msra.mxu0 0.0
      %1135 = vmatprep.subr.mxu0 0.0
      %1136 = vmatpush1.xpose.msra.mxu0 0.0
      %1137 = vmatprep.subr.mxu0 0.0
      %1138 = vmatpush1.xpose.msra.mxu0 0.0
      %1139 = vmatprep.subr.mxu0 0.0
      %1140 = vmatpush1.xpose.msra.mxu0 0.0
      %1141 = vmatprep.subr.mxu0 0.0
      %1142 = vmatpush1.xpose.msra.mxu0 0.0
      %1143 = vmatprep.subr.mxu0 0.0
      %1144 = vmatpush1.xpose.msra.mxu0 0.0
      %1145 = vmatprep.subr.mxu0 0.0
      %1146 = vmatpush1.xpose.msra.mxu0 %v898
      %1147 = vmatprep.subr.mxu0 0.0
      %1148 = vmatpush2.xpose.msra.mxu0 0.0
      %1149 = vmatprep.subr.mxu0 0.0
      %1150 = vmatpush2.xpose.msra.mxu0 0.0
      %1151 = vmatprep.subr.mxu0 0.0
      %1152 = vmatpush2.xpose.msra.mxu0 0.0
      %1153 = vmatprep.subr.mxu0 0.0
      %1154 = vmatpush2.xpose.msra.mxu0 0.0
      %1155 = vmatprep.subr.mxu0 0.0
      %1156 = vmatpush2.xpose.msra.mxu0 0.0
      %1157 = vmatprep.subr.mxu0 0.0
      %1158 = vmatpush2.xpose.msra.mxu0 0.0
      %1159 = vmatprep.subr.mxu0 0.0
      %1160 = vmatpush2.xpose.msra.mxu0 0.0
      %1161 = vmatprep.subr.mxu0 0.0
      %1162 = vmatpush2.xpose.msra.mxu0 0.0
      %1163 = vmatprep.subr.mxu0 0.0
      %1164 = vmatpush2.xpose.msra.mxu0 0.0
      %1165 = vmatprep.subr.mxu0 0.0
      %1166 = vmatpush2.xpose.msra.mxu0 0.0
      %1167 = vmatprep.subr.mxu0 0.0
      %1168 = vmatpush2.xpose.msra.mxu0 0.0
      %1169 = vmatprep.subr.mxu0 0.0
      %1170 = vmatpush2.xpose.msra.mxu0 0.0
      %1171 = vmatprep.subr.mxu0 0.0
      %1172 = vmatpush2.xpose.msra.mxu0 0.0
      %1173 = vmatprep.subr.mxu0 0.0
      %1174 = vmatpush2.xpose.msra.mxu0 0.0
      %1175 = vmatprep.subr.mxu0 0.0
      %1176 = vmatpush2.xpose.msra.mxu0 0.0
      %1177 = vmatprep.subr.mxu0 0.0
      %1178 = vmatpush2.xpose.msra.mxu0 0.0
      %1179 = vmatprep.mubr.f32.mxu0 0.0
      %1180 = vmatmul.mubr.f32.gmra.mxu0 %v756
      %v1181 = vpop.f32.mrf.mxu0
      %v1182 = vadd.f32 0.0, %v1181
      %v1183 = vpop.f32.mrf.mxu0
      %1184 = vdwg.mxu0
      %vm1185 = vcmask 64512
      %v1186 = vsel %vm1185, %v1182, -inf
      %1187 = vmax.xlane.f32.xlu0 %v1186
      %v1188 = vpop.xlane.xlu0 %1187
      %v1189 = vsub.f32 %v1182, %v1188
      %v1190 = vmul.f32 %v1189, 1.442695
      %v1191 = vpow.pop %v1190
      %v1192 = vsel %vm1185, %v1191, 0.0
      %1193 = vadd.xlane.f32.xlu0 %v1192
      %v1194 = vpop.xlane.xlu0 %1193
      %v1195 = vrcp.pop %v1194
      %v1196 = vmul.f32 %v1191, %v1195
      %v1198 = vsel %vm1185, %v1196, 0
      %1200 = vmatprep.subr.mxu0 0.0
      %1201 = vmatpush1.msra.mxu0 0.0
      %1202 = vmatprep.subr.mxu0 0.0
      %1203 = vmatpush1.msra.mxu0 0.0
      %1204 = vmatprep.subr.mxu0 0.0
      %1205 = vmatpush1.msra.mxu0 0.0
      %1206 = vmatprep.subr.mxu0 0.0
      %1207 = vmatpush1.msra.mxu0 0.0
      %1208 = vmatprep.subr.mxu0 0.0
      %1209 = vmatpush1.msra.mxu0 0.0
      %1210 = vmatprep.subr.mxu0 0.0
      %1211 = vmatpush1.msra.mxu0 0.0
      %1212 = vmatprep.subr.mxu0 0.0
      %1213 = vmatpush1.msra.mxu0 0.0
      %1214 = vmatprep.subr.mxu0 0.0
      %1215 = vmatpush1.msra.mxu0 0.0
      %1216 = vmatprep.subr.mxu0 0.0
      %1217 = vmatpush1.msra.mxu0 0.0
      %1218 = vmatprep.subr.mxu0 0.0
      %1219 = vmatpush1.msra.mxu0 0.0
      %1220 = vmatprep.subr.mxu0 0.0
      %1221 = vmatpush1.msra.mxu0 0.0
      %1222 = vmatprep.subr.mxu0 0.0
      %1223 = vmatpush1.msra.mxu0 0.0
      %1224 = vmatprep.subr.mxu0 0.0
      %1225 = vmatpush1.msra.mxu0 0.0
      %1226 = vmatprep.subr.mxu0 0.0
      %1227 = vmatpush1.msra.mxu0 0.0
      %1228 = vmatprep.subr.mxu0 0.0
      %1229 = vmatpush1.msra.mxu0 0.0
      %1230 = vmatprep.subr.mxu0 0.0
      %1231 = vmatpush1.msra.mxu0 %v1040
      %1232 = vmatprep.subr.mxu0 0.0
      %1233 = vmatpush2.msra.mxu0 0.0
      %1234 = vmatprep.subr.mxu0 0.0
      %1235 = vmatpush2.msra.mxu0 0.0
      %1236 = vmatprep.subr.mxu0 0.0
      %1237 = vmatpush2.msra.mxu0 0.0
      %1238 = vmatprep.subr.mxu0 0.0
      %1239 = vmatpush2.msra.mxu0 0.0
      %1240 = vmatprep.subr.mxu0 0.0
      %1241 = vmatpush2.msra.mxu0 0.0
      %1242 = vmatprep.subr.mxu0 0.0
      %1243 = vmatpush2.msra.mxu0 0.0
      %1244 = vmatprep.subr.mxu0 0.0
      %1245 = vmatpush2.msra.mxu0 0.0
      %1246 = vmatprep.subr.mxu0 0.0
      %1247 = vmatpush2.msra.mxu0 0.0
      %1248 = vmatprep.subr.mxu0 0.0
      %1249 = vmatpush2.msra.mxu0 0.0
      %1250 = vmatprep.subr.mxu0 0.0
      %1251 = vmatpush2.msra.mxu0 0.0
      %1252 = vmatprep.subr.mxu0 0.0
      %1253 = vmatpush2.msra.mxu0 0.0
      %1254 = vmatprep.subr.mxu0 0.0
      %1255 = vmatpush2.msra.mxu0 0.0
      %1256 = vmatprep.subr.mxu0 0.0
      %1257 = vmatpush2.msra.mxu0 0.0
      %1258 = vmatprep.subr.mxu0 0.0
      %1259 = vmatpush2.msra.mxu0 0.0
      %1260 = vmatprep.subr.mxu0 0.0
      %1261 = vmatpush2.msra.mxu0 0.0
      %1262 = vmatprep.subr.mxu0 0.0
      %1263 = vmatpush2.msra.mxu0 0.0
      %1264 = vmatprep.mubr.f32.mxu0 0.0
      %1265 = vmatmul.mubr.f32.gmra.mxu0 %v1198
      %v1266 = vpop.f32.mrf.mxu0
      %v1267 = vadd.f32 0.0, %v1266
      %v1268 = vpop.f32.mrf.mxu0
      %1269 = vdwg.mxu0
      %1270 = vmatprep.subr.mxu0 0.0
      %1271 = vmatpush1.xpose.msra.mxu0 0.0
      %1272 = vmatprep.subr.mxu0 0.0
      %1273 = vmatpush1.xpose.msra.mxu0 0.0
      %1274 = vmatprep.subr.mxu0 0.0
      %1275 = vmatpush1.xpose.msra.mxu0 0.0
      %1276 = vmatprep.subr.mxu0 0.0
      %1277 = vmatpush1.xpose.msra.mxu0 0.0
      %1278 = vmatprep.subr.mxu0 0.0
      %1279 = vmatpush1.xpose.msra.mxu0 0.0
      %1280 = vmatprep.subr.mxu0 0.0
      %1281 = vmatpush1.xpose.msra.mxu0 0.0
      %1282 = vmatprep.subr.mxu0 0.0
      %1283 = vmatpush1.xpose.msra.mxu0 0.0
      %1284 = vmatprep.subr.mxu0 0.0
      %1285 = vmatpush1.xpose.msra.mxu0 0.0
      %1286 = vmatprep.subr.mxu0 0.0
      %1287 = vmatpush1.xpose.msra.mxu0 0.0
      %1288 = vmatprep.subr.mxu0 0.0
      %1289 = vmatpush1.xpose.msra.mxu0 0.0
      %1290 = vmatprep.subr.mxu0 0.0
      %1291 = vmatpush1.xpose.msra.mxu0 0.0
      %1292 = vmatprep.subr.mxu0 0.0
      %1293 = vmatpush1.xpose.msra.mxu0 0.0
      %1294 = vmatprep.subr.mxu0 0.0
      %1295 = vmatpush1.xpose.msra.mxu0 0.0
      %1296 = vmatprep.subr.mxu0 0.0
      %1297 = vmatpush1.xpose.msra.mxu0 0.0
      %1298 = vmatprep.subr.mxu0 0.0
      %1299 = vmatpush1.xpose.msra.mxu0 0.0
      %1300 = vmatprep.subr.mxu0 0.0
      %1301 = vmatpush1.xpose.msra.mxu0 %v900
      %1302 = vmatprep.subr.mxu0 0.0
      %1303 = vmatpush2.xpose.msra.mxu0 0.0
      %1304 = vmatprep.subr.mxu0 0.0
      %1305 = vmatpush2.xpose.msra.mxu0 0.0
      %1306 = vmatprep.subr.mxu0 0.0
      %1307 = vmatpush2.xpose.msra.mxu0 0.0
      %1308 = vmatprep.subr.mxu0 0.0
      %1309 = vmatpush2.xpose.msra.mxu0 0.0
      %1310 = vmatprep.subr.mxu0 0.0
      %1311 = vmatpush2.xpose.msra.mxu0 0.0
      %1312 = vmatprep.subr.mxu0 0.0
      %1313 = vmatpush2.xpose.msra.mxu0 0.0
      %1314 = vmatprep.subr.mxu0 0.0
      %1315 = vmatpush2.xpose.msra.mxu0 0.0
      %1316 = vmatprep.subr.mxu0 0.0
      %1317 = vmatpush2.xpose.msra.mxu0 0.0
      %1318 = vmatprep.subr.mxu0 0.0
      %1319 = vmatpush2.xpose.msra.mxu0 0.0
      %1320 = vmatprep.subr.mxu0 0.0
      %1321 = vmatpush2.xpose.msra.mxu0 0.0
      %1322 = vmatprep.subr.mxu0 0.0
      %1323 = vmatpush2.xpose.msra.mxu0 0.0
      %1324 = vmatprep.subr.mxu0 0.0
      %1325 = vmatpush2.xpose.msra.mxu0 0.0
      %1326 = vmatprep.subr.mxu0 0.0
      %1327 = vmatpush2.xpose.msra.mxu0 0.0
      %1328 = vmatprep.subr.mxu0 0.0
      %1329 = vmatpush2.xpose.msra.mxu0 0.0
      %1330 = vmatprep.subr.mxu0 0.0
      %1331 = vmatpush2.xpose.msra.mxu0 0.0
      %1332 = vmatprep.subr.mxu0 0.0
      %1333 = vmatpush2.xpose.msra.mxu0 0.0
      %1334 = vmatprep.mubr.f32.mxu0 0.0
      %1335 = vmatmul.mubr.f32.gmra.mxu0 %v758
      %v1336 = vpop.f32.mrf.mxu0
      %v1337 = vadd.f32 0.0, %v1336
      %v1338 = vpop.f32.mrf.mxu0
      %1339 = vdwg.mxu0
      %v1340 = vsel %vm1185, %v1337, -inf
      %1341 = vmax.xlane.f32.xlu0 %v1340
      %v1342 = vpop.xlane.xlu0 %1341
      %v1343 = vsub.f32 %v1337, %v1342
      %v1344 = vmul.f32 %v1343, 1.442695
      %v1345 = vpow.pop %v1344
      %v1346 = vsel %vm1185, %v1345, 0.0
      %1347 = vadd.xlane.f32.xlu0 %v1346
      %v1348 = vpop.xlane.xlu0 %1347
      %v1349 = vrcp.pop %v1348
      %v1350 = vmul.f32 %v1345, %v1349
      %v1352 = vsel %vm1185, %v1350, 0
      %1354 = vmatprep.subr.mxu0 0.0
      %1355 = vmatpush1.msra.mxu0 0.0
      %1356 = vmatprep.subr.mxu0 0.0
      %1357 = vmatpush1.msra.mxu0 0.0
      %1358 = vmatprep.subr.mxu0 0.0
      %1359 = vmatpush1.msra.mxu0 0.0
      %1360 = vmatprep.subr.mxu0 0.0
      %1361 = vmatpush1.msra.mxu0 0.0
      %1362 = vmatprep.subr.mxu0 0.0
      %1363 = vmatpush1.msra.mxu0 0.0
      %1364 = vmatprep.subr.mxu0 0.0
      %1365 = vmatpush1.msra.mxu0 0.0
      %1366 = vmatprep.subr.mxu0 0.0
      %1367 = vmatpush1.msra.mxu0 0.0
      %1368 = vmatprep.subr.mxu0 0.0
      %1369 = vmatpush1.msra.mxu0 0.0
      %1370 = vmatprep.subr.mxu0 0.0
      %1371 = vmatpush1.msra.mxu0 0.0
      %1372 = vmatprep.subr.mxu0 0.0
      %1373 = vmatpush1.msra.mxu0 0.0
      %1374 = vmatprep.subr.mxu0 0.0
      %1375 = vmatpush1.msra.mxu0 0.0
      %1376 = vmatprep.subr.mxu0 0.0
      %1377 = vmatpush1.msra.mxu0 0.0
      %1378 = vmatprep.subr.mxu0 0.0
      %1379 = vmatpush1.msra.mxu0 0.0
      %1380 = vmatprep.subr.mxu0 0.0
      %1381 = vmatpush1.msra.mxu0 0.0
      %1382 = vmatprep.subr.mxu0 0.0
      %1383 = vmatpush1.msra.mxu0 0.0
      %1384 = vmatprep.subr.mxu0 0.0
      %1385 = vmatpush1.msra.mxu0 %v1042
      %1386 = vmatprep.subr.mxu0 0.0
      %1387 = vmatpush2.msra.mxu0 0.0
      %1388 = vmatprep.subr.mxu0 0.0
      %1389 = vmatpush2.msra.mxu0 0.0
      %1390 = vmatprep.subr.mxu0 0.0
      %1391 = vmatpush2.msra.mxu0 0.0
      %1392 = vmatprep.subr.mxu0 0.0
      %1393 = vmatpush2.msra.mxu0 0.0
      %1394 = vmatprep.subr.mxu0 0.0
      %1395 = vmatpush2.msra.mxu0 0.0
      %1396 = vmatprep.subr.mxu0 0.0
      %1397 = vmatpush2.msra.mxu0 0.0
      %1398 = vmatprep.subr.mxu0 0.0
      %1399 = vmatpush2.msra.mxu0 0.0
      %1400 = vmatprep.subr.mxu0 0.0
      %1401 = vmatpush2.msra.mxu0 0.0
      %1402 = vmatprep.subr.mxu0 0.0
      %1403 = vmatpush2.msra.mxu0 0.0
      %1404 = vmatprep.subr.mxu0 0.0
      %1405 = vmatpush2.msra.mxu0 0.0
      %1406 = vmatprep.subr.mxu0 0.0
      %1407 = vmatpush2.msra.mxu0 0.0
      %1408 = vmatprep.subr.mxu0 0.0
      %1409 = vmatpush2.msra.mxu0 0.0
      %1410 = vmatprep.subr.mxu0 0.0
      %1411 = vmatpush2.msra.mxu0 0.0
      %1412 = vmatprep.subr.mxu0 0.0
      %1413 = vmatpush2.msra.mxu0 0.0
      %1414 = vmatprep.subr.mxu0 0.0
      %1415 = vmatpush2.msra.mxu0 0.0
      %1416 = vmatprep.subr.mxu0 0.0
      %1417 = vmatpush2.msra.mxu0 0.0
      %1418 = vmatprep.mubr.f32.mxu0 0.0
      %1419 = vmatmul.mubr.f32.gmra.mxu0 %v1352
      %v1420 = vpop.f32.mrf.mxu0
      %v1421 = vadd.f32 0.0, %v1420
      %v1422 = vpop.f32.mrf.mxu0
      %1423 = vdwg.mxu0
      %1424 = vmatprep.subr.mxu0 0.0
      %1425 = vmatpush1.xpose.msra.mxu0 0.0
      %1426 = vmatprep.subr.mxu0 0.0
      %1427 = vmatpush1.xpose.msra.mxu0 0.0
      %1428 = vmatprep.subr.mxu0 0.0
      %1429 = vmatpush1.xpose.msra.mxu0 0.0
      %1430 = vmatprep.subr.mxu0 0.0
      %1431 = vmatpush1.xpose.msra.mxu0 0.0
      %1432 = vmatprep.subr.mxu0 0.0
      %1433 = vmatpush1.xpose.msra.mxu0 0.0
      %1434 = vmatprep.subr.mxu0 0.0
      %1435 = vmatpush1.xpose.msra.mxu0 0.0
      %1436 = vmatprep.subr.mxu0 0.0
      %1437 = vmatpush1.xpose.msra.mxu0 0.0
      %1438 = vmatprep.subr.mxu0 0.0
      %1439 = vmatpush1.xpose.msra.mxu0 0.0
      %1440 = vmatprep.subr.mxu0 0.0
      %1441 = vmatpush1.xpose.msra.mxu0 0.0
      %1442 = vmatprep.subr.mxu0 0.0
      %1443 = vmatpush1.xpose.msra.mxu0 0.0
      %1444 = vmatprep.subr.mxu0 0.0
      %1445 = vmatpush1.xpose.msra.mxu0 0.0
      %1446 = vmatprep.subr.mxu0 0.0
      %1447 = vmatpush1.xpose.msra.mxu0 0.0
      %1448 = vmatprep.subr.mxu0 0.0
      %1449 = vmatpush1.xpose.msra.mxu0 0.0
      %1450 = vmatprep.subr.mxu0 0.0
      %1451 = vmatpush1.xpose.msra.mxu0 0.0
      %1452 = vmatprep.subr.mxu0 0.0
      %1453 = vmatpush1.xpose.msra.mxu0 0.0
      %1454 = vmatprep.subr.mxu0 0.0
      %1455 = vmatpush1.xpose.msra.mxu0 %v969
      %1456 = vmatprep.subr.mxu0 0.0
      %1457 = vmatpush2.xpose.msra.mxu0 0.0
      %1458 = vmatprep.subr.mxu0 0.0
      %1459 = vmatpush2.xpose.msra.mxu0 0.0
      %1460 = vmatprep.subr.mxu0 0.0
      %1461 = vmatpush2.xpose.msra.mxu0 0.0
      %1462 = vmatprep.subr.mxu0 0.0
      %1463 = vmatpush2.xpose.msra.mxu0 0.0
      %1464 = vmatprep.subr.mxu0 0.0
      %1465 = vmatpush2.xpose.msra.mxu0 0.0
      %1466 = vmatprep.subr.mxu0 0.0
      %1467 = vmatpush2.xpose.msra.mxu0 0.0
      %1468 = vmatprep.subr.mxu0 0.0
      %1469 = vmatpush2.xpose.msra.mxu0 0.0
      %1470 = vmatprep.subr.mxu0 0.0
      %1471 = vmatpush2.xpose.msra.mxu0 0.0
      %1472 = vmatprep.subr.mxu0 0.0
      %1473 = vmatpush2.xpose.msra.mxu0 0.0
      %1474 = vmatprep.subr.mxu0 0.0
      %1475 = vmatpush2.xpose.msra.mxu0 0.0
      %1476 = vmatprep.subr.mxu0 0.0
      %1477 = vmatpush2.xpose.msra.mxu0 0.0
      %1478 = vmatprep.subr.mxu0 0.0
      %1479 = vmatpush2.xpose.msra.mxu0 0.0
      %1480 = vmatprep.subr.mxu0 0.0
      %1481 = vmatpush2.xpose.msra.mxu0 0.0
      %1482 = vmatprep.subr.mxu0 0.0
      %1483 = vmatpush2.xpose.msra.mxu0 0.0
      %1484 = vmatprep.subr.mxu0 0.0
      %1485 = vmatpush2.xpose.msra.mxu0 0.0
      %1486 = vmatprep.subr.mxu0 0.0
      %1487 = vmatpush2.xpose.msra.mxu0 0.0
      %1488 = vmatprep.mubr.f32.mxu0 0.0
      %1489 = vmatmul.mubr.f32.gmra.mxu0 %v827
      %v1490 = vpop.f32.mrf.mxu0
      %v1491 = vadd.f32 0.0, %v1490
      %v1492 = vpop.f32.mrf.mxu0
      %1493 = vdwg.mxu0
      %v1494 = vsel %vm1185, %v1491, -inf
      %1495 = vmax.xlane.f32.xlu0 %v1494
      %v1496 = vpop.xlane.xlu0 %1495
      %v1497 = vsub.f32 %v1491, %v1496
      %v1498 = vmul.f32 %v1497, 1.442695
      %v1499 = vpow.pop %v1498
      %v1500 = vsel %vm1185, %v1499, 0.0
      %1501 = vadd.xlane.f32.xlu0 %v1500
      %v1502 = vpop.xlane.xlu0 %1501
      %v1503 = vrcp.pop %v1502
      %v1504 = vmul.f32 %v1499, %v1503
      %v1506 = vsel %vm1185, %v1504, 0
      %1508 = vmatprep.subr.mxu0 0.0
      %1509 = vmatpush1.msra.mxu0 0.0
      %1510 = vmatprep.subr.mxu0 0.0
      %1511 = vmatpush1.msra.mxu0 0.0
      %1512 = vmatprep.subr.mxu0 0.0
      %1513 = vmatpush1.msra.mxu0 0.0
      %1514 = vmatprep.subr.mxu0 0.0
      %1515 = vmatpush1.msra.mxu0 0.0
      %1516 = vmatprep.subr.mxu0 0.0
      %1517 = vmatpush1.msra.mxu0 0.0
      %1518 = vmatprep.subr.mxu0 0.0
      %1519 = vmatpush1.msra.mxu0 0.0
      %1520 = vmatprep.subr.mxu0 0.0
      %1521 = vmatpush1.msra.mxu0 0.0
      %1522 = vmatprep.subr.mxu0 0.0
      %1523 = vmatpush1.msra.mxu0 0.0
      %1524 = vmatprep.subr.mxu0 0.0
      %1525 = vmatpush1.msra.mxu0 0.0
      %1526 = vmatprep.subr.mxu0 0.0
      %1527 = vmatpush1.msra.mxu0 0.0
      %1528 = vmatprep.subr.mxu0 0.0
      %1529 = vmatpush1.msra.mxu0 0.0
      %1530 = vmatprep.subr.mxu0 0.0
      %1531 = vmatpush1.msra.mxu0 0.0
      %1532 = vmatprep.subr.mxu0 0.0
      %1533 = vmatpush1.msra.mxu0 0.0
      %1534 = vmatprep.subr.mxu0 0.0
      %1535 = vmatpush1.msra.mxu0 0.0
      %1536 = vmatprep.subr.mxu0 0.0
      %1537 = vmatpush1.msra.mxu0 0.0
      %1538 = vmatprep.subr.mxu0 0.0
      %1539 = vmatpush1.msra.mxu0 %v1111
      %1540 = vmatprep.subr.mxu0 0.0
      %1541 = vmatpush2.msra.mxu0 0.0
      %1542 = vmatprep.subr.mxu0 0.0
      %1543 = vmatpush2.msra.mxu0 0.0
      %1544 = vmatprep.subr.mxu0 0.0
      %1545 = vmatpush2.msra.mxu0 0.0
      %1546 = vmatprep.subr.mxu0 0.0
      %1547 = vmatpush2.msra.mxu0 0.0
      %1548 = vmatprep.subr.mxu0 0.0
      %1549 = vmatpush2.msra.mxu0 0.0
      %1550 = vmatprep.subr.mxu0 0.0
      %1551 = vmatpush2.msra.mxu0 0.0
      %1552 = vmatprep.subr.mxu0 0.0
      %1553 = vmatpush2.msra.mxu0 0.0
      %1554 = vmatprep.subr.mxu0 0.0
      %1555 = vmatpush2.msra.mxu0 0.0
      %1556 = vmatprep.subr.mxu0 0.0
      %1557 = vmatpush2.msra.mxu0 0.0
      %1558 = vmatprep.subr.mxu0 0.0
      %1559 = vmatpush2.msra.mxu0 0.0
      %1560 = vmatprep.subr.mxu0 0.0
      %1561 = vmatpush2.msra.mxu0 0.0
      %1562 = vmatprep.subr.mxu0 0.0
      %1563 = vmatpush2.msra.mxu0 0.0
      %1564 = vmatprep.subr.mxu0 0.0
      %1565 = vmatpush2.msra.mxu0 0.0
      %1566 = vmatprep.subr.mxu0 0.0
      %1567 = vmatpush2.msra.mxu0 0.0
      %1568 = vmatprep.subr.mxu0 0.0
      %1569 = vmatpush2.msra.mxu0 0.0
      %1570 = vmatprep.subr.mxu0 0.0
      %1571 = vmatpush2.msra.mxu0 0.0
      %1572 = vmatprep.mubr.f32.mxu0 0.0
      %1573 = vmatmul.mubr.f32.gmra.mxu0 %v1506
      %v1574 = vpop.f32.mrf.mxu0
      %v1575 = vadd.f32 0.0, %v1574
      %v1576 = vpop.f32.mrf.mxu0
      %1577 = vdwg.mxu0
      %1578 = vmatprep.subr.mxu0 0.0
      %1579 = vmatpush1.xpose.msra.mxu0 0.0
      %1580 = vmatprep.subr.mxu0 0.0
      %1581 = vmatpush1.xpose.msra.mxu0 0.0
      %1582 = vmatprep.subr.mxu0 0.0
      %1583 = vmatpush1.xpose.msra.mxu0 0.0
      %1584 = vmatprep.subr.mxu0 0.0
      %1585 = vmatpush1.xpose.msra.mxu0 0.0
      %1586 = vmatprep.subr.mxu0 0.0
      %1587 = vmatpush1.xpose.msra.mxu0 0.0
      %1588 = vmatprep.subr.mxu0 0.0
      %1589 = vmatpush1.xpose.msra.mxu0 0.0
      %1590 = vmatprep.subr.mxu0 0.0
      %1591 = vmatpush1.xpose.msra.mxu0 0.0
      %1592 = vmatprep.subr.mxu0 0.0
      %1593 = vmatpush1.xpose.msra.mxu0 0.0
      %1594 = vmatprep.subr.mxu0 0.0
      %1595 = vmatpush1.xpose.msra.mxu0 0.0
      %1596 = vmatprep.subr.mxu0 0.0
      %1597 = vmatpush1.xpose.msra.mxu0 0.0
      %1598 = vmatprep.subr.mxu0 0.0
      %1599 = vmatpush1.xpose.msra.mxu0 0.0
      %1600 = vmatprep.subr.mxu0 0.0
      %1601 = vmatpush1.xpose.msra.mxu0 0.0
      %1602 = vmatprep.subr.mxu0 0.0
      %1603 = vmatpush1.xpose.msra.mxu0 0.0
      %1604 = vmatprep.subr.mxu0 0.0
      %1605 = vmatpush1.xpose.msra.mxu0 0.0
      %1606 = vmatprep.subr.mxu0 0.0
      %1607 = vmatpush1.xpose.msra.mxu0 0.0
      %1608 = vmatprep.subr.mxu0 0.0
      %1609 = vmatpush1.xpose.msra.mxu0 %v971
      %1610 = vmatprep.subr.mxu0 0.0
      %1611 = vmatpush2.xpose.msra.mxu0 0.0
      %1612 = vmatprep.subr.mxu0 0.0
      %1613 = vmatpush2.xpose.msra.mxu0 0.0
      %1614 = vmatprep.subr.mxu0 0.0
      %1615 = vmatpush2.xpose.msra.mxu0 0.0
      %1616 = vmatprep.subr.mxu0 0.0
      %1617 = vmatpush2.xpose.msra.mxu0 0.0
      %1618 = vmatprep.subr.mxu0 0.0
      %1619 = vmatpush2.xpose.msra.mxu0 0.0
      %1620 = vmatprep.subr.mxu0 0.0
      %1621 = vmatpush2.xpose.msra.mxu0 0.0
      %1622 = vmatprep.subr.mxu0 0.0
      %1623 = vmatpush2.xpose.msra.mxu0 0.0
      %1624 = vmatprep.subr.mxu0 0.0
      %1625 = vmatpush2.xpose.msra.mxu0 0.0
      %1626 = vmatprep.subr.mxu0 0.0
      %1627 = vmatpush2.xpose.msra.mxu0 0.0
      %1628 = vmatprep.subr.mxu0 0.0
      %1629 = vmatpush2.xpose.msra.mxu0 0.0
      %1630 = vmatprep.subr.mxu0 0.0
      %1631 = vmatpush2.xpose.msra.mxu0 0.0
      %1632 = vmatprep.subr.mxu0 0.0
      %1633 = vmatpush2.xpose.msra.mxu0 0.0
      %1634 = vmatprep.subr.mxu0 0.0
      %1635 = vmatpush2.xpose.msra.mxu0 0.0
      %1636 = vmatprep.subr.mxu0 0.0
      %1637 = vmatpush2.xpose.msra.mxu0 0.0
      %1638 = vmatprep.subr.mxu0 0.0
      %1639 = vmatpush2.xpose.msra.mxu0 0.0
      %1640 = vmatprep.subr.mxu0 0.0
      %1641 = vmatpush2.xpose.msra.mxu0 0.0
      %1642 = vmatprep.mubr.f32.mxu0 0.0
      %1643 = vmatmul.mubr.f32.gmra.mxu0 %v829
      %v1644 = vpop.f32.mrf.mxu0
      %v1645 = vadd.f32 0.0, %v1644
      %v1646 = vpop.f32.mrf.mxu0
      %1647 = vdwg.mxu0
      %v1648 = vsel %vm1185, %v1645, -inf
      %1649 = vmax.xlane.f32.xlu0 %v1648
      %v1650 = vpop.xlane.xlu0 %1649
      %v1651 = vsub.f32 %v1645, %v1650
      %v1652 = vmul.f32 %v1651, 1.442695
      %v1653 = vpow.pop %v1652
      %v1654 = vsel %vm1185, %v1653, 0.0
      %1655 = vadd.xlane.f32.xlu0 %v1654
      %v1656 = vpop.xlane.xlu0 %1655
      %v1657 = vrcp.pop %v1656
      %v1658 = vmul.f32 %v1653, %v1657
      %v1660 = vsel %vm1185, %v1658, 0
      %1662 = vmatprep.subr.mxu0 0.0
      %1663 = vmatpush1.msra.mxu0 0.0
      %1664 = vmatprep.subr.mxu0 0.0
      %1665 = vmatpush1.msra.mxu0 0.0
      %1666 = vmatprep.subr.mxu0 0.0
      %1667 = vmatpush1.msra.mxu0 0.0
      %1668 = vmatprep.subr.mxu0 0.0
      %1669 = vmatpush1.msra.mxu0 0.0
      %1670 = vmatprep.subr.mxu0 0.0
      %1671 = vmatpush1.msra.mxu0 0.0
      %1672 = vmatprep.subr.mxu0 0.0
      %1673 = vmatpush1.msra.mxu0 0.0
      %1674 = vmatprep.subr.mxu0 0.0
      %1675 = vmatpush1.msra.mxu0 0.0
      %1676 = vmatprep.subr.mxu0 0.0
      %1677 = vmatpush1.msra.mxu0 0.0
      %1678 = vmatprep.subr.mxu0 0.0
      %1679 = vmatpush1.msra.mxu0 0.0
      %1680 = vmatprep.subr.mxu0 0.0
      %1681 = vmatpush1.msra.mxu0 0.0
      %1682 = vmatprep.subr.mxu0 0.0
      %1683 = vmatpush1.msra.mxu0 0.0
      %1684 = vmatprep.subr.mxu0 0.0
      %1685 = vmatpush1.msra.mxu0 0.0
      %1686 = vmatprep.subr.mxu0 0.0
      %1687 = vmatpush1.msra.mxu0 0.0
      %1688 = vmatprep.subr.mxu0 0.0
      %1689 = vmatpush1.msra.mxu0 0.0
      %1690 = vmatprep.subr.mxu0 0.0
      %1691 = vmatpush1.msra.mxu0 0.0
      %1692 = vmatprep.subr.mxu0 0.0
      %1693 = vmatpush1.msra.mxu0 %v1113
      %1694 = vmatprep.subr.mxu0 0.0
      %1695 = vmatpush2.msra.mxu0 0.0
      %1696 = vmatprep.subr.mxu0 0.0
      %1697 = vmatpush2.msra.mxu0 0.0
      %1698 = vmatprep.subr.mxu0 0.0
      %1699 = vmatpush2.msra.mxu0 0.0
      %1700 = vmatprep.subr.mxu0 0.0
      %1701 = vmatpush2.msra.mxu0 0.0
      %1702 = vmatprep.subr.mxu0 0.0
      %1703 = vmatpush2.msra.mxu0 0.0
      %1704 = vmatprep.subr.mxu0 0.0
      %1705 = vmatpush2.msra.mxu0 0.0
      %1706 = vmatprep.subr.mxu0 0.0
      %1707 = vmatpush2.msra.mxu0 0.0
      %1708 = vmatprep.subr.mxu0 0.0
      %1709 = vmatpush2.msra.mxu0 0.0
      %1710 = vmatprep.subr.mxu0 0.0
      %1711 = vmatpush2.msra.mxu0 0.0
      %1712 = vmatprep.subr.mxu0 0.0
      %1713 = vmatpush2.msra.mxu0 0.0
      %1714 = vmatprep.subr.mxu0 0.0
      %1715 = vmatpush2.msra.mxu0 0.0
      %1716 = vmatprep.subr.mxu0 0.0
      %1717 = vmatpush2.msra.mxu0 0.0
      %1718 = vmatprep.subr.mxu0 0.0
      %1719 = vmatpush2.msra.mxu0 0.0
      %1720 = vmatprep.subr.mxu0 0.0
      %1721 = vmatpush2.msra.mxu0 0.0
      %1722 = vmatprep.subr.mxu0 0.0
      %1723 = vmatpush2.msra.mxu0 0.0
      %1724 = vmatprep.subr.mxu0 0.0
      %1725 = vmatpush2.msra.mxu0 0.0
      %1726 = vmatprep.mubr.f32.mxu0 0.0
      %1727 = vmatmul.mubr.f32.gmra.mxu0 %v1660
      %v1728 = vpop.f32.mrf.mxu0
      %v1729 = vadd.f32 0.0, %v1728
      %v1730 = vpop.f32.mrf.mxu0
      %1731 = vdwg.mxu0
      %v1732 = vld [vmem:[%s5] sm:$0xff]
      %v1733 = vld [vmem:[%s5 + $0x8] sm:$0xff]
      %v1734 = vld [vmem:[%s5 + $0x10] sm:$0xff]
      %v1735 = vld [vmem:[%s5 + $0x18] sm:$0xff]
      %v1736 = vld [vmem:[%s5 + $0x20] sm:$0xff]
      %v1737 = vld [vmem:[%s5 + $0x28] sm:$0xff]
      %v1738 = vld [vmem:[%s5 + $0x30] sm:$0xff]
      %v1739 = vld [vmem:[%s5 + $0x38] sm:$0xff]
      %v1740 = vld [vmem:[%s5 + $0x40] sm:$0xff]
      %v1741 = vld [vmem:[%s5 + $0x48] sm:$0xff]
      %v1742 = vld [vmem:[%s5 + $0x50] sm:$0xff]
      %v1743 = vld [vmem:[%s5 + $0x58] sm:$0xff]
      %v1744 = vld [vmem:[%s5 + $0x60] sm:$0xff]
      %v1745 = vld [vmem:[%s5 + $0x68] sm:$0xff]
      %v1746 = vld [vmem:[%s5 + $0x70] sm:$0xff]
      %v1747 = vld [vmem:[%s5 + $0x78] sm:$0xff]
      %v1748 = vld [vmem:[%s5 + $0x80] sm:$0xff]
      %v1749 = vld [vmem:[%s5 + $0x88] sm:$0xff]
      %v1750 = vld [vmem:[%s5 + $0x90] sm:$0xff]
      %v1751 = vld [vmem:[%s5 + $0x98] sm:$0xff]
      %v1752 = vld [vmem:[%s5 + $0xa0] sm:$0xff]
      %v1753 = vld [vmem:[%s5 + $0xa8] sm:$0xff]
      %v1754 = vld [vmem:[%s5 + $0xb0] sm:$0xff]
      %v1755 = vld [vmem:[%s5 + $0xb8] sm:$0xff]
      %v1756 = vld [vmem:[%s5 + $0xc0] sm:$0xff]
      %v1757 = vld [vmem:[%s5 + $0xc8] sm:$0xff]
      %v1758 = vld [vmem:[%s5 + $0xd0] sm:$0xff]
      %v1759 = vld [vmem:[%s5 + $0xd8] sm:$0xff]
      %v1760 = vld [vmem:[%s5 + $0xe0] sm:$0xff]
      %v1761 = vld [vmem:[%s5 + $0xe8] sm:$0xff]
      %v1762 = vld [vmem:[%s5 + $0xf0] sm:$0xff]
      %v1763 = vld [vmem:[%s5 + $0xf8] sm:$0xff]
      %v1764 = vld [vmem:[%s5 + $0x100] sm:$0xff]
      %v1765 = vld [vmem:[%s5 + $0x108] sm:$0xff]
      %v1766 = vld [vmem:[%s5 + $0x110] sm:$0xff]
      %v1767 = vld [vmem:[%s5 + $0x118] sm:$0xff]
      %v1768 = vld [vmem:[%s5 + $0x120] sm:$0xff]
      %v1769 = vld [vmem:[%s5 + $0x128] sm:$0xff]
      %v1770 = vld [vmem:[%s5 + $0x130] sm:$0xff]
      %v1771 = vld [vmem:[%s5 + $0x138] sm:$0xff]
      %v1772 = vld [vmem:[%s5 + $0x140] sm:$0xff]
      %v1773 = vld [vmem:[%s5 + $0x148] sm:$0xff]
      %v1774 = vld [vmem:[%s5 + $0x150] sm:$0xff]
      %v1775 = vld [vmem:[%s5 + $0x158] sm:$0xff]
      %v1776 = vld [vmem:[%s5 + $0x160] sm:$0xff]
      %v1777 = vld [vmem:[%s5 + $0x168] sm:$0xff]
      %v1778 = vld [vmem:[%s5 + $0x170] sm:$0xff]
      %v1779 = vld [vmem:[%s5 + $0x178] sm:$0xff]
      %v1780 = vld [vmem:[%s5 + $0x180] sm:$0xff]
      %v1781 = vld [vmem:[%s5 + $0x188] sm:$0xff]
      %v1782 = vld [vmem:[%s5 + $0x190] sm:$0xff]
      %v1783 = vld [vmem:[%s5 + $0x198] sm:$0xff]
      %v1784 = vld [vmem:[%s5 + $0x1a0] sm:$0xff]
      %v1785 = vld [vmem:[%s5 + $0x1a8] sm:$0xff]
      %v1786 = vld [vmem:[%s5 + $0x1b0] sm:$0xff]
      %v1787 = vld [vmem:[%s5 + $0x1b8] sm:$0xff]
      %v1788 = vld [vmem:[%s5 + $0x1c0] sm:$0xff]
      %v1789 = vld [vmem:[%s5 + $0x1c8] sm:$0xff]
      %v1790 = vld [vmem:[%s5 + $0x1d0] sm:$0xff]
      %v1791 = vld [vmem:[%s5 + $0x1d8] sm:$0xff]
      %v1792 = vld [vmem:[%s5 + $0x1e0] sm:$0xff]
      %v1793 = vld [vmem:[%s5 + $0x1e8] sm:$0xff]
      %v1794 = vld [vmem:[%s5 + $0x1f0] sm:$0xff]
      %v1795 = vld [vmem:[%s5 + $0x1f8] sm:$0xff]
      %v1796 = vld [vmem:[%s6] sm:$0x1]
      %v1798 = vlaneseq
      %v1799 = vshrl.u32 %v1798, 7
      %v1800 = vsub.s32 0, %v1799
      %v1801 = vrot.slane %v1796, %v1800
      %1803 = vmatprep.subr.mxu0 0.0
      %1804 = vmatpush1.msra.mxu0 %v1747
      %1805 = vmatprep.subr.mxu0 0.0
      %1806 = vmatpush1.msra.mxu0 %v1746
      %1807 = vmatprep.subr.mxu0 0.0
      %1808 = vmatpush1.msra.mxu0 %v1745
      %1809 = vmatprep.subr.mxu0 0.0
      %1810 = vmatpush1.msra.mxu0 %v1744
      %1811 = vmatprep.subr.mxu0 0.0
      %1812 = vmatpush1.msra.mxu0 %v1743
      %1813 = vmatprep.subr.mxu0 0.0
      %1814 = vmatpush1.msra.mxu0 %v1742
      %1815 = vmatprep.subr.mxu0 0.0
      %1816 = vmatpush1.msra.mxu0 %v1741
      %1817 = vmatprep.subr.mxu0 0.0
      %1818 = vmatpush1.msra.mxu0 %v1740
      %1819 = vmatprep.subr.mxu0 0.0
      %1820 = vmatpush1.msra.mxu0 %v1739
      %1821 = vmatprep.subr.mxu0 0.0
      %1822 = vmatpush1.msra.mxu0 %v1738
      %1823 = vmatprep.subr.mxu0 0.0
      %1824 = vmatpush1.msra.mxu0 %v1737
      %1825 = vmatprep.subr.mxu0 0.0
      %1826 = vmatpush1.msra.mxu0 %v1736
      %1827 = vmatprep.subr.mxu0 0.0
      %1828 = vmatpush1.msra.mxu0 %v1735
      %1829 = vmatprep.subr.mxu0 0.0
      %1830 = vmatpush1.msra.mxu0 %v1734
      %1831 = vmatprep.subr.mxu0 0.0
      %1832 = vmatpush1.msra.mxu0 %v1733
      %1833 = vmatprep.subr.mxu0 0.0
      %1834 = vmatpush1.msra.mxu0 %v1732
      %1835 = vmatprep.subr.mxu0 0.0
      %1836 = vmatpush2.msra.mxu0 %v1763
      %1837 = vmatprep.subr.mxu0 0.0
      %1838 = vmatpush2.msra.mxu0 %v1762
      %1839 = vmatprep.subr.mxu0 0.0
      %1840 = vmatpush2.msra.mxu0 %v1761
      %1841 = vmatprep.subr.mxu0 0.0
      %1842 = vmatpush2.msra.mxu0 %v1760
      %1843 = vmatprep.subr.mxu0 0.0
      %1844 = vmatpush2.msra.mxu0 %v1759
      %1845 = vmatprep.subr.mxu0 0.0
      %1846 = vmatpush2.msra.mxu0 %v1758
      %1847 = vmatprep.subr.mxu0 0.0
      %1848 = vmatpush2.msra.mxu0 %v1757
      %1849 = vmatprep.subr.mxu0 0.0
      %1850 = vmatpush2.msra.mxu0 %v1756
      %1851 = vmatprep.subr.mxu0 0.0
      %1852 = vmatpush2.msra.mxu0 %v1755
      %1853 = vmatprep.subr.mxu0 0.0
      %1854 = vmatpush2.msra.mxu0 %v1754
      %1855 = vmatprep.subr.mxu0 0.0
      %1856 = vmatpush2.msra.mxu0 %v1753
      %1857 = vmatprep.subr.mxu0 0.0
      %1858 = vmatpush2.msra.mxu0 %v1752
      %1859 = vmatprep.subr.mxu0 0.0
      %1860 = vmatpush2.msra.mxu0 %v1751
      %1861 = vmatprep.subr.mxu0 0.0
      %1862 = vmatpush2.msra.mxu0 %v1750
      %1863 = vmatprep.subr.mxu0 0.0
      %1864 = vmatpush2.msra.mxu0 %v1749
      %1865 = vmatprep.subr.mxu0 0.0
      %1866 = vmatpush2.msra.mxu0 %v1748
      %1867 = vmatprep.mubr.f32.mxu0 %v1421
      %1868 = vmatmul.mubr.f32.gmra.mxu0 %v1267
      %v1869 = vpop.f32.mrf.mxu0
      %v1870 = vadd.f32 %v1801, %v1869
      %v1871 = vpop.f32.mrf.mxu0
      %1872 = vdwg.mxu0
      %1873 = vmatprep.subr.mxu0 0.0
      %1874 = vmatpush1.msra.mxu0 %v1779
      %1875 = vmatprep.subr.mxu0 0.0
      %1876 = vmatpush1.msra.mxu0 %v1778
      %1877 = vmatprep.subr.mxu0 0.0
      %1878 = vmatpush1.msra.mxu0 %v1777
      %1879 = vmatprep.subr.mxu0 0.0
      %1880 = vmatpush1.msra.mxu0 %v1776
      %1881 = vmatprep.subr.mxu0 0.0
      %1882 = vmatpush1.msra.mxu0 %v1775
      %1883 = vmatprep.subr.mxu0 0.0
      %1884 = vmatpush1.msra.mxu0 %v1774
      %1885 = vmatprep.subr.mxu0 0.0
      %1886 = vmatpush1.msra.mxu0 %v1773
      %1887 = vmatprep.subr.mxu0 0.0
      %1888 = vmatpush1.msra.mxu0 %v1772
      %1889 = vmatprep.subr.mxu0 0.0
      %1890 = vmatpush1.msra.mxu0 %v1771
      %1891 = vmatprep.subr.mxu0 0.0
      %1892 = vmatpush1.msra.mxu0 %v1770
      %1893 = vmatprep.subr.mxu0 0.0
      %1894 = vmatpush1.msra.mxu0 %v1769
      %1895 = vmatprep.subr.mxu0 0.0
      %1896 = vmatpush1.msra.mxu0 %v1768
      %1897 = vmatprep.subr.mxu0 0.0
      %1898 = vmatpush1.msra.mxu0 %v1767
      %1899 = vmatprep.subr.mxu0 0.0
      %1900 = vmatpush1.msra.mxu0 %v1766
      %1901 = vmatprep.subr.mxu0 0.0
      %1902 = vmatpush1.msra.mxu0 %v1765
      %1903 = vmatprep.subr.mxu0 0.0
      %1904 = vmatpush1.msra.mxu0 %v1764
      %1905 = vmatprep.subr.mxu0 0.0
      %1906 = vmatpush2.msra.mxu0 %v1795
      %1907 = vmatprep.subr.mxu0 0.0
      %1908 = vmatpush2.msra.mxu0 %v1794
      %1909 = vmatprep.subr.mxu0 0.0
      %1910 = vmatpush2.msra.mxu0 %v1793
      %1911 = vmatprep.subr.mxu0 0.0
      %1912 = vmatpush2.msra.mxu0 %v1792
      %1913 = vmatprep.subr.mxu0 0.0
      %1914 = vmatpush2.msra.mxu0 %v1791
      %1915 = vmatprep.subr.mxu0 0.0
      %1916 = vmatpush2.msra.mxu0 %v1790
      %1917 = vmatprep.subr.mxu0 0.0
      %1918 = vmatpush2.msra.mxu0 %v1789
      %1919 = vmatprep.subr.mxu0 0.0
      %1920 = vmatpush2.msra.mxu0 %v1788
      %1921 = vmatprep.subr.mxu0 0.0
      %1922 = vmatpush2.msra.mxu0 %v1787
      %1923 = vmatprep.subr.mxu0 0.0
      %1924 = vmatpush2.msra.mxu0 %v1786
      %1925 = vmatprep.subr.mxu0 0.0
      %1926 = vmatpush2.msra.mxu0 %v1785
      %1927 = vmatprep.subr.mxu0 0.0
      %1928 = vmatpush2.msra.mxu0 %v1784
      %1929 = vmatprep.subr.mxu0 0.0
      %1930 = vmatpush2.msra.mxu0 %v1783
      %1931 = vmatprep.subr.mxu0 0.0
      %1932 = vmatpush2.msra.mxu0 %v1782
      %1933 = vmatprep.subr.mxu0 0.0
      %1934 = vmatpush2.msra.mxu0 %v1781
      %1935 = vmatprep.subr.mxu0 0.0
      %1936 = vmatpush2.msra.mxu0 %v1780
      %1937 = vmatprep.mubr.f32.mxu0 %v1729
      %1938 = vmatmul.mubr.f32.gmra.mxu0 %v1575
      %v1939 = vpop.f32.mrf.mxu0
      %v1940 = vadd.f32 %v1870, %v1939
      %v1941 = vpop.f32.mrf.mxu0
      %1942 = vdwg.mxu0
      %v1943 = vadd.f32 %v1940, %v525
      %v1944 = vld [vmem:[%s7] sm:$0x1]
      %v1945 = vld [vmem:[%s8] sm:$0x1]
      %v1946 = vsel %vm495, %v1943, 0.0
      %1947 = vadd.xlane.f32.xlu0 %v1946
      %v1948 = vpop.xlane.xlu0 %1947
      %v1949 = vmul.f32 %v1948, %v499
      %v1950 = vmul.f32 %v1943, %v1943
      %v1951 = vsel %vm495, %v1950, 0.0
      %1952 = vadd.xlane.f32.xlu0 %v1951
      %v1953 = vpop.xlane.xlu0 %1952
      %v1954 = vmul.f32 %v1953, %v499
      %v1955 = vmul.f32 %v1949, %v1949
      %v1956 = vsub.f32 %v1954, %v1955
      %v1957 = vsub.f32 %v1943, %v1949
      %v1958 = vadd.f32 %v1956, 1e-05
      %v1959 = vrsqrt.pop %v1958
      %v1960 = vmul.f32 %v1957, %v1959
      %v1962 = vlaneseq
      %v1963 = vshrl.u32 %v1962, 7
      %v1964 = vsub.s32 0, %v1963
      %v1965 = vrot.slane %v1944, %v1964
      %v1967 = vmul.f32 %v1960, %v1965
      %v1969 = vlaneseq
      %v1970 = vshrl.u32 %v1969, 7
      %v1971 = vsub.s32 0, %v1970
      %v1972 = vrot.slane %v1945, %v1971
      %v1974 = vadd.f32 %v1967, %v1972
      %v1975 = vld [vmem:[%s9] sm:$0xff]
      %v1976 = vld [vmem:[%s9 + $0x8] sm:$0xff]
      %v1977 = vld [vmem:[%s9 + $0x10] sm:$0xff]
      %v1978 = vld [vmem:[%s9 + $0x18] sm:$0xff]
      %v1979 = vld [vmem:[%s9 + $0x20] sm:$0xff]
      %v1980 = vld [vmem:[%s9 + $0x28] sm:$0xff]
      %v1981 = vld [vmem:[%s9 + $0x30] sm:$0xff]
      %v1982 = vld [vmem:[%s9 + $0x38] sm:$0xff]
      %v1983 = vld [vmem:[%s10] sm:$0x1]
      %v1985 = vlaneseq
      %v1986 = vshrl.u32 %v1985, 7
      %v1987 = vsub.s32 0, %v1986
      %v1988 = vrot.slane %v1983, %v1987
      %v1991 = vsel %vm495, %v1974, 0
      %1993 = vmatprep.subr.mxu0 0.0
      %1994 = vmatpush1.msra.mxu0 0.0
      %1995 = vmatprep.subr.mxu0 0.0
      %1996 = vmatpush1.msra.mxu0 0.0
      %1997 = vmatprep.subr.mxu0 0.0
      %1998 = vmatpush1.msra.mxu0 0.0
      %1999 = vmatprep.subr.mxu0 0.0
      %2000 = vmatpush1.msra.mxu0 0.0
      %2001 = vmatprep.subr.mxu0 0.0
      %2002 = vmatpush1.msra.mxu0 0.0
      %2003 = vmatprep.subr.mxu0 0.0
      %2004 = vmatpush1.msra.mxu0 0.0
      %2005 = vmatprep.subr.mxu0 0.0
      %2006 = vmatpush1.msra.mxu0 0.0
      %2007 = vmatprep.subr.mxu0 0.0
      %2008 = vmatpush1.msra.mxu0 0.0
      %2009 = vmatprep.subr.mxu0 0.0
      %2010 = vmatpush1.msra.mxu0 %v1982
      %2011 = vmatprep.subr.mxu0 0.0
      %2012 = vmatpush1.msra.mxu0 %v1981
      %2013 = vmatprep.subr.mxu0 0.0
      %2014 = vmatpush1.msra.mxu0 %v1980
      %2015 = vmatprep.subr.mxu0 0.0
      %2016 = vmatpush1.msra.mxu0 %v1979
      %2017 = vmatprep.subr.mxu0 0.0
      %2018 = vmatpush1.msra.mxu0 %v1978
      %2019 = vmatprep.subr.mxu0 0.0
      %2020 = vmatpush1.msra.mxu0 %v1977
      %2021 = vmatprep.subr.mxu0 0.0
      %2022 = vmatpush1.msra.mxu0 %v1976
      %2023 = vmatprep.subr.mxu0 0.0
      %2024 = vmatpush1.msra.mxu0 %v1975
      %2025 = vmatprep.subr.mxu0 0.0
      %2026 = vmatpush2.msra.mxu0 0.0
      %2027 = vmatprep.subr.mxu0 0.0
      %2028 = vmatpush2.msra.mxu0 0.0
      %2029 = vmatprep.subr.mxu0 0.0
      %2030 = vmatpush2.msra.mxu0 0.0
      %2031 = vmatprep.subr.mxu0 0.0
      %2032 = vmatpush2.msra.mxu0 0.0
      %2033 = vmatprep.subr.mxu0 0.0
      %2034 = vmatpush2.msra.mxu0 0.0
      %2035 = vmatprep.subr.mxu0 0.0
      %2036 = vmatpush2.msra.mxu0 0.0
      %2037 = vmatprep.subr.mxu0 0.0
      %2038 = vmatpush2.msra.mxu0 0.0
      %2039 = vmatprep.subr.mxu0 0.0
      %2040 = vmatpush2.msra.mxu0 0.0
      %2041 = vmatprep.subr.mxu0 0.0
      %2042 = vmatpush2.msra.mxu0 0.0
      %2043 = vmatprep.subr.mxu0 0.0
      %2044 = vmatpush2.msra.mxu0 0.0
      %2045 = vmatprep.subr.mxu0 0.0
      %2046 = vmatpush2.msra.mxu0 0.0
      %2047 = vmatprep.subr.mxu0 0.0
      %2048 = vmatpush2.msra.mxu0 0.0
      %2049 = vmatprep.subr.mxu0 0.0
      %2050 = vmatpush2.msra.mxu0 0.0
      %2051 = vmatprep.subr.mxu0 0.0
      %2052 = vmatpush2.msra.mxu0 0.0
      %2053 = vmatprep.subr.mxu0 0.0
      %2054 = vmatpush2.msra.mxu0 0.0
      %2055 = vmatprep.subr.mxu0 0.0
      %2056 = vmatpush2.msra.mxu0 0.0
      %2057 = vmatprep.mubr.f32.mxu0 0.0
      %2058 = vmatmul.mubr.f32.gmra.mxu0 %v1991
      %v2059 = vpop.f32.mrf.mxu0
      %v2060 = vadd.f32 %v1988, %v2059
      %v2061 = vpop.f32.mrf.mxu0
      %2062 = vdwg.mxu0
      %v2063 = vmul.f32 %v2060, %v2060
      %v2064 = vmul.f32 %v2060, %v2063
      %v2065 = vmul.f32 %v2064, 0.044715
      %v2066 = vadd.f32 %v2060, %v2065
      %v2067 = vmul.f32 %v2066, 0.7978846
      %v2068 = vtanh.pop %v2067
      %v2069 = vadd.f32 %v2068, 1.0
      %v2070 = vmul.f32 %v2069, 0.5
      %v2071 = vmul.f32 %v2060, %v2070
      %v2072 = vld [vmem:[%s11] sm:$0xff]
      %v2073 = vld [vmem:[%s11 + $0x8] sm:$0xff]
      %v2074 = vld [vmem:[%s11 + $0x10] sm:$0xff]
      %v2075 = vld [vmem:[%s11 + $0x18] sm:$0xff]
      %v2076 = vld [vmem:[%s11 + $0x20] sm:$0xff]
      %v2077 = vld [vmem:[%s11 + $0x28] sm:$0xff]
      %v2078 = vld [vmem:[%s11 + $0x30] sm:$0xff]
      %v2079 = vld [vmem:[%s11 + $0x38] sm:$0xff]
      %v2080 = vld [vmem:[%s11 + $0x40] sm:$0xff]
      %v2081 = vld [vmem:[%s11 + $0x48] sm:$0xff]
      %v2082 = vld [vmem:[%s11 + $0x50] sm:$0xff]
      %v2083 = vld [vmem:[%s11 + $0x58] sm:$0xff]
      %v2084 = vld [vmem:[%s11 + $0x60] sm:$0xff]
      %v2085 = vld [vmem:[%s11 + $0x68] sm:$0xff]
      %v2086 = vld [vmem:[%s11 + $0x70] sm:$0xff]
      %v2087 = vld [vmem:[%s11 + $0x78] sm:$0xff]
      %v2088 = vld [vmem:[%s12] sm:$0x1]
      %v2090 = vlaneseq
      %v2091 = vshrl.u32 %v2090, 7
      %v2092 = vsub.s32 0, %v2091
      %v2093 = vrot.slane %v2088, %v2092
      %2095 = vmatprep.subr.mxu0 0.0
      %2096 = vmatpush1.msra.mxu0 %v2087
      %2097 = vmatprep.subr.mxu0 0.0
      %2098 = vmatpush1.msra.mxu0 %v2086
      %2099 = vmatprep.subr.mxu0 0.0
      %2100 = vmatpush1.msra.mxu0 %v2085
      %2101 = vmatprep.subr.mxu0 0.0
      %2102 = vmatpush1.msra.mxu0 %v2084
      %2103 = vmatprep.subr.mxu0 0.0
      %2104 = vmatpush1.msra.mxu0 %v2083
      %2105 = vmatprep.subr.mxu0 0.0
      %2106 = vmatpush1.msra.mxu0 %v2082
      %2107 = vmatprep.subr.mxu0 0.0
      %2108 = vmatpush1.msra.mxu0 %v2081
      %2109 = vmatprep.subr.mxu0 0.0
      %2110 = vmatpush1.msra.mxu0 %v2080
      %2111 = vmatprep.subr.mxu0 0.0
      %2112 = vmatpush1.msra.mxu0 %v2079
      %2113 = vmatprep.subr.mxu0 0.0
      %2114 = vmatpush1.msra.mxu0 %v2078
      %2115 = vmatprep.subr.mxu0 0.0
      %2116 = vmatpush1.msra.mxu0 %v2077
      %2117 = vmatprep.subr.mxu0 0.0
      %2118 = vmatpush1.msra.mxu0 %v2076
      %2119 = vmatprep.subr.mxu0 0.0
      %2120 = vmatpush1.msra.mxu0 %v2075
      %2121 = vmatprep.subr.mxu0 0.0
      %2122 = vmatpush1.msra.mxu0 %v2074
      %2123 = vmatprep.subr.mxu0 0.0
      %2124 = vmatpush1.msra.mxu0 %v2073
      %2125 = vmatprep.subr.mxu0 0.0
      %2126 = vmatpush1.msra.mxu0 %v2072
      %2127 = vmatprep.subr.mxu0 0.0
      %2128 = vmatpush2.msra.mxu0 0.0
      %2129 = vmatprep.subr.mxu0 0.0
      %2130 = vmatpush2.msra.mxu0 0.0
      %2131 = vmatprep.subr.mxu0 0.0
      %2132 = vmatpush2.msra.mxu0 0.0
      %2133 = vmatprep.subr.mxu0 0.0
      %2134 = vmatpush2.msra.mxu0 0.0
      %2135 = vmatprep.subr.mxu0 0.0
      %2136 = vmatpush2.msra.mxu0 0.0
      %2137 = vmatprep.subr.mxu0 0.0
      %2138 = vmatpush2.msra.mxu0 0.0
      %2139 = vmatprep.subr.mxu0 0.0
      %2140 = vmatpush2.msra.mxu0 0.0
      %2141 = vmatprep.subr.mxu0 0.0
      %2142 = vmatpush2.msra.mxu0 0.0
      %2143 = vmatprep.subr.mxu0 0.0
      %2144 = vmatpush2.msra.mxu0 0.0
      %2145 = vmatprep.subr.mxu0 0.0
      %2146 = vmatpush2.msra.mxu0 0.0
      %2147 = vmatprep.subr.mxu0 0.0
      %2148 = vmatpush2.msra.mxu0 0.0
      %2149 = vmatprep.subr.mxu0 0.0
      %2150 = vmatpush2.msra.mxu0 0.0
      %2151 = vmatprep.subr.mxu0 0.0
      %2152 = vmatpush2.msra.mxu0 0.0
      %2153 = vmatprep.subr.mxu0 0.0
      %2154 = vmatpush2.msra.mxu0 0.0
      %2155 = vmatprep.subr.mxu0 0.0
      %2156 = vmatpush2.msra.mxu0 0.0
      %2157 = vmatprep.subr.mxu0 0.0
      %2158 = vmatpush2.msra.mxu0 0.0
      %2159 = vmatprep.mubr.f32.mxu0 0.0
      %2160 = vmatmul.mubr.f32.gmra.mxu0 %v2071
      %v2161 = vpop.f32.mrf.mxu0
      %v2162 = vadd.f32 %v2093, %v2161
      %v2163 = vpop.f32.mrf.mxu0
      %2164 = vdwg.mxu0
      %v2165 = vadd.f32 %v2162, %v1974
      %v2166 = vld [vmem:[%s13] sm:$0x1]
      %v2167 = vld [vmem:[%s14] sm:$0x1]
      %v2168 = vsel %vm495, %v2165, 0.0
      %2169 = vadd.xlane.f32.xlu0 %v2168
      %v2170 = vpop.xlane.xlu0 %2169
      %v2171 = vmul.f32 %v2170, %v499
      %v2172 = vmul.f32 %v2165, %v2165
      %v2173 = vsel %vm495, %v2172, 0.0
      %2174 = vadd.xlane.f32.xlu0 %v2173
      %v2175 = vpop.xlane.xlu0 %2174
      %v2176 = vmul.f32 %v2175, %v499
      %v2177 = vmul.f32 %v2171, %v2171
      %v2178 = vsub.f32 %v2176, %v2177
      %v2179 = vsub.f32 %v2165, %v2171
      %v2180 = vadd.f32 %v2178, 1e-05
      %v2181 = vrsqrt.pop %v2180
      %v2182 = vmul.f32 %v2179, %v2181
      %v2184 = vlaneseq
      %v2185 = vshrl.u32 %v2184, 7
      %v2186 = vsub.s32 0, %v2185
      %v2187 = vrot.slane %v2166, %v2186
      %v2189 = vmul.f32 %v2182, %v2187
      %v2191 = vlaneseq
      %v2192 = vshrl.u32 %v2191, 7
      %v2193 = vsub.s32 0, %v2192
      %v2194 = vrot.slane %v2167, %v2193
      %v2196 = vadd.f32 %v2189, %v2194
      %s2197 = scalar_lea.vmem %s3, 768
      %v2198 = vld [vmem:[%s2197] sm:$0xff]
      %v2199 = vld [vmem:[%s2197 + $0x8] sm:$0xff]
      %v2200 = vld [vmem:[%s2197 + $0x10] sm:$0xff]
      %v2201 = vld [vmem:[%s2197 + $0x18] sm:$0xff]
      %v2202 = vld [vmem:[%s2197 + $0x20] sm:$0xff]
      %v2203 = vld [vmem:[%s2197 + $0x28] sm:$0xff]
      %v2204 = vld [vmem:[%s2197 + $0x30] sm:$0xff]
      %v2205 = vld [vmem:[%s2197 + $0x38] sm:$0xff]
      %v2206 = vld [vmem:[%s2197 + $0x40] sm:$0xff]
      %v2207 = vld [vmem:[%s2197 + $0x48] sm:$0xff]
      %v2208 = vld [vmem:[%s2197 + $0x50] sm:$0xff]
      %v2209 = vld [vmem:[%s2197 + $0x58] sm:$0xff]
      %v2210 = vld [vmem:[%s2197 + $0x60] sm:$0xff]
      %v2211 = vld [vmem:[%s2197 + $0x68] sm:$0xff]
      %v2212 = vld [vmem:[%s2197 + $0x70] sm:$0xff]
      %v2213 = vld [vmem:[%s2197 + $0x78] sm:$0xff]
      %v2214 = vld [vmem:[%s2197 + $0x80] sm:$0xff]
      %v2215 = vld [vmem:[%s2197 + $0x88] sm:$0xff]
      %v2216 = vld [vmem:[%s2197 + $0x90] sm:$0xff]
      %v2217 = vld [vmem:[%s2197 + $0x98] sm:$0xff]
      %v2218 = vld [vmem:[%s2197 + $0xa0] sm:$0xff]
      %v2219 = vld [vmem:[%s2197 + $0xa8] sm:$0xff]
      %v2220 = vld [vmem:[%s2197 + $0xb0] sm:$0xff]
      %v2221 = vld [vmem:[%s2197 + $0xb8] sm:$0xff]
      %v2222 = vld [vmem:[%s2197 + $0xc0] sm:$0xff]
      %v2223 = vld [vmem:[%s2197 + $0xc8] sm:$0xff]
      %v2224 = vld [vmem:[%s2197 + $0xd0] sm:$0xff]
      %v2225 = vld [vmem:[%s2197 + $0xd8] sm:$0xff]
      %v2226 = vld [vmem:[%s2197 + $0xe0] sm:$0xff]
      %v2227 = vld [vmem:[%s2197 + $0xe8] sm:$0xff]
      %v2228 = vld [vmem:[%s2197 + $0xf0] sm:$0xff]
      %v2229 = vld [vmem:[%s2197 + $0xf8] sm:$0xff]
      %v2230 = vld [vmem:[%s2197 + $0x100] sm:$0xff]
      %v2231 = vld [vmem:[%s2197 + $0x108] sm:$0xff]
      %v2232 = vld [vmem:[%s2197 + $0x110] sm:$0xff]
      %v2233 = vld [vmem:[%s2197 + $0x118] sm:$0xff]
      %v2234 = vld [vmem:[%s2197 + $0x120] sm:$0xff]
      %v2235 = vld [vmem:[%s2197 + $0x128] sm:$0xff]
      %v2236 = vld [vmem:[%s2197 + $0x130] sm:$0xff]
      %v2237 = vld [vmem:[%s2197 + $0x138] sm:$0xff]
      %v2238 = vld [vmem:[%s2197 + $0x140] sm:$0xff]
      %v2239 = vld [vmem:[%s2197 + $0x148] sm:$0xff]
      %v2240 = vld [vmem:[%s2197 + $0x150] sm:$0xff]
      %v2241 = vld [vmem:[%s2197 + $0x158] sm:$0xff]
      %v2242 = vld [vmem:[%s2197 + $0x160] sm:$0xff]
      %v2243 = vld [vmem:[%s2197 + $0x168] sm:$0xff]
      %v2244 = vld [vmem:[%s2197 + $0x170] sm:$0xff]
      %v2245 = vld [vmem:[%s2197 + $0x178] sm:$0xff]
      %v2246 = vld [vmem:[%s2197 + $0x180] sm:$0xff]
      %v2247 = vld [vmem:[%s2197 + $0x188] sm:$0xff]
      %v2248 = vld [vmem:[%s2197 + $0x190] sm:$0xff]
      %v2249 = vld [vmem:[%s2197 + $0x198] sm:$0xff]
      %v2250 = vld [vmem:[%s2197 + $0x1a0] sm:$0xff]
      %v2251 = vld [vmem:[%s2197 + $0x1a8] sm:$0xff]
      %v2252 = vld [vmem:[%s2197 + $0x1b0] sm:$0xff]
      %v2253 = vld [vmem:[%s2197 + $0x1b8] sm:$0xff]
      %v2254 = vld [vmem:[%s2197 + $0x1c0] sm:$0xff]
      %v2255 = vld [vmem:[%s2197 + $0x1c8] sm:$0xff]
      %v2256 = vld [vmem:[%s2197 + $0x1d0] sm:$0xff]
      %v2257 = vld [vmem:[%s2197 + $0x1d8] sm:$0xff]
      %v2258 = vld [vmem:[%s2197 + $0x1e0] sm:$0xff]
      %v2259 = vld [vmem:[%s2197 + $0x1e8] sm:$0xff]
      %v2260 = vld [vmem:[%s2197 + $0x1f0] sm:$0xff]
      %v2261 = vld [vmem:[%s2197 + $0x1f8] sm:$0xff]
      %v2262 = vld [vmem:[%s2197 + $0x200] sm:$0xff]
      %v2263 = vld [vmem:[%s2197 + $0x208] sm:$0xff]
      %v2264 = vld [vmem:[%s2197 + $0x210] sm:$0xff]
      %v2265 = vld [vmem:[%s2197 + $0x218] sm:$0xff]
      %v2266 = vld [vmem:[%s2197 + $0x220] sm:$0xff]
      %v2267 = vld [vmem:[%s2197 + $0x228] sm:$0xff]
      %v2268 = vld [vmem:[%s2197 + $0x230] sm:$0xff]
      %v2269 = vld [vmem:[%s2197 + $0x238] sm:$0xff]
      %v2270 = vld [vmem:[%s2197 + $0x240] sm:$0xff]
      %v2271 = vld [vmem:[%s2197 + $0x248] sm:$0xff]
      %v2272 = vld [vmem:[%s2197 + $0x250] sm:$0xff]
      %v2273 = vld [vmem:[%s2197 + $0x258] sm:$0xff]
      %v2274 = vld [vmem:[%s2197 + $0x260] sm:$0xff]
      %v2275 = vld [vmem:[%s2197 + $0x268] sm:$0xff]
      %v2276 = vld [vmem:[%s2197 + $0x270] sm:$0xff]
      %v2277 = vld [vmem:[%s2197 + $0x278] sm:$0xff]
      %v2278 = vld [vmem:[%s2197 + $0x280] sm:$0xff]
      %v2279 = vld [vmem:[%s2197 + $0x288] sm:$0xff]
      %v2280 = vld [vmem:[%s2197 + $0x290] sm:$0xff]
      %v2281 = vld [vmem:[%s2197 + $0x298] sm:$0xff]
      %v2282 = vld [vmem:[%s2197 + $0x2a0] sm:$0xff]
      %v2283 = vld [vmem:[%s2197 + $0x2a8] sm:$0xff]
      %v2284 = vld [vmem:[%s2197 + $0x2b0] sm:$0xff]
      %v2285 = vld [vmem:[%s2197 + $0x2b8] sm:$0xff]
      %v2286 = vld [vmem:[%s2197 + $0x2c0] sm:$0xff]
      %v2287 = vld [vmem:[%s2197 + $0x2c8] sm:$0xff]
      %v2288 = vld [vmem:[%s2197 + $0x2d0] sm:$0xff]
      %v2289 = vld [vmem:[%s2197 + $0x2d8] sm:$0xff]
      %v2290 = vld [vmem:[%s2197 + $0x2e0] sm:$0xff]
      %v2291 = vld [vmem:[%s2197 + $0x2e8] sm:$0xff]
      %v2292 = vld [vmem:[%s2197 + $0x2f0] sm:$0xff]
      %v2293 = vld [vmem:[%s2197 + $0x2f8] sm:$0xff]
      %s2294 = scalar_lea.vmem %s4, 12
      %v2295 = vld [vmem:[%s2294] sm:$0xff]
      %v2296 = vld [vmem:[%s2294 + $0x8] sm:$0xf]
      %v2299 = vlaneseq
      %v2300 = vshrl.u32 %v2299, 7
      %v2301 = vsub.s32 0, %v2300
      %v2302 = vrot.slane %v2295, %v2301
      %v2303 = vlaneseq
      %v2304 = vshrl.u32 %v2303, 7
      %v2305 = vsub.s32 1, %v2304
      %v2306 = vrot.slane %v2295, %v2305
      %v2307 = vlaneseq
      %v2308 = vshrl.u32 %v2307, 7
      %v2309 = vsub.s32 2, %v2308
      %v2310 = vrot.slane %v2295, %v2309
      %v2311 = vlaneseq
      %v2312 = vshrl.u32 %v2311, 7
      %v2313 = vsub.s32 3, %v2312
      %v2314 = vrot.slane %v2295, %v2313
      %v2315 = vlaneseq
      %v2316 = vshrl.u32 %v2315, 7
      %v2317 = vsub.s32 4, %v2316
      %v2318 = vrot.slane %v2295, %v2317
      %v2319 = vlaneseq
      %v2320 = vshrl.u32 %v2319, 7
      %v2321 = vsub.s32 5, %v2320
      %v2322 = vrot.slane %v2295, %v2321
      %v2323 = vlaneseq
      %v2324 = vshrl.u32 %v2323, 7
      %v2325 = vsub.s32 6, %v2324
      %v2326 = vrot.slane %v2295, %v2325
      %v2327 = vlaneseq
      %v2328 = vshrl.u32 %v2327, 7
      %v2329 = vsub.s32 7, %v2328
      %v2330 = vrot.slane %v2295, %v2329
      %v2331 = vlaneseq
      %v2332 = vshrl.u32 %v2331, 7
      %v2333 = vsub.s32 0, %v2332
      %v2334 = vrot.slane %v2296, %v2333
      %v2335 = vlaneseq
      %v2336 = vshrl.u32 %v2335, 7
      %v2337 = vsub.s32 1, %v2336
      %v2338 = vrot.slane %v2296, %v2337
      %v2339 = vlaneseq
      %v2340 = vshrl.u32 %v2339, 7
      %v2341 = vsub.s32 2, %v2340
      %v2342 = vrot.slane %v2296, %v2341
      %v2343 = vlaneseq
      %v2344 = vshrl.u32 %v2343, 7
      %v2345 = vsub.s32 3, %v2344
      %v2346 = vrot.slane %v2296, %v2345
      %v2360 = vsel %vm495, %v2196, 0
      %2362 = vmatprep.subr.mxu0 0.0
      %2363 = vmatpush1.msra.mxu0 0.0
      %2364 = vmatprep.subr.mxu0 0.0
      %2365 = vmatpush1.msra.mxu0 0.0
      %2366 = vmatprep.subr.mxu0 0.0
      %2367 = vmatpush1.msra.mxu0 0.0
      %2368 = vmatprep.subr.mxu0 0.0
      %2369 = vmatpush1.msra.mxu0 0.0
      %2370 = vmatprep.subr.mxu0 0.0
      %2371 = vmatpush1.msra.mxu0 0.0
      %2372 = vmatprep.subr.mxu0 0.0
      %2373 = vmatpush1.msra.mxu0 0.0
      %2374 = vmatprep.subr.mxu0 0.0
      %2375 = vmatpush1.msra.mxu0 0.0
      %2376 = vmatprep.subr.mxu0 0.0
      %2377 = vmatpush1.msra.mxu0 0.0
      %2378 = vmatprep.subr.mxu0 %v2283
      %2379 = vmatpush1.msra.mxu0 %v2282
      %2380 = vmatprep.subr.mxu0 %v2271
      %2381 = vmatpush1.msra.mxu0 %v2270
      %2382 = vmatprep.subr.mxu0 %v2259
      %2383 = vmatpush1.msra.mxu0 %v2258
      %2384 = vmatprep.subr.mxu0 %v2247
      %2385 = vmatpush1.msra.mxu0 %v2246
      %2386 = vmatprep.subr.mxu0 %v2235
      %2387 = vmatpush1.msra.mxu0 %v2234
      %2388 = vmatprep.subr.mxu0 %v2223
      %2389 = vmatpush1.msra.mxu0 %v2222
      %2390 = vmatprep.subr.mxu0 %v2211
      %2391 = vmatpush1.msra.mxu0 %v2210
      %2392 = vmatprep.subr.mxu0 %v2199
      %2393 = vmatpush1.msra.mxu0 %v2198
      %2394 = vmatprep.subr.mxu0 0.0
      %2395 = vmatpush2.msra.mxu0 0.0
      %2396 = vmatprep.subr.mxu0 0.0
      %2397 = vmatpush2.msra.mxu0 0.0
      %2398 = vmatprep.subr.mxu0 0.0
      %2399 = vmatpush2.msra.mxu0 0.0
      %2400 = vmatprep.subr.mxu0 0.0
      %2401 = vmatpush2.msra.mxu0 0.0
      %2402 = vmatprep.subr.mxu0 0.0
      %2403 = vmatpush2.msra.mxu0 0.0
      %2404 = vmatprep.subr.mxu0 0.0
      %2405 = vmatpush2.msra.mxu0 0.0
      %2406 = vmatprep.subr.mxu0 0.0
      %2407 = vmatpush2.msra.mxu0 0.0
      %2408 = vmatprep.subr.mxu0 0.0
      %2409 = vmatpush2.msra.mxu0 0.0
      %2410 = vmatprep.subr.mxu0 0.0
      %2411 = vmatpush2.msra.mxu0 0.0
      %2412 = vmatprep.subr.mxu0 0.0
      %2413 = vmatpush2.msra.mxu0 0.0
      %2414 = vmatprep.subr.mxu0 0.0
      %2415 = vmatpush2.msra.mxu0 0.0
      %2416 = vmatprep.subr.mxu0 0.0
      %2417 = vmatpush2.msra.mxu0 0.0
      %2418 = vmatprep.subr.mxu0 0.0
      %2419 = vmatpush2.msra.mxu0 0.0
      %2420 = vmatprep.subr.mxu0 0.0
      %2421 = vmatpush2.msra.mxu0 0.0
      %2422 = vmatprep.subr.mxu0 0.0
      %2423 = vmatpush2.msra.mxu0 0.0
      %2424 = vmatprep.subr.mxu0 0.0
      %2425 = vmatpush2.msra.mxu0 0.0
      %2426 = vmatprep.mubr.f32.mxu0 0.0
      %2427 = vmatmul.mubr.f32.gmra.mxu0 %v2360
      %v2428 = vpop.f32.mrf.mxu0
      %v2429 = vadd.f32 %v2302, %v2428
      %v2430 = vpop.f32.mrf.mxu0
      %v2431 = vadd.f32 %v2306, %v2430
      %2432 = vdwg.mxu0
      %2433 = vmatprep.subr.mxu0 0.0
      %2434 = vmatpush1.msra.mxu0 0.0
      %2435 = vmatprep.subr.mxu0 0.0
      %2436 = vmatpush1.msra.mxu0 0.0
      %2437 = vmatprep.subr.mxu0 0.0
      %2438 = vmatpush1.msra.mxu0 0.0
      %2439 = vmatprep.subr.mxu0 0.0
      %2440 = vmatpush1.msra.mxu0 0.0
      %2441 = vmatprep.subr.mxu0 0.0
      %2442 = vmatpush1.msra.mxu0 0.0
      %2443 = vmatprep.subr.mxu0 0.0
      %2444 = vmatpush1.msra.mxu0 0.0
      %2445 = vmatprep.subr.mxu0 0.0
      %2446 = vmatpush1.msra.mxu0 0.0
      %2447 = vmatprep.subr.mxu0 0.0
      %2448 = vmatpush1.msra.mxu0 0.0
      %2449 = vmatprep.subr.mxu0 %v2285
      %2450 = vmatpush1.msra.mxu0 %v2284
      %2451 = vmatprep.subr.mxu0 %v2273
      %2452 = vmatpush1.msra.mxu0 %v2272
      %2453 = vmatprep.subr.mxu0 %v2261
      %2454 = vmatpush1.msra.mxu0 %v2260
      %2455 = vmatprep.subr.mxu0 %v2249
      %2456 = vmatpush1.msra.mxu0 %v2248
      %2457 = vmatprep.subr.mxu0 %v2237
      %2458 = vmatpush1.msra.mxu0 %v2236
      %2459 = vmatprep.subr.mxu0 %v2225
      %2460 = vmatpush1.msra.mxu0 %v2224
      %2461 = vmatprep.subr.mxu0 %v2213
      %2462 = vmatpush1.msra.mxu0 %v2212
      %2463 = vmatprep.subr.mxu0 %v2201
      %2464 = vmatpush1.msra.mxu0 %v2200
      %2465 = vmatprep.subr.mxu0 0.0
      %2466 = vmatpush2.msra.mxu0 0.0
      %2467 = vmatprep.subr.mxu0 0.0
      %2468 = vmatpush2.msra.mxu0 0.0
      %2469 = vmatprep.subr.mxu0 0.0
      %2470 = vmatpush2.msra.mxu0 0.0
      %2471 = vmatprep.subr.mxu0 0.0
      %2472 = vmatpush2.msra.mxu0 0.0
      %2473 = vmatprep.subr.mxu0 0.0
      %2474 = vmatpush2.msra.mxu0 0.0
      %2475 = vmatprep.subr.mxu0 0.0
      %2476 = vmatpush2.msra.mxu0 0.0
      %2477 = vmatprep.subr.mxu0 0.0
      %2478 = vmatpush2.msra.mxu0 0.0
      %2479 = vmatprep.subr.mxu0 0.0
      %2480 = vmatpush2.msra.mxu0 0.0
      %2481 = vmatprep.subr.mxu0 0.0
      %2482 = vmatpush2.msra.mxu0 0.0
      %2483 = vmatprep.subr.mxu0 0.0
      %2484 = vmatpush2.msra.mxu0 0.0
      %2485 = vmatprep.subr.mxu0 0.0
      %2486 = vmatpush2.msra.mxu0 0.0
      %2487 = vmatprep.subr.mxu0 0.0
      %2488 = vmatpush2.msra.mxu0 0.0
      %2489 = vmatprep.subr.mxu0 0.0
      %2490 = vmatpush2.msra.mxu0 0.0
      %2491 = vmatprep.subr.mxu0 0.0
      %2492 = vmatpush2.msra.mxu0 0.0
      %2493 = vmatprep.subr.mxu0 0.0
      %2494 = vmatpush2.msra.mxu0 0.0
      %2495 = vmatprep.subr.mxu0 0.0
      %2496 = vmatpush2.msra.mxu0 0.0
      %2497 = vmatprep.mubr.f32.mxu0 0.0
      %2498 = vmatmul.mubr.f32.gmra.mxu0 %v2360
      %v2499 = vpop.f32.mrf.mxu0
      %v2500 = vadd.f32 %v2310, %v2499
      %v2501 = vpop.f32.mrf.mxu0
      %v2502 = vadd.f32 %v2314, %v2501
      %2503 = vdwg.mxu0
      %2504 = vmatprep.subr.mxu0 0.0
      %2505 = vmatpush1.msra.mxu0 0.0
      %2506 = vmatprep.subr.mxu0 0.0
      %2507 = vmatpush1.msra.mxu0 0.0
      %2508 = vmatprep.subr.mxu0 0.0
      %2509 = vmatpush1.msra.mxu0 0.0
      %2510 = vmatprep.subr.mxu0 0.0
      %2511 = vmatpush1.msra.mxu0 0.0
      %2512 = vmatprep.subr.mxu0 0.0
      %2513 = vmatpush1.msra.mxu0 0.0
      %2514 = vmatprep.subr.mxu0 0.0
      %2515 = vmatpush1.msra.mxu0 0.0
      %2516 = vmatprep.subr.mxu0 0.0
      %2517 = vmatpush1.msra.mxu0 0.0
      %2518 = vmatprep.subr.mxu0 0.0
      %2519 = vmatpush1.msra.mxu0 0.0
      %2520 = vmatprep.subr.mxu0 %v2287
      %2521 = vmatpush1.msra.mxu0 %v2286
      %2522 = vmatprep.subr.mxu0 %v2275
      %2523 = vmatpush1.msra.mxu0 %v2274
      %2524 = vmatprep.subr.mxu0 %v2263
      %2525 = vmatpush1.msra.mxu0 %v2262
      %2526 = vmatprep.subr.mxu0 %v2251
      %2527 = vmatpush1.msra.mxu0 %v2250
      %2528 = vmatprep.subr.mxu0 %v2239
      %2529 = vmatpush1.msra.mxu0 %v2238
      %2530 = vmatprep.subr.mxu0 %v2227
      %2531 = vmatpush1.msra.mxu0 %v2226
      %2532 = vmatprep.subr.mxu0 %v2215
      %2533 = vmatpush1.msra.mxu0 %v2214
      %2534 = vmatprep.subr.mxu0 %v2203
      %2535 = vmatpush1.msra.mxu0 %v2202
      %2536 = vmatprep.subr.mxu0 0.0
      %2537 = vmatpush2.msra.mxu0 0.0
      %2538 = vmatprep.subr.mxu0 0.0
      %2539 = vmatpush2.msra.mxu0 0.0
      %2540 = vmatprep.subr.mxu0 0.0
      %2541 = vmatpush2.msra.mxu0 0.0
      %2542 = vmatprep.subr.mxu0 0.0
      %2543 = vmatpush2.msra.mxu0 0.0
      %2544 = vmatprep.subr.mxu0 0.0
      %2545 = vmatpush2.msra.mxu0 0.0
      %2546 = vmatprep.subr.mxu0 0.0
      %2547 = vmatpush2.msra.mxu0 0.0
      %2548 = vmatprep.subr.mxu0 0.0
      %2549 = vmatpush2.msra.mxu0 0.0
      %2550 = vmatprep.subr.mxu0 0.0
      %2551 = vmatpush2.msra.mxu0 0.0
      %2552 = vmatprep.subr.mxu0 0.0
      %2553 = vmatpush2.msra.mxu0 0.0
      %2554 = vmatprep.subr.mxu0 0.0
      %2555 = vmatpush2.msra.mxu0 0.0
      %2556 = vmatprep.subr.mxu0 0.0
      %2557 = vmatpush2.msra.mxu0 0.0
      %2558 = vmatprep.subr.mxu0 0.0
      %2559 = vmatpush2.msra.mxu0 0.0
      %2560 = vmatprep.subr.mxu0 0.0
      %2561 = vmatpush2.msra.mxu0 0.0
      %2562 = vmatprep.subr.mxu0 0.0
      %2563 = vmatpush2.msra.mxu0 0.0
      %2564 = vmatprep.subr.mxu0 0.0
      %2565 = vmatpush2.msra.mxu0 0.0
      %2566 = vmatprep.subr.mxu0 0.0
      %2567 = vmatpush2.msra.mxu0 0.0
      %2568 = vmatprep.mubr.f32.mxu0 0.0
      %2569 = vmatmul.mubr.f32.gmra.mxu0 %v2360
      %v2570 = vpop.f32.mrf.mxu0
      %v2571 = vadd.f32 %v2318, %v2570
      %v2572 = vpop.f32.mrf.mxu0
      %v2573 = vadd.f32 %v2322, %v2572
      %2574 = vdwg.mxu0
      %2575 = vmatprep.subr.mxu0 0.0
      %2576 = vmatpush1.msra.mxu0 0.0
      %2577 = vmatprep.subr.mxu0 0.0
      %2578 = vmatpush1.msra.mxu0 0.0
      %2579 = vmatprep.subr.mxu0 0.0
      %2580 = vmatpush1.msra.mxu0 0.0
      %2581 = vmatprep.subr.mxu0 0.0
      %2582 = vmatpush1.msra.mxu0 0.0
      %2583 = vmatprep.subr.mxu0 0.0
      %2584 = vmatpush1.msra.mxu0 0.0
      %2585 = vmatprep.subr.mxu0 0.0
      %2586 = vmatpush1.msra.mxu0 0.0
      %2587 = vmatprep.subr.mxu0 0.0
      %2588 = vmatpush1.msra.mxu0 0.0
      %2589 = vmatprep.subr.mxu0 0.0
      %2590 = vmatpush1.msra.mxu0 0.0
      %2591 = vmatprep.subr.mxu0 %v2289
      %2592 = vmatpush1.msra.mxu0 %v2288
      %2593 = vmatprep.subr.mxu0 %v2277
      %2594 = vmatpush1.msra.mxu0 %v2276
      %2595 = vmatprep.subr.mxu0 %v2265
      %2596 = vmatpush1.msra.mxu0 %v2264
      %2597 = vmatprep.subr.mxu0 %v2253
      %2598 = vmatpush1.msra.mxu0 %v2252
      %2599 = vmatprep.subr.mxu0 %v2241
      %2600 = vmatpush1.msra.mxu0 %v2240
      %2601 = vmatprep.subr.mxu0 %v2229
      %2602 = vmatpush1.msra.mxu0 %v2228
      %2603 = vmatprep.subr.mxu0 %v2217
      %2604 = vmatpush1.msra.mxu0 %v2216
      %2605 = vmatprep.subr.mxu0 %v2205
      %2606 = vmatpush1.msra.mxu0 %v2204
      %2607 = vmatprep.subr.mxu0 0.0
      %2608 = vmatpush2.msra.mxu0 0.0
      %2609 = vmatprep.subr.mxu0 0.0
      %2610 = vmatpush2.msra.mxu0 0.0
      %2611 = vmatprep.subr.mxu0 0.0
      %2612 = vmatpush2.msra.mxu0 0.0
      %2613 = vmatprep.subr.mxu0 0.0
      %2614 = vmatpush2.msra.mxu0 0.0
      %2615 = vmatprep.subr.mxu0 0.0
      %2616 = vmatpush2.msra.mxu0 0.0
      %2617 = vmatprep.subr.mxu0 0.0
      %2618 = vmatpush2.msra.mxu0 0.0
      %2619 = vmatprep.subr.mxu0 0.0
      %2620 = vmatpush2.msra.mxu0 0.0
      %2621 = vmatprep.subr.mxu0 0.0
      %2622 = vmatpush2.msra.mxu0 0.0
      %2623 = vmatprep.subr.mxu0 0.0
      %2624 = vmatpush2.msra.mxu0 0.0
      %2625 = vmatprep.subr.mxu0 0.0
      %2626 = vmatpush2.msra.mxu0 0.0
      %2627 = vmatprep.subr.mxu0 0.0
      %2628 = vmatpush2.msra.mxu0 0.0
      %2629 = vmatprep.subr.mxu0 0.0
      %2630 = vmatpush2.msra.mxu0 0.0
      %2631 = vmatprep.subr.mxu0 0.0
      %2632 = vmatpush2.msra.mxu0 0.0
      %2633 = vmatprep.subr.mxu0 0.0
      %2634 = vmatpush2.msra.mxu0 0.0
      %2635 = vmatprep.subr.mxu0 0.0
      %2636 = vmatpush2.msra.mxu0 0.0
      %2637 = vmatprep.subr.mxu0 0.0
      %2638 = vmatpush2.msra.mxu0 0.0
      %2639 = vmatprep.mubr.f32.mxu0 0.0
      %2640 = vmatmul.mubr.f32.gmra.mxu0 %v2360
      %v2641 = vpop.f32.mrf.mxu0
      %v2642 = vadd.f32 %v2326, %v2641
      %v2643 = vpop.f32.mrf.mxu0
      %v2644 = vadd.f32 %v2330, %v2643
      %2645 = vdwg.mxu0
      %2646 = vmatprep.subr.mxu0 0.0
      %2647 = vmatpush1.msra.mxu0 0.0
      %2648 = vmatprep.subr.mxu0 0.0
      %2649 = vmatpush1.msra.mxu0 0.0
      %2650 = vmatprep.subr.mxu0 0.0
      %2651 = vmatpush1.msra.mxu0 0.0
      %2652 = vmatprep.subr.mxu0 0.0
      %2653 = vmatpush1.msra.mxu0 0.0
      %2654 = vmatprep.subr.mxu0 0.0
      %2655 = vmatpush1.msra.mxu0 0.0
      %2656 = vmatprep.subr.mxu0 0.0
      %2657 = vmatpush1.msra.mxu0 0.0
      %2658 = vmatprep.subr.mxu0 0.0
      %2659 = vmatpush1.msra.mxu0 0.0
      %2660 = vmatprep.subr.mxu0 0.0
      %2661 = vmatpush1.msra.mxu0 0.0
      %2662 = vmatprep.subr.mxu0 %v2291
      %2663 = vmatpush1.msra.mxu0 %v2290
      %2664 = vmatprep.subr.mxu0 %v2279
      %2665 = vmatpush1.msra.mxu0 %v2278
      %2666 = vmatprep.subr.mxu0 %v2267
      %2667 = vmatpush1.msra.mxu0 %v2266
      %2668 = vmatprep.subr.mxu0 %v2255
      %2669 = vmatpush1.msra.mxu0 %v2254
      %2670 = vmatprep.subr.mxu0 %v2243
      %2671 = vmatpush1.msra.mxu0 %v2242
      %2672 = vmatprep.subr.mxu0 %v2231
      %2673 = vmatpush1.msra.mxu0 %v2230
      %2674 = vmatprep.subr.mxu0 %v2219
      %2675 = vmatpush1.msra.mxu0 %v2218
      %2676 = vmatprep.subr.mxu0 %v2207
      %2677 = vmatpush1.msra.mxu0 %v2206
      %2678 = vmatprep.subr.mxu0 0.0
      %2679 = vmatpush2.msra.mxu0 0.0
      %2680 = vmatprep.subr.mxu0 0.0
      %2681 = vmatpush2.msra.mxu0 0.0
      %2682 = vmatprep.subr.mxu0 0.0
      %2683 = vmatpush2.msra.mxu0 0.0
      %2684 = vmatprep.subr.mxu0 0.0
      %2685 = vmatpush2.msra.mxu0 0.0
      %2686 = vmatprep.subr.mxu0 0.0
      %2687 = vmatpush2.msra.mxu0 0.0
      %2688 = vmatprep.subr.mxu0 0.0
      %2689 = vmatpush2.msra.mxu0 0.0
      %2690 = vmatprep.subr.mxu0 0.0
      %2691 = vmatpush2.msra.mxu0 0.0
      %2692 = vmatprep.subr.mxu0 0.0
      %2693 = vmatpush2.msra.mxu0 0.0
      %2694 = vmatprep.subr.mxu0 0.0
      %2695 = vmatpush2.msra.mxu0 0.0
      %2696 = vmatprep.subr.mxu0 0.0
      %2697 = vmatpush2.msra.mxu0 0.0
      %2698 = vmatprep.subr.mxu0 0.0
      %2699 = vmatpush2.msra.mxu0 0.0
      %2700 = vmatprep.subr.mxu0 0.0
      %2701 = vmatpush2.msra.mxu0 0.0
      %2702 = vmatprep.subr.mxu0 0.0
      %2703 = vmatpush2.msra.mxu0 0.0
      %2704 = vmatprep.subr.mxu0 0.0
      %2705 = vmatpush2.msra.mxu0 0.0
      %2706 = vmatprep.subr.mxu0 0.0
      %2707 = vmatpush2.msra.mxu0 0.0
      %2708 = vmatprep.subr.mxu0 0.0
      %2709 = vmatpush2.msra.mxu0 0.0
      %2710 = vmatprep.mubr.f32.mxu0 0.0
      %2711 = vmatmul.mubr.f32.gmra.mxu0 %v2360
      %v2712 = vpop.f32.mrf.mxu0
      %v2713 = vadd.f32 %v2334, %v2712
      %v2714 = vpop.f32.mrf.mxu0
      %v2715 = vadd.f32 %v2338, %v2714
      %2716 = vdwg.mxu0
      %2717 = vmatprep.subr.mxu0 0.0
      %2718 = vmatpush1.msra.mxu0 0.0
      %2719 = vmatprep.subr.mxu0 0.0
      %2720 = vmatpush1.msra.mxu0 0.0
      %2721 = vmatprep.subr.mxu0 0.0
      %2722 = vmatpush1.msra.mxu0 0.0
      %2723 = vmatprep.subr.mxu0 0.0
      %2724 = vmatpush1.msra.mxu0 0.0
      %2725 = vmatprep.subr.mxu0 0.0
      %2726 = vmatpush1.msra.mxu0 0.0
      %2727 = vmatprep.subr.mxu0 0.0
      %2728 = vmatpush1.msra.mxu0 0.0
      %2729 = vmatprep.subr.mxu0 0.0
      %2730 = vmatpush1.msra.mxu0 0.0
      %2731 = vmatprep.subr.mxu0 0.0
      %2732 = vmatpush1.msra.mxu0 0.0
      %2733 = vmatprep.subr.mxu0 %v2293
      %2734 = vmatpush1.msra.mxu0 %v2292
      %2735 = vmatprep.subr.mxu0 %v2281
      %2736 = vmatpush1.msra.mxu0 %v2280
      %2737 = vmatprep.subr.mxu0 %v2269
      %2738 = vmatpush1.msra.mxu0 %v2268
      %2739 = vmatprep.subr.mxu0 %v2257
      %2740 = vmatpush1.msra.mxu0 %v2256
      %2741 = vmatprep.subr.mxu0 %v2245
      %2742 = vmatpush1.msra.mxu0 %v2244
      %2743 = vmatprep.subr.mxu0 %v2233
      %2744 = vmatpush1.msra.mxu0 %v2232
      %2745 = vmatprep.subr.mxu0 %v2221
      %2746 = vmatpush1.msra.mxu0 %v2220
      %2747 = vmatprep.subr.mxu0 %v2209
      %2748 = vmatpush1.msra.mxu0 %v2208
      %2749 = vmatprep.subr.mxu0 0.0
      %2750 = vmatpush2.msra.mxu0 0.0
      %2751 = vmatprep.subr.mxu0 0.0
      %2752 = vmatpush2.msra.mxu0 0.0
      %2753 = vmatprep.subr.mxu0 0.0
      %2754 = vmatpush2.msra.mxu0 0.0
      %2755 = vmatprep.subr.mxu0 0.0
      %2756 = vmatpush2.msra.mxu0 0.0
      %2757 = vmatprep.subr.mxu0 0.0
      %2758 = vmatpush2.msra.mxu0 0.0
      %2759 = vmatprep.subr.mxu0 0.0
      %2760 = vmatpush2.msra.mxu0 0.0
      %2761 = vmatprep.subr.mxu0 0.0
      %2762 = vmatpush2.msra.mxu0 0.0
      %2763 = vmatprep.subr.mxu0 0.0
      %2764 = vmatpush2.msra.mxu0 0.0
      %2765 = vmatprep.subr.mxu0 0.0
      %2766 = vmatpush2.msra.mxu0 0.0
      %2767 = vmatprep.subr.mxu0 0.0
      %2768 = vmatpush2.msra.mxu0 0.0
      %2769 = vmatprep.subr.mxu0 0.0
      %2770 = vmatpush2.msra.mxu0 0.0
      %2771 = vmatprep.subr.mxu0 0.0
      %2772 = vmatpush2.msra.mxu0 0.0
      %2773 = vmatprep.subr.mxu0 0.0
      %2774 = vmatpush2.msra.mxu0 0.0
      %2775 = vmatprep.subr.mxu0 0.0
      %2776 = vmatpush2.msra.mxu0 0.0
      %2777 = vmatprep.subr.mxu0 0.0
      %2778 = vmatpush2.msra.mxu0 0.0
      %2779 = vmatprep.subr.mxu0 0.0
      %2780 = vmatpush2.msra.mxu0 0.0
      %2781 = vmatprep.mubr.f32.mxu0 0.0
      %2782 = vmatmul.mubr.f32.gmra.mxu0 %v2360
      %v2783 = vpop.f32.mrf.mxu0
      %v2784 = vadd.f32 %v2342, %v2783
      %v2785 = vpop.f32.mrf.mxu0
      %v2786 = vadd.f32 %v2346, %v2785
      %2787 = vdwg.mxu0
      %2788 = vmatprep.subr.mxu0 0.0
      %2789 = vmatpush1.xpose.msra.mxu0 0.0
      %2790 = vmatprep.subr.mxu0 0.0
      %2791 = vmatpush1.xpose.msra.mxu0 0.0
      %2792 = vmatprep.subr.mxu0 0.0
      %2793 = vmatpush1.xpose.msra.mxu0 0.0
      %2794 = vmatprep.subr.mxu0 0.0
      %2795 = vmatpush1.xpose.msra.mxu0 0.0
      %2796 = vmatprep.subr.mxu0 0.0
      %2797 = vmatpush1.xpose.msra.mxu0 0.0
      %2798 = vmatprep.subr.mxu0 0.0
      %2799 = vmatpush1.xpose.msra.mxu0 0.0
      %2800 = vmatprep.subr.mxu0 0.0
      %2801 = vmatpush1.xpose.msra.mxu0 0.0
      %2802 = vmatprep.subr.mxu0 0.0
      %2803 = vmatpush1.xpose.msra.mxu0 0.0
      %2804 = vmatprep.subr.mxu0 0.0
      %2805 = vmatpush1.xpose.msra.mxu0 0.0
      %2806 = vmatprep.subr.mxu0 0.0
      %2807 = vmatpush1.xpose.msra.mxu0 0.0
      %2808 = vmatprep.subr.mxu0 0.0
      %2809 = vmatpush1.xpose.msra.mxu0 0.0
      %2810 = vmatprep.subr.mxu0 0.0
      %2811 = vmatpush1.xpose.msra.mxu0 0.0
      %2812 = vmatprep.subr.mxu0 0.0
      %2813 = vmatpush1.xpose.msra.mxu0 0.0
      %2814 = vmatprep.subr.mxu0 0.0
      %2815 = vmatpush1.xpose.msra.mxu0 0.0
      %2816 = vmatprep.subr.mxu0 0.0
      %2817 = vmatpush1.xpose.msra.mxu0 0.0
      %2818 = vmatprep.subr.mxu0 0.0
      %2819 = vmatpush1.xpose.msra.mxu0 %v2571
      %2820 = vmatprep.subr.mxu0 0.0
      %2821 = vmatpush2.xpose.msra.mxu0 0.0
      %2822 = vmatprep.subr.mxu0 0.0
      %2823 = vmatpush2.xpose.msra.mxu0 0.0
      %2824 = vmatprep.subr.mxu0 0.0
      %2825 = vmatpush2.xpose.msra.mxu0 0.0
      %2826 = vmatprep.subr.mxu0 0.0
      %2827 = vmatpush2.xpose.msra.mxu0 0.0
      %2828 = vmatprep.subr.mxu0 0.0
      %2829 = vmatpush2.xpose.msra.mxu0 0.0
      %2830 = vmatprep.subr.mxu0 0.0
      %2831 = vmatpush2.xpose.msra.mxu0 0.0
      %2832 = vmatprep.subr.mxu0 0.0
      %2833 = vmatpush2.xpose.msra.mxu0 0.0
      %2834 = vmatprep.subr.mxu0 0.0
      %2835 = vmatpush2.xpose.msra.mxu0 0.0
      %2836 = vmatprep.subr.mxu0 0.0
      %2837 = vmatpush2.xpose.msra.mxu0 0.0
      %2838 = vmatprep.subr.mxu0 0.0
      %2839 = vmatpush2.xpose.msra.mxu0 0.0
      %2840 = vmatprep.subr.mxu0 0.0
      %2841 = vmatpush2.xpose.msra.mxu0 0.0
      %2842 = vmatprep.subr.mxu0 0.0
      %2843 = vmatpush2.xpose.msra.mxu0 0.0
      %2844 = vmatprep.subr.mxu0 0.0
      %2845 = vmatpush2.xpose.msra.mxu0 0.0
      %2846 = vmatprep.subr.mxu0 0.0
      %2847 = vmatpush2.xpose.msra.mxu0 0.0
      %2848 = vmatprep.subr.mxu0 0.0
      %2849 = vmatpush2.xpose.msra.mxu0 0.0
      %2850 = vmatprep.subr.mxu0 0.0
      %2851 = vmatpush2.xpose.msra.mxu0 0.0
      %2852 = vmatprep.mubr.f32.mxu0 0.0
      %2853 = vmatmul.mubr.f32.gmra.mxu0 %v2429
      %v2854 = vpop.f32.mrf.mxu0
      %v2855 = vadd.f32 0.0, %v2854
      %v2856 = vpop.f32.mrf.mxu0
      %2857 = vdwg.mxu0
      %v2858 = vsel %vm1185, %v2855, -inf
      %2859 = vmax.xlane.f32.xlu0 %v2858
      %v2860 = vpop.xlane.xlu0 %2859
      %v2861 = vsub.f32 %v2855, %v2860
      %v2862 = vmul.f32 %v2861, 1.442695
      %v2863 = vpow.pop %v2862
      %v2864 = vsel %vm1185, %v2863, 0.0
      %2865 = vadd.xlane.f32.xlu0 %v2864
      %v2866 = vpop.xlane.xlu0 %2865
      %v2867 = vrcp.pop %v2866
      %v2868 = vmul.f32 %v2863, %v2867
      %v2870 = vsel %vm1185, %v2868, 0
      %2872 = vmatprep.subr.mxu0 0.0
      %2873 = vmatpush1.msra.mxu0 0.0
      %2874 = vmatprep.subr.mxu0 0.0
      %2875 = vmatpush1.msra.mxu0 0.0
      %2876 = vmatprep.subr.mxu0 0.0
      %2877 = vmatpush1.msra.mxu0 0.0
      %2878 = vmatprep.subr.mxu0 0.0
      %2879 = vmatpush1.msra.mxu0 0.0
      %2880 = vmatprep.subr.mxu0 0.0
      %2881 = vmatpush1.msra.mxu0 0.0
      %2882 = vmatprep.subr.mxu0 0.0
      %2883 = vmatpush1.msra.mxu0 0.0
      %2884 = vmatprep.subr.mxu0 0.0
      %2885 = vmatpush1.msra.mxu0 0.0
      %2886 = vmatprep.subr.mxu0 0.0
      %2887 = vmatpush1.msra.mxu0 0.0
      %2888 = vmatprep.subr.mxu0 0.0
      %2889 = vmatpush1.msra.mxu0 0.0
      %2890 = vmatprep.subr.mxu0 0.0
      %2891 = vmatpush1.msra.mxu0 0.0
      %2892 = vmatprep.subr.mxu0 0.0
      %2893 = vmatpush1.msra.mxu0 0.0
      %2894 = vmatprep.subr.mxu0 0.0
      %2895 = vmatpush1.msra.mxu0 0.0
      %2896 = vmatprep.subr.mxu0 0.0
      %2897 = vmatpush1.msra.mxu0 0.0
      %2898 = vmatprep.subr.mxu0 0.0
      %2899 = vmatpush1.msra.mxu0 0.0
      %2900 = vmatprep.subr.mxu0 0.0
      %2901 = vmatpush1.msra.mxu0 0.0
      %2902 = vmatprep.subr.mxu0 0.0
      %2903 = vmatpush1.msra.mxu0 %v2713
      %2904 = vmatprep.subr.mxu0 0.0
      %2905 = vmatpush2.msra.mxu0 0.0
      %2906 = vmatprep.subr.mxu0 0.0
      %2907 = vmatpush2.msra.mxu0 0.0
      %2908 = vmatprep.subr.mxu0 0.0
      %2909 = vmatpush2.msra.mxu0 0.0
      %2910 = vmatprep.subr.mxu0 0.0
      %2911 = vmatpush2.msra.mxu0 0.0
      %2912 = vmatprep.subr.mxu0 0.0
      %2913 = vmatpush2.msra.mxu0 0.0
      %2914 = vmatprep.subr.mxu0 0.0
      %2915 = vmatpush2.msra.mxu0 0.0
      %2916 = vmatprep.subr.mxu0 0.0
      %2917 = vmatpush2.msra.mxu0 0.0
      %2918 = vmatprep.subr.mxu0 0.0
      %2919 = vmatpush2.msra.mxu0 0.0
      %2920 = vmatprep.subr.mxu0 0.0
      %2921 = vmatpush2.msra.mxu0 0.0
      %2922 = vmatprep.subr.mxu0 0.0
      %2923 = vmatpush2.msra.mxu0 0.0
      %2924 = vmatprep.subr.mxu0 0.0
      %2925 = vmatpush2.msra.mxu0 0.0
      %2926 = vmatprep.subr.mxu0 0.0
      %2927 = vmatpush2.msra.mxu0 0.0
      %2928 = vmatprep.subr.mxu0 0.0
      %2929 = vmatpush2.msra.mxu0 0.0
      %2930 = vmatprep.subr.mxu0 0.0
      %2931 = vmatpush2.msra.mxu0 0.0
      %2932 = vmatprep.subr.mxu0 0.0
      %2933 = vmatpush2.msra.mxu0 0.0
      %2934 = vmatprep.subr.mxu0 0.0
      %2935 = vmatpush2.msra.mxu0 0.0
      %2936 = vmatprep.mubr.f32.mxu0 0.0
      %2937 = vmatmul.mubr.f32.gmra.mxu0 %v2870
      %v2938 = vpop.f32.mrf.mxu0
      %v2939 = vadd.f32 0.0, %v2938
      %v2940 = vpop.f32.mrf.mxu0
      %2941 = vdwg.mxu0
      %2942 = vmatprep.subr.mxu0 0.0
      %2943 = vmatpush1.xpose.msra.mxu0 0.0
      %2944 = vmatprep.subr.mxu0 0.0
      %2945 = vmatpush1.xpose.msra.mxu0 0.0
      %2946 = vmatprep.subr.mxu0 0.0
      %2947 = vmatpush1.xpose.msra.mxu0 0.0
      %2948 = vmatprep.subr.mxu0 0.0
      %2949 = vmatpush1.xpose.msra.mxu0 0.0
      %2950 = vmatprep.subr.mxu0 0.0
      %2951 = vmatpush1.xpose.msra.mxu0 0.0
      %2952 = vmatprep.subr.mxu0 0.0
      %2953 = vmatpush1.xpose.msra.mxu0 0.0
      %2954 = vmatprep.subr.mxu0 0.0
      %2955 = vmatpush1.xpose.msra.mxu0 0.0
      %2956 = vmatprep.subr.mxu0 0.0
      %2957 = vmatpush1.xpose.msra.mxu0 0.0
      %2958 = vmatprep.subr.mxu0 0.0
      %2959 = vmatpush1.xpose.msra.mxu0 0.0
      %2960 = vmatprep.subr.mxu0 0.0
      %2961 = vmatpush1.xpose.msra.mxu0 0.0
      %2962 = vmatprep.subr.mxu0 0.0
      %2963 = vmatpush1.xpose.msra.mxu0 0.0
      %2964 = vmatprep.subr.mxu0 0.0
      %2965 = vmatpush1.xpose.msra.mxu0 0.0
      %2966 = vmatprep.subr.mxu0 0.0
      %2967 = vmatpush1.xpose.msra.mxu0 0.0
      %2968 = vmatprep.subr.mxu0 0.0
      %2969 = vmatpush1.xpose.msra.mxu0 0.0
      %2970 = vmatprep.subr.mxu0 0.0
      %2971 = vmatpush1.xpose.msra.mxu0 0.0
      %2972 = vmatprep.subr.mxu0 0.0
      %2973 = vmatpush1.xpose.msra.mxu0 %v2573
      %2974 = vmatprep.subr.mxu0 0.0
      %2975 = vmatpush2.xpose.msra.mxu0 0.0
      %2976 = vmatprep.subr.mxu0 0.0
      %2977 = vmatpush2.xpose.msra.mxu0 0.0
      %2978 = vmatprep.subr.mxu0 0.0
      %2979 = vmatpush2.xpose.msra.mxu0 0.0
      %2980 = vmatprep.subr.mxu0 0.0
      %2981 = vmatpush2.xpose.msra.mxu0 0.0
      %2982 = vmatprep.subr.mxu0 0.0
      %2983 = vmatpush2.xpose.msra.mxu0 0.0
      %2984 = vmatprep.subr.mxu0 0.0
      %2985 = vmatpush2.xpose.msra.mxu0 0.0
      %2986 = vmatprep.subr.mxu0 0.0
      %2987 = vmatpush2.xpose.msra.mxu0 0.0
      %2988 = vmatprep.subr.mxu0 0.0
      %2989 = vmatpush2.xpose.msra.mxu0 0.0
      %2990 = vmatprep.subr.mxu0 0.0
      %2991 = vmatpush2.xpose.msra.mxu0 0.0
      %2992 = vmatprep.subr.mxu0 0.0
      %2993 = vmatpush2.xpose.msra.mxu0 0.0
      %2994 = vmatprep.subr.mxu0 0.0
      %2995 = vmatpush2.xpose.msra.mxu0 0.0
      %2996 = vmatprep.subr.mxu0 0.0
      %2997 = vmatpush2.xpose.msra.mxu0 0.0
      %2998 = vmatprep.subr.mxu0 0.0
      %2999 = vmatpush2.xpose.msra.mxu0 0.0
      %3000 = vmatprep.subr.mxu0 0.0
      %3001 = vmatpush2.xpose.msra.mxu0 0.0
      %3002 = vmatprep.subr.mxu0 0.0
      %3003 = vmatpush2.xpose.msra.mxu0 0.0
      %3004 = vmatprep.subr.mxu0 0.0
      %3005 = vmatpush2.xpose.msra.mxu0 0.0
      %3006 = vmatprep.mubr.f32.mxu0 0.0
      %3007 = vmatmul.mubr.f32.gmra.mxu0 %v2431
      %v3008 = vpop.f32.mrf.mxu0
      %v3009 = vadd.f32 0.0, %v3008
      %v3010 = vpop.f32.mrf.mxu0
      %3011 = vdwg.mxu0
      %v3012 = vsel %vm1185, %v3009, -inf
      %3013 = vmax.xlane.f32.xlu0 %v3012
      %v3014 = vpop.xlane.xlu0 %3013
      %v3015 = vsub.f32 %v3009, %v3014
      %v3016 = vmul.f32 %v3015, 1.442695
      %v3017 = vpow.pop %v3016
      %v3018 = vsel %vm1185, %v3017, 0.0
      %3019 = vadd.xlane.f32.xlu0 %v3018
      %v3020 = vpop.xlane.xlu0 %3019
      %v3021 = vrcp.pop %v3020
      %v3022 = vmul.f32 %v3017, %v3021
      %v3024 = vsel %vm1185, %v3022, 0
      %3026 = vmatprep.subr.mxu0 0.0
      %3027 = vmatpush1.msra.mxu0 0.0
      %3028 = vmatprep.subr.mxu0 0.0
      %3029 = vmatpush1.msra.mxu0 0.0
      %3030 = vmatprep.subr.mxu0 0.0
      %3031 = vmatpush1.msra.mxu0 0.0
      %3032 = vmatprep.subr.mxu0 0.0
      %3033 = vmatpush1.msra.mxu0 0.0
      %3034 = vmatprep.subr.mxu0 0.0
      %3035 = vmatpush1.msra.mxu0 0.0
      %3036 = vmatprep.subr.mxu0 0.0
      %3037 = vmatpush1.msra.mxu0 0.0
      %3038 = vmatprep.subr.mxu0 0.0
      %3039 = vmatpush1.msra.mxu0 0.0
      %3040 = vmatprep.subr.mxu0 0.0
      %3041 = vmatpush1.msra.mxu0 0.0
      %3042 = vmatprep.subr.mxu0 0.0
      %3043 = vmatpush1.msra.mxu0 0.0
      %3044 = vmatprep.subr.mxu0 0.0
      %3045 = vmatpush1.msra.mxu0 0.0
      %3046 = vmatprep.subr.mxu0 0.0
      %3047 = vmatpush1.msra.mxu0 0.0
      %3048 = vmatprep.subr.mxu0 0.0
      %3049 = vmatpush1.msra.mxu0 0.0
      %3050 = vmatprep.subr.mxu0 0.0
      %3051 = vmatpush1.msra.mxu0 0.0
      %3052 = vmatprep.subr.mxu0 0.0
      %3053 = vmatpush1.msra.mxu0 0.0
      %3054 = vmatprep.subr.mxu0 0.0
      %3055 = vmatpush1.msra.mxu0 0.0
      %3056 = vmatprep.subr.mxu0 0.0
      %3057 = vmatpush1.msra.mxu0 %v2715
      %3058 = vmatprep.subr.mxu0 0.0
      %3059 = vmatpush2.msra.mxu0 0.0
      %3060 = vmatprep.subr.mxu0 0.0
      %3061 = vmatpush2.msra.mxu0 0.0
      %3062 = vmatprep.subr.mxu0 0.0
      %3063 = vmatpush2.msra.mxu0 0.0
      %3064 = vmatprep.subr.mxu0 0.0
      %3065 = vmatpush2.msra.mxu0 0.0
      %3066 = vmatprep.subr.mxu0 0.0
      %3067 = vmatpush2.msra.mxu0 0.0
      %3068 = vmatprep.subr.mxu0 0.0
      %3069 = vmatpush2.msra.mxu0 0.0
      %3070 = vmatprep.subr.mxu0 0.0
      %3071 = vmatpush2.msra.mxu0 0.0
      %3072 = vmatprep.subr.mxu0 0.0
      %3073 = vmatpush2.msra.mxu0 0.0
      %3074 = vmatprep.subr.mxu0 0.0
      %3075 = vmatpush2.msra.mxu0 0.0
      %3076 = vmatprep.subr.mxu0 0.0
      %3077 = vmatpush2.msra.mxu0 0.0
      %3078 = vmatprep.subr.mxu0 0.0
      %3079 = vmatpush2.msra.mxu0 0.0
      %3080 = vmatprep.subr.mxu0 0.0
      %3081 = vmatpush2.msra.mxu0 0.0
      %3082 = vmatprep.subr.mxu0 0.0
      %3083 = vmatpush2.msra.mxu0 0.0
      %3084 = vmatprep.subr.mxu0 0.0
      %3085 = vmatpush2.msra.mxu0 0.0
      %3086 = vmatprep.subr.mxu0 0.0
      %3087 = vmatpush2.msra.mxu0 0.0
      %3088 = vmatprep.subr.mxu0 0.0
      %3089 = vmatpush2.msra.mxu0 0.0
      %3090 = vmatprep.mubr.f32.mxu0 0.0
      %3091 = vmatmul.mubr.f32.gmra.mxu0 %v3024
      %v3092 = vpop.f32.mrf.mxu0
      %v3093 = vadd.f32 0.0, %v3092
      %v3094 = vpop.f32.mrf.mxu0
      %3095 = vdwg.mxu0
      %3096 = vmatprep.subr.mxu0 0.0
      %3097 = vmatpush1.xpose.msra.mxu0 0.0
      %3098 = vmatprep.subr.mxu0 0.0
      %3099 = vmatpush1.xpose.msra.mxu0 0.0
      %3100 = vmatprep.subr.mxu0 0.0
      %3101 = vmatpush1.xpose.msra.mxu0 0.0
      %3102 = vmatprep.subr.mxu0 0.0
      %3103 = vmatpush1.xpose.msra.mxu0 0.0
      %3104 = vmatprep.subr.mxu0 0.0
      %3105 = vmatpush1.xpose.msra.mxu0 0.0
      %3106 = vmatprep.subr.mxu0 0.0
      %3107 = vmatpush1.xpose.msra.mxu0 0.0
      %3108 = vmatprep.subr.mxu0 0.0
      %3109 = vmatpush1.xpose.msra.mxu0 0.0
      %3110 = vmatprep.subr.mxu0 0.0
      %3111 = vmatpush1.xpose.msra.mxu0 0.0
      %3112 = vmatprep.subr.mxu0 0.0
      %3113 = vmatpush1.xpose.msra.mxu0 0.0
      %3114 = vmatprep.subr.mxu0 0.0
      %3115 = vmatpush1.xpose.msra.mxu0 0.0
      %3116 = vmatprep.subr.mxu0 0.0
      %3117 = vmatpush1.xpose.msra.mxu0 0.0
      %3118 = vmatprep.subr.mxu0 0.0
      %3119 = vmatpush1.xpose.msra.mxu0 0.0
      %3120 = vmatprep.subr.mxu0 0.0
      %3121 = vmatpush1.xpose.msra.mxu0 0.0
      %3122 = vmatprep.subr.mxu0 0.0
      %3123 = vmatpush1.xpose.msra.mxu0 0.0
      %3124 = vmatprep.subr.mxu0 0.0
      %3125 = vmatpush1.xpose.msra.mxu0 0.0
      %3126 = vmatprep.subr.mxu0 0.0
      %3127 = vmatpush1.xpose.msra.mxu0 %v2642
      %3128 = vmatprep.subr.mxu0 0.0
      %3129 = vmatpush2.xpose.msra.mxu0 0.0
      %3130 = vmatprep.subr.mxu0 0.0
      %3131 = vmatpush2.xpose.msra.mxu0 0.0
      %3132 = vmatprep.subr.mxu0 0.0
      %3133 = vmatpush2.xpose.msra.mxu0 0.0
      %3134 = vmatprep.subr.mxu0 0.0
      %3135 = vmatpush2.xpose.msra.mxu0 0.0
      %3136 = vmatprep.subr.mxu0 0.0
      %3137 = vmatpush2.xpose.msra.mxu0 0.0
      %3138 = vmatprep.subr.mxu0 0.0
      %3139 = vmatpush2.xpose.msra.mxu0 0.0
      %3140 = vmatprep.subr.mxu0 0.0
      %3141 = vmatpush2.xpose.msra.mxu0 0.0
      %3142 = vmatprep.subr.mxu0 0.0
      %3143 = vmatpush2.xpose.msra.mxu0 0.0
      %3144 = vmatprep.subr.mxu0 0.0
      %3145 = vmatpush2.xpose.msra.mxu0 0.0
      %3146 = vmatprep.subr.mxu0 0.0
      %3147 = vmatpush2.xpose.msra.mxu0 0.0
      %3148 = vmatprep.subr.mxu0 0.0
      %3149 = vmatpush2.xpose.msra.mxu0 0.0
      %3150 = vmatprep.subr.mxu0 0.0
      %3151 = vmatpush2.xpose.msra.mxu0 0.0
      %3152 = vmatprep.subr.mxu0 0.0
      %3153 = vmatpush2.xpose.msra.mxu0 0.0
      %3154 = vmatprep.subr.mxu0 0.0
      %3155 = vmatpush2.xpose.msra.mxu0 0.0
      %3156 = vmatprep.subr.mxu0 0.0
      %3157 = vmatpush2.xpose.msra.mxu0 0.0
      %3158 = vmatprep.subr.mxu0 0.0
      %3159 = vmatpush2.xpose.msra.mxu0 0.0
      %3160 = vmatprep.mubr.f32.mxu0 0.0
      %3161 = vmatmul.mubr.f32.gmra.mxu0 %v2500
      %v3162 = vpop.f32.mrf.mxu0
      %v3163 = vadd.f32 0.0, %v3162
      %v3164 = vpop.f32.mrf.mxu0
      %3165 = vdwg.mxu0
      %v3166 = vsel %vm1185, %v3163, -inf
      %3167 = vmax.xlane.f32.xlu0 %v3166
      %v3168 = vpop.xlane.xlu0 %3167
      %v3169 = vsub.f32 %v3163, %v3168
      %v3170 = vmul.f32 %v3169, 1.442695
      %v3171 = vpow.pop %v3170
      %v3172 = vsel %vm1185, %v3171, 0.0
      %3173 = vadd.xlane.f32.xlu0 %v3172
      %v3174 = vpop.xlane.xlu0 %3173
      %v3175 = vrcp.pop %v3174
      %v3176 = vmul.f32 %v3171, %v3175
      %v3178 = vsel %vm1185, %v3176, 0
      %3180 = vmatprep.subr.mxu0 0.0
      %3181 = vmatpush1.msra.mxu0 0.0
      %3182 = vmatprep.subr.mxu0 0.0
      %3183 = vmatpush1.msra.mxu0 0.0
      %3184 = vmatprep.subr.mxu0 0.0
      %3185 = vmatpush1.msra.mxu0 0.0
      %3186 = vmatprep.subr.mxu0 0.0
      %3187 = vmatpush1.msra.mxu0 0.0
      %3188 = vmatprep.subr.mxu0 0.0
      %3189 = vmatpush1.msra.mxu0 0.0
      %3190 = vmatprep.subr.mxu0 0.0
      %3191 = vmatpush1.msra.mxu0 0.0
      %3192 = vmatprep.subr.mxu0 0.0
      %3193 = vmatpush1.msra.mxu0 0.0
      %3194 = vmatprep.subr.mxu0 0.0
      %3195 = vmatpush1.msra.mxu0 0.0
      %3196 = vmatprep.subr.mxu0 0.0
      %3197 = vmatpush1.msra.mxu0 0.0
      %3198 = vmatprep.subr.mxu0 0.0
      %3199 = vmatpush1.msra.mxu0 0.0
      %3200 = vmatprep.subr.mxu0 0.0
      %3201 = vmatpush1.msra.mxu0 0.0
      %3202 = vmatprep.subr.mxu0 0.0
      %3203 = vmatpush1.msra.mxu0 0.0
      %3204 = vmatprep.subr.mxu0 0.0
      %3205 = vmatpush1.msra.mxu0 0.0
      %3206 = vmatprep.subr.mxu0 0.0
      %3207 = vmatpush1.msra.mxu0 0.0
      %3208 = vmatprep.subr.mxu0 0.0
      %3209 = vmatpush1.msra.mxu0 0.0
      %3210 = vmatprep.subr.mxu0 0.0
      %3211 = vmatpush1.msra.mxu0 %v2784
      %3212 = vmatprep.subr.mxu0 0.0
      %3213 = vmatpush2.msra.mxu0 0.0
      %3214 = vmatprep.subr.mxu0 0.0
      %3215 = vmatpush2.msra.mxu0 0.0
      %3216 = vmatprep.subr.mxu0 0.0
      %3217 = vmatpush2.msra.mxu0 0.0
      %3218 = vmatprep.subr.mxu0 0.0
      %3219 = vmatpush2.msra.mxu0 0.0
      %3220 = vmatprep.subr.mxu0 0.0
      %3221 = vmatpush2.msra.mxu0 0.0
      %3222 = vmatprep.subr.mxu0 0.0
      %3223 = vmatpush2.msra.mxu0 0.0
      %3224 = vmatprep.subr.mxu0 0.0
      %3225 = vmatpush2.msra.mxu0 0.0
      %3226 = vmatprep.subr.mxu0 0.0
      %3227 = vmatpush2.msra.mxu0 0.0
      %3228 = vmatprep.subr.mxu0 0.0
      %3229 = vmatpush2.msra.mxu0 0.0
      %3230 = vmatprep.subr.mxu0 0.0
      %3231 = vmatpush2.msra.mxu0 0.0
      %3232 = vmatprep.subr.mxu0 0.0
      %3233 = vmatpush2.msra.mxu0 0.0
      %3234 = vmatprep.subr.mxu0 0.0
      %3235 = vmatpush2.msra.mxu0 0.0
      %3236 = vmatprep.subr.mxu0 0.0
      %3237 = vmatpush2.msra.mxu0 0.0
      %3238 = vmatprep.subr.mxu0 0.0
      %3239 = vmatpush2.msra.mxu0 0.0
      %3240 = vmatprep.subr.mxu0 0.0
      %3241 = vmatpush2.msra.mxu0 0.0
      %3242 = vmatprep.subr.mxu0 0.0
      %3243 = vmatpush2.msra.mxu0 0.0
      %3244 = vmatprep.mubr.f32.mxu0 0.0
      %3245 = vmatmul.mubr.f32.gmra.mxu0 %v3178
      %v3246 = vpop.f32.mrf.mxu0
      %v3247 = vadd.f32 0.0, %v3246
      %v3248 = vpop.f32.mrf.mxu0
      %3249 = vdwg.mxu0
      %3250 = vmatprep.subr.mxu0 0.0
      %3251 = vmatpush1.xpose.msra.mxu0 0.0
      %3252 = vmatprep.subr.mxu0 0.0
      %3253 = vmatpush1.xpose.msra.mxu0 0.0
      %3254 = vmatprep.subr.mxu0 0.0
      %3255 = vmatpush1.xpose.msra.mxu0 0.0
      %3256 = vmatprep.subr.mxu0 0.0
      %3257 = vmatpush1.xpose.msra.mxu0 0.0
      %3258 = vmatprep.subr.mxu0 0.0
      %3259 = vmatpush1.xpose.msra.mxu0 0.0
      %3260 = vmatprep.subr.mxu0 0.0
      %3261 = vmatpush1.xpose.msra.mxu0 0.0
      %3262 = vmatprep.subr.mxu0 0.0
      %3263 = vmatpush1.xpose.msra.mxu0 0.0
      %3264 = vmatprep.subr.mxu0 0.0
      %3265 = vmatpush1.xpose.msra.mxu0 0.0
      %3266 = vmatprep.subr.mxu0 0.0
      %3267 = vmatpush1.xpose.msra.mxu0 0.0
      %3268 = vmatprep.subr.mxu0 0.0
      %3269 = vmatpush1.xpose.msra.mxu0 0.0
      %3270 = vmatprep.subr.mxu0 0.0
      %3271 = vmatpush1.xpose.msra.mxu0 0.0
      %3272 = vmatprep.subr.mxu0 0.0
      %3273 = vmatpush1.xpose.msra.mxu0 0.0
      %3274 = vmatprep.subr.mxu0 0.0
      %3275 = vmatpush1.xpose.msra.mxu0 0.0
      %3276 = vmatprep.subr.mxu0 0.0
      %3277 = vmatpush1.xpose.msra.mxu0 0.0
      %3278 = vmatprep.subr.mxu0 0.0
      %3279 = vmatpush1.xpose.msra.mxu0 0.0
      %3280 = vmatprep.subr.mxu0 0.0
      %3281 = vmatpush1.xpose.msra.mxu0 %v2644
      %3282 = vmatprep.subr.mxu0 0.0
      %3283 = vmatpush2.xpose.msra.mxu0 0.0
      %3284 = vmatprep.subr.mxu0 0.0
      %3285 = vmatpush2.xpose.msra.mxu0 0.0
      %3286 = vmatprep.subr.mxu0 0.0
      %3287 = vmatpush2.xpose.msra.mxu0 0.0
      %3288 = vmatprep.subr.mxu0 0.0
      %3289 = vmatpush2.xpose.msra.mxu0 0.0
      %3290 = vmatprep.subr.mxu0 0.0
      %3291 = vmatpush2.xpose.msra.mxu0 0.0
      %3292 = vmatprep.subr.mxu0 0.0
      %3293 = vmatpush2.xpose.msra.mxu0 0.0
      %3294 = vmatprep.subr.mxu0 0.0
      %3295 = vmatpush2.xpose.msra.mxu0 0.0
      %3296 = vmatprep.subr.mxu0 0.0
      %3297 = vmatpush2.xpose.msra.mxu0 0.0
      %3298 = vmatprep.subr.mxu0 0.0
      %3299 = vmatpush2.xpose.msra.mxu0 0.0
      %3300 = vmatprep.subr.mxu0 0.0
      %3301 = vmatpush2.xpose.msra.mxu0 0.0
      %3302 = vmatprep.subr.mxu0 0.0
      %3303 = vmatpush2.xpose.msra.mxu0 0.0
      %3304 = vmatprep.subr.mxu0 0.0
      %3305 = vmatpush2.xpose.msra.mxu0 0.0
      %3306 = vmatprep.subr.mxu0 0.0
      %3307 = vmatpush2.xpose.msra.mxu0 0.0
      %3308 = vmatprep.subr.mxu0 0.0
      %3309 = vmatpush2.xpose.msra.mxu0 0.0
      %3310 = vmatprep.subr.mxu0 0.0
      %3311 = vmatpush2.xpose.msra.mxu0 0.0
      %3312 = vmatprep.subr.mxu0 0.0
      %3313 = vmatpush2.xpose.msra.mxu0 0.0
      %3314 = vmatprep.mubr.f32.mxu0 0.0
      %3315 = vmatmul.mubr.f32.gmra.mxu0 %v2502
      %v3316 = vpop.f32.mrf.mxu0
      %v3317 = vadd.f32 0.0, %v3316
      %v3318 = vpop.f32.mrf.mxu0
      %3319 = vdwg.mxu0
      %v3320 = vsel %vm1185, %v3317, -inf
      %3321 = vmax.xlane.f32.xlu0 %v3320
      %v3322 = vpop.xlane.xlu0 %3321
      %v3323 = vsub.f32 %v3317, %v3322
      %v3324 = vmul.f32 %v3323, 1.442695
      %v3325 = vpow.pop %v3324
      %v3326 = vsel %vm1185, %v3325, 0.0
      %3327 = vadd.xlane.f32.xlu0 %v3326
      %v3328 = vpop.xlane.xlu0 %3327
      %v3329 = vrcp.pop %v3328
      %v3330 = vmul.f32 %v3325, %v3329
      %v3332 = vsel %vm1185, %v3330, 0
      %3334 = vmatprep.subr.mxu0 0.0
      %3335 = vmatpush1.msra.mxu0 0.0
      %3336 = vmatprep.subr.mxu0 0.0
      %3337 = vmatpush1.msra.mxu0 0.0
      %3338 = vmatprep.subr.mxu0 0.0
      %3339 = vmatpush1.msra.mxu0 0.0
      %3340 = vmatprep.subr.mxu0 0.0
      %3341 = vmatpush1.msra.mxu0 0.0
      %3342 = vmatprep.subr.mxu0 0.0
      %3343 = vmatpush1.msra.mxu0 0.0
      %3344 = vmatprep.subr.mxu0 0.0
      %3345 = vmatpush1.msra.mxu0 0.0
      %3346 = vmatprep.subr.mxu0 0.0
      %3347 = vmatpush1.msra.mxu0 0.0
      %3348 = vmatprep.subr.mxu0 0.0
      %3349 = vmatpush1.msra.mxu0 0.0
      %3350 = vmatprep.subr.mxu0 0.0
      %3351 = vmatpush1.msra.mxu0 0.0
      %3352 = vmatprep.subr.mxu0 0.0
      %3353 = vmatpush1.msra.mxu0 0.0
      %3354 = vmatprep.subr.mxu0 0.0
      %3355 = vmatpush1.msra.mxu0 0.0
      %3356 = vmatprep.subr.mxu0 0.0
      %3357 = vmatpush1.msra.mxu0 0.0
      %3358 = vmatprep.subr.mxu0 0.0
      %3359 = vmatpush1.msra.mxu0 0.0
      %3360 = vmatprep.subr.mxu0 0.0
      %3361 = vmatpush1.msra.mxu0 0.0
      %3362 = vmatprep.subr.mxu0 0.0
      %3363 = vmatpush1.msra.mxu0 0.0
      %3364 = vmatprep.subr.mxu0 0.0
      %3365 = vmatpush1.msra.mxu0 %v2786
      %3366 = vmatprep.subr.mxu0 0.0
      %3367 = vmatpush2.msra.mxu0 0.0
      %3368 = vmatprep.subr.mxu0 0.0
      %3369 = vmatpush2.msra.mxu0 0.0
      %3370 = vmatprep.subr.mxu0 0.0
      %3371 = vmatpush2.msra.mxu0 0.0
      %3372 = vmatprep.subr.mxu0 0.0
      %3373 = vmatpush2.msra.mxu0 0.0
      %3374 = vmatprep.subr.mxu0 0.0
      %3375 = vmatpush2.msra.mxu0 0.0
      %3376 = vmatprep.subr.mxu0 0.0
      %3377 = vmatpush2.msra.mxu0 0.0
      %3378 = vmatprep.subr.mxu0 0.0
      %3379 = vmatpush2.msra.mxu0 0.0
      %3380 = vmatprep.subr.mxu0 0.0
      %3381 = vmatpush2.msra.mxu0 0.0
      %3382 = vmatprep.subr.mxu0 0.0
      %3383 = vmatpush2.msra.mxu0 0.0
      %3384 = vmatprep.subr.mxu0 0.0
      %3385 = vmatpush2.msra.mxu0 0.0
      %3386 = vmatprep.subr.mxu0 0.0
      %3387 = vmatpush2.msra.mxu0 0.0
      %3388 = vmatprep.subr.mxu0 0.0
      %3389 = vmatpush2.msra.mxu0 0.0
      %3390 = vmatprep.subr.mxu0 0.0
      %3391 = vmatpush2.msra.mxu0 0.0
      %3392 = vmatprep.subr.mxu0 0.0
      %3393 = vmatpush2.msra.mxu0 0.0
      %3394 = vmatprep.subr.mxu0 0.0
      %3395 = vmatpush2.msra.mxu0 0.0
      %3396 = vmatprep.subr.mxu0 0.0
      %3397 = vmatpush2.msra.mxu0 0.0
      %3398 = vmatprep.mubr.f32.mxu0 0.0
      %3399 = vmatmul.mubr.f32.gmra.mxu0 %v3332
      %v3400 = vpop.f32.mrf.mxu0
      %v3401 = vadd.f32 0.0, %v3400
      %v3402 = vpop.f32.mrf.mxu0
      %3403 = vdwg.mxu0
      %s3404 = scalar_lea.vmem %s5, 512
      %v3405 = vld [vmem:[%s3404] sm:$0xff]
      %v3406 = vld [vmem:[%s3404 + $0x8] sm:$0xff]
      %v3407 = vld [vmem:[%s3404 + $0x10] sm:$0xff]
      %v3408 = vld [vmem:[%s3404 + $0x18] sm:$0xff]
      %v3409 = vld [vmem:[%s3404 + $0x20] sm:$0xff]
      %v3410 = vld [vmem:[%s3404 + $0x28] sm:$0xff]
      %v3411 = vld [vmem:[%s3404 + $0x30] sm:$0xff]
      %v3412 = vld [vmem:[%s3404 + $0x38] sm:$0xff]
      %v3413 = vld [vmem:[%s3404 + $0x40] sm:$0xff]
      %v3414 = vld [vmem:[%s3404 + $0x48] sm:$0xff]
      %v3415 = vld [vmem:[%s3404 + $0x50] sm:$0xff]
      %v3416 = vld [vmem:[%s3404 + $0x58] sm:$0xff]
      %v3417 = vld [vmem:[%s3404 + $0x60] sm:$0xff]
      %v3418 = vld [vmem:[%s3404 + $0x68] sm:$0xff]
      %v3419 = vld [vmem:[%s3404 + $0x70] sm:$0xff]
      %v3420 = vld [vmem:[%s3404 + $0x78] sm:$0xff]
      %v3421 = vld [vmem:[%s3404 + $0x80] sm:$0xff]
      %v3422 = vld [vmem:[%s3404 + $0x88] sm:$0xff]
      %v3423 = vld [vmem:[%s3404 + $0x90] sm:$0xff]
      %v3424 = vld [vmem:[%s3404 + $0x98] sm:$0xff]
      %v3425 = vld [vmem:[%s3404 + $0xa0] sm:$0xff]
      %v3426 = vld [vmem:[%s3404 + $0xa8] sm:$0xff]
      %v3427 = vld [vmem:[%s3404 + $0xb0] sm:$0xff]
      %v3428 = vld [vmem:[%s3404 + $0xb8] sm:$0xff]
      %v3429 = vld [vmem:[%s3404 + $0xc0] sm:$0xff]
      %v3430 = vld [vmem:[%s3404 + $0xc8] sm:$0xff]
      %v3431 = vld [vmem:[%s3404 + $0xd0] sm:$0xff]
      %v3432 = vld [vmem:[%s3404 + $0xd8] sm:$0xff]
      %v3433 = vld [vmem:[%s3404 + $0xe0] sm:$0xff]
      %v3434 = vld [vmem:[%s3404 + $0xe8] sm:$0xff]
      %v3435 = vld [vmem:[%s3404 + $0xf0] sm:$0xff]
      %v3436 = vld [vmem:[%s3404 + $0xf8] sm:$0xff]
      %v3437 = vld [vmem:[%s3404 + $0x100] sm:$0xff]
      %v3438 = vld [vmem:[%s3404 + $0x108] sm:$0xff]
      %v3439 = vld [vmem:[%s3404 + $0x110] sm:$0xff]
      %v3440 = vld [vmem:[%s3404 + $0x118] sm:$0xff]
      %v3441 = vld [vmem:[%s3404 + $0x120] sm:$0xff]
      %v3442 = vld [vmem:[%s3404 + $0x128] sm:$0xff]
      %v3443 = vld [vmem:[%s3404 + $0x130] sm:$0xff]
      %v3444 = vld [vmem:[%s3404 + $0x138] sm:$0xff]
      %v3445 = vld [vmem:[%s3404 + $0x140] sm:$0xff]
      %v3446 = vld [vmem:[%s3404 + $0x148] sm:$0xff]
      %v3447 = vld [vmem:[%s3404 + $0x150] sm:$0xff]
      %v3448 = vld [vmem:[%s3404 + $0x158] sm:$0xff]
      %v3449 = vld [vmem:[%s3404 + $0x160] sm:$0xff]
      %v3450 = vld [vmem:[%s3404 + $0x168] sm:$0xff]
      %v3451 = vld [vmem:[%s3404 + $0x170] sm:$0xff]
      %v3452 = vld [vmem:[%s3404 + $0x178] sm:$0xff]
      %v3453 = vld [vmem:[%s3404 + $0x180] sm:$0xff]
      %v3454 = vld [vmem:[%s3404 + $0x188] sm:$0xff]
      %v3455 = vld [vmem:[%s3404 + $0x190] sm:$0xff]
      %v3456 = vld [vmem:[%s3404 + $0x198] sm:$0xff]
      %v3457 = vld [vmem:[%s3404 + $0x1a0] sm:$0xff]
      %v3458 = vld [vmem:[%s3404 + $0x1a8] sm:$0xff]
      %v3459 = vld [vmem:[%s3404 + $0x1b0] sm:$0xff]
      %v3460 = vld [vmem:[%s3404 + $0x1b8] sm:$0xff]
      %v3461 = vld [vmem:[%s3404 + $0x1c0] sm:$0xff]
      %v3462 = vld [vmem:[%s3404 + $0x1c8] sm:$0xff]
      %v3463 = vld [vmem:[%s3404 + $0x1d0] sm:$0xff]
      %v3464 = vld [vmem:[%s3404 + $0x1d8] sm:$0xff]
      %v3465 = vld [vmem:[%s3404 + $0x1e0] sm:$0xff]
      %v3466 = vld [vmem:[%s3404 + $0x1e8] sm:$0xff]
      %v3467 = vld [vmem:[%s3404 + $0x1f0] sm:$0xff]
      %v3468 = vld [vmem:[%s3404 + $0x1f8] sm:$0xff]
      %s3469 = scalar_lea.vmem %s6, 1
      %v3470 = vld [vmem:[%s3469] sm:$0x1]
      %v3472 = vlaneseq
      %v3473 = vshrl.u32 %v3472, 7
      %v3474 = vsub.s32 0, %v3473
      %v3475 = vrot.slane %v3470, %v3474
      %3477 = vmatprep.subr.mxu0 0.0
      %3478 = vmatpush1.msra.mxu0 %v3420
      %3479 = vmatprep.subr.mxu0 0.0
      %3480 = vmatpush1.msra.mxu0 %v3419
      %3481 = vmatprep.subr.mxu0 0.0
      %3482 = vmatpush1.msra.mxu0 %v3418
      %3483 = vmatprep.subr.mxu0 0.0
      %3484 = vmatpush1.msra.mxu0 %v3417
      %3485 = vmatprep.subr.mxu0 0.0
      %3486 = vmatpush1.msra.mxu0 %v3416
      %3487 = vmatprep.subr.mxu0 0.0
      %3488 = vmatpush1.msra.mxu0 %v3415
      %3489 = vmatprep.subr.mxu0 0.0
      %3490 = vmatpush1.msra.mxu0 %v3414
      %3491 = vmatprep.subr.mxu0 0.0
      %3492 = vmatpush1.msra.mxu0 %v3413
      %3493 = vmatprep.subr.mxu0 0.0
      %3494 = vmatpush1.msra.mxu0 %v3412
      %3495 = vmatprep.subr.mxu0 0.0
      %3496 = vmatpush1.msra.mxu0 %v3411
      %3497 = vmatprep.subr.mxu0 0.0
      %3498 = vmatpush1.msra.mxu0 %v3410
      %3499 = vmatprep.subr.mxu0 0.0
      %3500 = vmatpush1.msra.mxu0 %v3409
      %3501 = vmatprep.subr.mxu0 0.0
      %3502 = vmatpush1.msra.mxu0 %v3408
      %3503 = vmatprep.subr.mxu0 0.0
      %3504 = vmatpush1.msra.mxu0 %v3407
      %3505 = vmatprep.subr.mxu0 0.0
      %3506 = vmatpush1.msra.mxu0 %v3406
      %3507 = vmatprep.subr.mxu0 0.0
      %3508 = vmatpush1.msra.mxu0 %v3405
      %3509 = vmatprep.subr.mxu0 0.0
      %3510 = vmatpush2.msra.mxu0 %v3436
      %3511 = vmatprep.subr.mxu0 0.0
      %3512 = vmatpush2.msra.mxu0 %v3435
      %3513 = vmatprep.subr.mxu0 0.0
      %3514 = vmatpush2.msra.mxu0 %v3434
      %3515 = vmatprep.subr.mxu0 0.0
      %3516 = vmatpush2.msra.mxu0 %v3433
      %3517 = vmatprep.subr.mxu0 0.0
      %3518 = vmatpush2.msra.mxu0 %v3432
      %3519 = vmatprep.subr.mxu0 0.0
      %3520 = vmatpush2.msra.mxu0 %v3431
      %3521 = vmatprep.subr.mxu0 0.0
      %3522 = vmatpush2.msra.mxu0 %v3430
      %3523 = vmatprep.subr.mxu0 0.0
      %3524 = vmatpush2.msra.mxu0 %v3429
      %3525 = vmatprep.subr.mxu0 0.0
      %3526 = vmatpush2.msra.mxu0 %v3428
      %3527 = vmatprep.subr.mxu0 0.0
      %3528 = vmatpush2.msra.mxu0 %v3427
      %3529 = vmatprep.subr.mxu0 0.0
      %3530 = vmatpush2.msra.mxu0 %v3426
      %3531 = vmatprep.subr.mxu0 0.0
      %3532 = vmatpush2.msra.mxu0 %v3425
      %3533 = vmatprep.subr.mxu0 0.0
      %3534 = vmatpush2.msra.mxu0 %v3424
      %3535 = vmatprep.subr.mxu0 0.0
      %3536 = vmatpush2.msra.mxu0 %v3423
      %3537 = vmatprep.subr.mxu0 0.0
      %3538 = vmatpush2.msra.mxu0 %v3422
      %3539 = vmatprep.subr.mxu0 0.0
      %3540 = vmatpush2.msra.mxu0 %v3421
      %3541 = vmatprep.mubr.f32.mxu0 %v3093
      %3542 = vmatmul.mubr.f32.gmra.mxu0 %v2939
      %v3543 = vpop.f32.mrf.mxu0
      %v3544 = vadd.f32 %v3475, %v3543
      %v3545 = vpop.f32.mrf.mxu0
      %3546 = vdwg.mxu0
      %3547 = vmatprep.subr.mxu0 0.0
      %3548 = vmatpush1.msra.mxu0 %v3452
      %3549 = vmatprep.subr.mxu0 0.0
      %3550 = vmatpush1.msra.mxu0 %v3451
      %3551 = vmatprep.subr.mxu0 0.0
      %3552 = vmatpush1.msra.mxu0 %v3450
      %3553 = vmatprep.subr.mxu0 0.0
      %3554 = vmatpush1.msra.mxu0 %v3449
      %3555 = vmatprep.subr.mxu0 0.0
      %3556 = vmatpush1.msra.mxu0 %v3448
      %3557 = vmatprep.subr.mxu0 0.0
      %3558 = vmatpush1.msra.mxu0 %v3447
      %3559 = vmatprep.subr.mxu0 0.0
      %3560 = vmatpush1.msra.mxu0 %v3446
      %3561 = vmatprep.subr.mxu0 0.0
      %3562 = vmatpush1.msra.mxu0 %v3445
      %3563 = vmatprep.subr.mxu0 0.0
      %3564 = vmatpush1.msra.mxu0 %v3444
      %3565 = vmatprep.subr.mxu0 0.0
      %3566 = vmatpush1.msra.mxu0 %v3443
      %3567 = vmatprep.subr.mxu0 0.0
      %3568 = vmatpush1.msra.mxu0 %v3442
      %3569 = vmatprep.subr.mxu0 0.0
      %3570 = vmatpush1.msra.mxu0 %v3441
      %3571 = vmatprep.subr.mxu0 0.0
      %3572 = vmatpush1.msra.mxu0 %v3440
      %3573 = vmatprep.subr.mxu0 0.0
      %3574 = vmatpush1.msra.mxu0 %v3439
      %3575 = vmatprep.subr.mxu0 0.0
      %3576 = vmatpush1.msra.mxu0 %v3438
      %3577 = vmatprep.subr.mxu0 0.0
      %3578 = vmatpush1.msra.mxu0 %v3437
      %3579 = vmatprep.subr.mxu0 0.0
      %3580 = vmatpush2.msra.mxu0 %v3468
      %3581 = vmatprep.subr.mxu0 0.0
      %3582 = vmatpush2.msra.mxu0 %v3467
      %3583 = vmatprep.subr.mxu0 0.0
      %3584 = vmatpush2.msra.mxu0 %v3466
      %3585 = vmatprep.subr.mxu0 0.0
      %3586 = vmatpush2.msra.mxu0 %v3465
      %3587 = vmatprep.subr.mxu0 0.0
      %3588 = vmatpush2.msra.mxu0 %v3464
      %3589 = vmatprep.subr.mxu0 0.0
      %3590 = vmatpush2.msra.mxu0 %v3463
      %3591 = vmatprep.subr.mxu0 0.0
      %3592 = vmatpush2.msra.mxu0 %v3462
      %3593 = vmatprep.subr.mxu0 0.0
      %3594 = vmatpush2.msra.mxu0 %v3461
      %3595 = vmatprep.subr.mxu0 0.0
      %3596 = vmatpush2.msra.mxu0 %v3460
      %3597 = vmatprep.subr.mxu0 0.0
      %3598 = vmatpush2.msra.mxu0 %v3459
      %3599 = vmatprep.subr.mxu0 0.0
      %3600 = vmatpush2.msra.mxu0 %v3458
      %3601 = vmatprep.subr.mxu0 0.0
      %3602 = vmatpush2.msra.mxu0 %v3457
      %3603 = vmatprep.subr.mxu0 0.0
      %3604 = vmatpush2.msra.mxu0 %v3456
      %3605 = vmatprep.subr.mxu0 0.0
      %3606 = vmatpush2.msra.mxu0 %v3455
      %3607 = vmatprep.subr.mxu0 0.0
      %3608 = vmatpush2.msra.mxu0 %v3454
      %3609 = vmatprep.subr.mxu0 0.0
      %3610 = vmatpush2.msra.mxu0 %v3453
      %3611 = vmatprep.mubr.f32.mxu0 %v3401
      %3612 = vmatmul.mubr.f32.gmra.mxu0 %v3247
      %v3613 = vpop.f32.mrf.mxu0
      %v3614 = vadd.f32 %v3544, %v3613
      %v3615 = vpop.f32.mrf.mxu0
      %3616 = vdwg.mxu0
      %v3617 = vadd.f32 %v3614, %v2196
      %s3618 = scalar_lea.vmem %s7, 1
      %v3619 = vld [vmem:[%s3618] sm:$0x1]
      %s3620 = scalar_lea.vmem %s8, 1
      %v3621 = vld [vmem:[%s3620] sm:$0x1]
      %v3622 = vsel %vm495, %v3617, 0.0
      %3623 = vadd.xlane.f32.xlu0 %v3622
      %v3624 = vpop.xlane.xlu0 %3623
      %v3625 = vmul.f32 %v3624, %v499
      %v3626 = vmul.f32 %v3617, %v3617
      %v3627 = vsel %vm495, %v3626, 0.0
      %3628 = vadd.xlane.f32.xlu0 %v3627
      %v3629 = vpop.xlane.xlu0 %3628
      %v3630 = vmul.f32 %v3629, %v499
      %v3631 = vmul.f32 %v3625, %v3625
      %v3632 = vsub.f32 %v3630, %v3631
      %v3633 = vsub.f32 %v3617, %v3625
      %v3634 = vadd.f32 %v3632, 1e-05
      %v3635 = vrsqrt.pop %v3634
      %v3636 = vmul.f32 %v3633, %v3635
      %v3638 = vlaneseq
      %v3639 = vshrl.u32 %v3638, 7
      %v3640 = vsub.s32 0, %v3639
      %v3641 = vrot.slane %v3619, %v3640
      %v3643 = vmul.f32 %v3636, %v3641
      %v3645 = vlaneseq
      %v3646 = vshrl.u32 %v3645, 7
      %v3647 = vsub.s32 0, %v3646
      %v3648 = vrot.slane %v3621, %v3647
      %v3650 = vadd.f32 %v3643, %v3648
      %s3651 = scalar_lea.vmem %s9, 64
      %v3652 = vld [vmem:[%s3651] sm:$0xff]
      %v3653 = vld [vmem:[%s3651 + $0x8] sm:$0xff]
      %v3654 = vld [vmem:[%s3651 + $0x10] sm:$0xff]
      %v3655 = vld [vmem:[%s3651 + $0x18] sm:$0xff]
      %v3656 = vld [vmem:[%s3651 + $0x20] sm:$0xff]
      %v3657 = vld [vmem:[%s3651 + $0x28] sm:$0xff]
      %v3658 = vld [vmem:[%s3651 + $0x30] sm:$0xff]
      %v3659 = vld [vmem:[%s3651 + $0x38] sm:$0xff]
      %s3660 = scalar_lea.vmem %s10, 1
      %v3661 = vld [vmem:[%s3660] sm:$0x1]
      %v3663 = vlaneseq
      %v3664 = vshrl.u32 %v3663, 7
      %v3665 = vsub.s32 0, %v3664
      %v3666 = vrot.slane %v3661, %v3665
      %v3669 = vsel %vm495, %v3650, 0
      %3671 = vmatprep.subr.mxu0 0.0
      %3672 = vmatpush1.msra.mxu0 0.0
      %3673 = vmatprep.subr.mxu0 0.0
      %3674 = vmatpush1.msra.mxu0 0.0
      %3675 = vmatprep.subr.mxu0 0.0
      %3676 = vmatpush1.msra.mxu0 0.0
      %3677 = vmatprep.subr.mxu0 0.0
      %3678 = vmatpush1.msra.mxu0 0.0
      %3679 = vmatprep.subr.mxu0 0.0
      %3680 = vmatpush1.msra.mxu0 0.0
      %3681 = vmatprep.subr.mxu0 0.0
      %3682 = vmatpush1.msra.mxu0 0.0
      %3683 = vmatprep.subr.mxu0 0.0
      %3684 = vmatpush1.msra.mxu0 0.0
      %3685 = vmatprep.subr.mxu0 0.0
      %3686 = vmatpush1.msra.mxu0 0.0
      %3687 = vmatprep.subr.mxu0 0.0
      %3688 = vmatpush1.msra.mxu0 %v3659
      %3689 = vmatprep.subr.mxu0 0.0
      %3690 = vmatpush1.msra.mxu0 %v3658
      %3691 = vmatprep.subr.mxu0 0.0
      %3692 = vmatpush1.msra.mxu0 %v3657
      %3693 = vmatprep.subr.mxu0 0.0
      %3694 = vmatpush1.msra.mxu0 %v3656
      %3695 = vmatprep.subr.mxu0 0.0
      %3696 = vmatpush1.msra.mxu0 %v3655
      %3697 = vmatprep.subr.mxu0 0.0
      %3698 = vmatpush1.msra.mxu0 %v3654
      %3699 = vmatprep.subr.mxu0 0.0
      %3700 = vmatpush1.msra.mxu0 %v3653
      %3701 = vmatprep.subr.mxu0 0.0
      %3702 = vmatpush1.msra.mxu0 %v3652
      %3703 = vmatprep.subr.mxu0 0.0
      %3704 = vmatpush2.msra.mxu0 0.0
      %3705 = vmatprep.subr.mxu0 0.0
      %3706 = vmatpush2.msra.mxu0 0.0
      %3707 = vmatprep.subr.mxu0 0.0
      %3708 = vmatpush2.msra.mxu0 0.0
      %3709 = vmatprep.subr.mxu0 0.0
      %3710 = vmatpush2.msra.mxu0 0.0
      %3711 = vmatprep.subr.mxu0 0.0
      %3712 = vmatpush2.msra.mxu0 0.0
      %3713 = vmatprep.subr.mxu0 0.0
      %3714 = vmatpush2.msra.mxu0 0.0
      %3715 = vmatprep.subr.mxu0 0.0
      %3716 = vmatpush2.msra.mxu0 0.0
      %3717 = vmatprep.subr.mxu0 0.0
      %3718 = vmatpush2.msra.mxu0 0.0
      %3719 = vmatprep.subr.mxu0 0.0
      %3720 = vmatpush2.msra.mxu0 0.0
      %3721 = vmatprep.subr.mxu0 0.0
      %3722 = vmatpush2.msra.mxu0 0.0
      %3723 = vmatprep.subr.mxu0 0.0
      %3724 = vmatpush2.msra.mxu0 0.0
      %3725 = vmatprep.subr.mxu0 0.0
      %3726 = vmatpush2.msra.mxu0 0.0
      %3727 = vmatprep.subr.mxu0 0.0
      %3728 = vmatpush2.msra.mxu0 0.0
      %3729 = vmatprep.subr.mxu0 0.0
      %3730 = vmatpush2.msra.mxu0 0.0
      %3731 = vmatprep.subr.mxu0 0.0
      %3732 = vmatpush2.msra.mxu0 0.0
      %3733 = vmatprep.subr.mxu0 0.0
      %3734 = vmatpush2.msra.mxu0 0.0
      %3735 = vmatprep.mubr.f32.mxu0 0.0
      %3736 = vmatmul.mubr.f32.gmra.mxu0 %v3669
      %v3737 = vpop.f32.mrf.mxu0
      %v3738 = vadd.f32 %v3666, %v3737
      %v3739 = vpop.f32.mrf.mxu0
      %3740 = vdwg.mxu0
      %v3741 = vmul.f32 %v3738, %v3738
      %v3742 = vmul.f32 %v3738, %v3741
      %v3743 = vmul.f32 %v3742, 0.044715
      %v3744 = vadd.f32 %v3738, %v3743
      %v3745 = vmul.f32 %v3744, 0.7978846
      %v3746 = vtanh.pop %v3745
      %v3747 = vadd.f32 %v3746, 1.0
      %v3748 = vmul.f32 %v3747, 0.5
      %v3749 = vmul.f32 %v3738, %v3748
      %s3750 = scalar_lea.vmem %s11, 128
      %v3751 = vld [vmem:[%s3750] sm:$0xff]
      %v3752 = vld [vmem:[%s3750 + $0x8] sm:$0xff]
      %v3753 = vld [vmem:[%s3750 + $0x10] sm:$0xff]
      %v3754 = vld [vmem:[%s3750 + $0x18] sm:$0xff]
      %v3755 = vld [vmem:[%s3750 + $0x20] sm:$0xff]
      %v3756 = vld [vmem:[%s3750 + $0x28] sm:$0xff]
      %v3757 = vld [vmem:[%s3750 + $0x30] sm:$0xff]
      %v3758 = vld [vmem:[%s3750 + $0x38] sm:$0xff]
      %v3759 = vld [vmem:[%s3750 + $0x40] sm:$0xff]
      %v3760 = vld [vmem:[%s3750 + $0x48] sm:$0xff]
      %v3761 = vld [vmem:[%s3750 + $0x50] sm:$0xff]
      %v3762 = vld [vmem:[%s3750 + $0x58] sm:$0xff]
      %v3763 = vld [vmem:[%s3750 + $0x60] sm:$0xff]
      %v3764 = vld [vmem:[%s3750 + $0x68] sm:$0xff]
      %v3765 = vld [vmem:[%s3750 + $0x70] sm:$0xff]
      %v3766 = vld [vmem:[%s3750 + $0x78] sm:$0xff]
      %s3767 = scalar_lea.vmem %s12, 1
      %v3768 = vld [vmem:[%s3767] sm:$0x1]
      %v3770 = vlaneseq
      %v3771 = vshrl.u32 %v3770, 7
      %v3772 = vsub.s32 0, %v3771
      %v3773 = vrot.slane %v3768, %v3772
      %3775 = vmatprep.subr.mxu0 0.0
      %3776 = vmatpush1.msra.mxu0 %v3766
      %3777 = vmatprep.subr.mxu0 0.0
      %3778 = vmatpush1.msra.mxu0 %v3765
      %3779 = vmatprep.subr.mxu0 0.0
      %3780 = vmatpush1.msra.mxu0 %v3764
      %3781 = vmatprep.subr.mxu0 0.0
      %3782 = vmatpush1.msra.mxu0 %v3763
      %3783 = vmatprep.subr.mxu0 0.0
      %3784 = vmatpush1.msra.mxu0 %v3762
      %3785 = vmatprep.subr.mxu0 0.0
      %3786 = vmatpush1.msra.mxu0 %v3761
      %3787 = vmatprep.subr.mxu0 0.0
      %3788 = vmatpush1.msra.mxu0 %v3760
      %3789 = vmatprep.subr.mxu0 0.0
      %3790 = vmatpush1.msra.mxu0 %v3759
      %3791 = vmatprep.subr.mxu0 0.0
      %3792 = vmatpush1.msra.mxu0 %v3758
      %3793 = vmatprep.subr.mxu0 0.0
      %3794 = vmatpush1.msra.mxu0 %v3757
      %3795 = vmatprep.subr.mxu0 0.0
      %3796 = vmatpush1.msra.mxu0 %v3756
      %3797 = vmatprep.subr.mxu0 0.0
      %3798 = vmatpush1.msra.mxu0 %v3755
      %3799 = vmatprep.subr.mxu0 0.0
      %3800 = vmatpush1.msra.mxu0 %v3754
      %3801 = vmatprep.subr.mxu0 0.0
      %3802 = vmatpush1.msra.mxu0 %v3753
      %3803 = vmatprep.subr.mxu0 0.0
      %3804 = vmatpush1.msra.mxu0 %v3752
      %3805 = vmatprep.subr.mxu0 0.0
      %3806 = vmatpush1.msra.mxu0 %v3751
      %3807 = vmatprep.subr.mxu0 0.0
      %3808 = vmatpush2.msra.mxu0 0.0
      %3809 = vmatprep.subr.mxu0 0.0
      %3810 = vmatpush2.msra.mxu0 0.0
      %3811 = vmatprep.subr.mxu0 0.0
      %3812 = vmatpush2.msra.mxu0 0.0
      %3813 = vmatprep.subr.mxu0 0.0
      %3814 = vmatpush2.msra.mxu0 0.0
      %3815 = vmatprep.subr.mxu0 0.0
      %3816 = vmatpush2.msra.mxu0 0.0
      %3817 = vmatprep.subr.mxu0 0.0
      %3818 = vmatpush2.msra.mxu0 0.0
      %3819 = vmatprep.subr.mxu0 0.0
      %3820 = vmatpush2.msra.mxu0 0.0
      %3821 = vmatprep.subr.mxu0 0.0
      %3822 = vmatpush2.msra.mxu0 0.0
      %3823 = vmatprep.subr.mxu0 0.0
      %3824 = vmatpush2.msra.mxu0 0.0
      %3825 = vmatprep.subr.mxu0 0.0
      %3826 = vmatpush2.msra.mxu0 0.0
      %3827 = vmatprep.subr.mxu0 0.0
      %3828 = vmatpush2.msra.mxu0 0.0
      %3829 = vmatprep.subr.mxu0 0.0
      %3830 = vmatpush2.msra.mxu0 0.0
      %3831 = vmatprep.subr.mxu0 0.0
      %3832 = vmatpush2.msra.mxu0 0.0
      %3833 = vmatprep.subr.mxu0 0.0
      %3834 = vmatpush2.msra.mxu0 0.0
      %3835 = vmatprep.subr.mxu0 0.0
      %3836 = vmatpush2.msra.mxu0 0.0
      %3837 = vmatprep.subr.mxu0 0.0
      %3838 = vmatpush2.msra.mxu0 0.0
      %3839 = vmatprep.mubr.f32.mxu0 0.0
      %3840 = vmatmul.mubr.f32.gmra.mxu0 %v3749
      %v3841 = vpop.f32.mrf.mxu0
      %v3842 = vadd.f32 %v3773, %v3841
      %v3843 = vpop.f32.mrf.mxu0
      %3844 = vdwg.mxu0
      %v3845 = vadd.f32 %v3842, %v3650
      %s3846 = scalar_lea.vmem %s13, 1
      %v3847 = vld [vmem:[%s3846] sm:$0x1]
      %s3848 = scalar_lea.vmem %s14, 1
      %v3849 = vld [vmem:[%s3848] sm:$0x1]
      %v3850 = vsel %vm495, %v3845, 0.0
      %3851 = vadd.xlane.f32.xlu0 %v3850
      %v3852 = vpop.xlane.xlu0 %3851
      %v3853 = vmul.f32 %v3852, %v499
      %v3854 = vmul.f32 %v3845, %v3845
      %v3855 = vsel %vm495, %v3854, 0.0
      %3856 = vadd.xlane.f32.xlu0 %v3855
      %v3857 = vpop.xlane.xlu0 %3856
      %v3858 = vmul.f32 %v3857, %v499
      %v3859 = vmul.f32 %v3853, %v3853
      %v3860 = vsub.f32 %v3858, %v3859
      %v3861 = vsub.f32 %v3845, %v3853
      %v3862 = vadd.f32 %v3860, 1e-05
      %v3863 = vrsqrt.pop %v3862
      %v3864 = vmul.f32 %v3861, %v3863
      %v3866 = vlaneseq
      %v3867 = vshrl.u32 %v3866, 7
      %v3868 = vsub.s32 0, %v3867
      %v3869 = vrot.slane %v3847, %v3868
      %v3871 = vmul.f32 %v3864, %v3869
      %v3873 = vlaneseq
      %v3874 = vshrl.u32 %v3873, 7
      %v3875 = vsub.s32 0, %v3874
      %v3876 = vrot.slane %v3849, %v3875
      %v3878 = vadd.f32 %v3871, %v3876
      %3879 = vst.msk [vmem:[%s491] sm:$0xff] %vm495, %v3878
      %3880 = vst.msk [vmem:[%s491 + $0x8] sm:$0xff] %vm495, 0.0
      %p3881 = scmp.lt.s32.totalorder %s26, 1
      %s3882 = scalar_select %p3881, %s26, 1
      %s3883 = smul.addr %s3882, 2
      %s3884 = smul.addr %s3883, 8
      %s3885 = scalar_lea.vmem %s15, %s3884
      // Predicated region
      $region81: #{roberta_forward.1} parent=79 // pred_check
        %p3886 = pneg %p364
      $region82: #{roberta_forward.1} parent=79 // pred_check_branch
        %3888 = sbr.rel (%p3886) target = $region84
      $region83: #{roberta_forward.1} parent=79 // pred_region
        _
      $region84: #{roberta_forward.1} parent=79 // pred_fallthru
        _
    $region80: #{roberta_forward.1} parent=5 // pred_fallthru
      _
    %p3889 = scmp.le.s32.totalorder 2, %s21
    // Predicated region
    $region85: #{roberta_forward.1} parent=5 // pred_check
      %p3890 = pneg %p3889
    $region86: #{roberta_forward.1} parent=5 // pred_check_branch
      %3892 = sbr.rel (%p3890) target = $region88
    $region87: #{roberta_forward.1} parent=5 // pred_region
      %s3893 = ssub.s32 %s21, 2
      // Predicated region
      $region89: #{roberta_forward.1} parent=87 // pred_check
        %p3894 = pneg %p370
      $region90: #{roberta_forward.1} parent=87 // pred_check_branch
        %3896 = sbr.rel (%p3894) target = $region92
      $region91: #{roberta_forward.1} parent=87 // pred_region
        %p3897 = scmp.lt.s32.totalorder %s27, 1
        %s3898 = scalar_select %p3897, %s27, 1
        %s3899 = smul.addr %s3898, 2
        %s3900 = smul.addr %s3899, 8
        %s3901 = scalar_lea.vmem %s15, %s3900
      $region92: #{roberta_forward.1} parent=87 // pred_fallthru
        _
    $region88: #{roberta_forward.1} parent=5 // pred_fallthru
      _
  $region6: #{roberta_forward.1} parent=0 // loop_footer
    %s25 = sadd.s32 1, %s21
  $region7: #{roberta_forward.1} parent=0 // loop_footer_branch
    %20 = sbr.rel target = $region3
  $region8: #{roberta_forward.1} parent=0 // loop_exit
    _

</llo_original>
